<compile_context>
chip_gen: v5e
topology: v5e:2x2
jax: 0.10.0
libtpu: 0.0.40
codegen_flags: <defaults>
</compile_context>

<pallas_src>
import functools
import math

import jax
import jax.numpy as jnp
from jax import lax
from jax.experimental import pallas as pl
from jax.experimental.pallas import tpu as pltpu

INPUT_DIM = 39


# ----------------------------------------------------------------------------
# Kernel 1: per-layer input ("i->h") gate pre-projection for BOTH directions.
#   gates[d] = bf16(x2d) @ bf16(W_ih[d]) + b[d]     (f32 accumulation)
# One big MXU matmul per direction instead of T tiny ones on the serial path.
# ----------------------------------------------------------------------------
def gates_kernel(x_ref, wih_ref, b_ref, g_ref):
    x = x_ref[...].astype(jnp.bfloat16)                            # (N, Din)
    g_ref[...] = (jnp.dot(x, wih_ref[...],
                          preferred_element_type=jnp.float32)
                  + b_ref[...])                                    # (N, 4H) f32


def run_input_gates(x2d, w_ih, b):
    # x2d: (N, Din) f32 ; w_ih: (2, Din, 4H) bf16 ; b: (2, 1, 4H) f32
    N, Din = x2d.shape
    G = w_ih.shape[2]
    return pl.pallas_call(
        gates_kernel,
        out_shape=jax.ShapeDtypeStruct((2, N, G), jnp.float32),
        grid=(2,),
        in_specs=[
            pl.BlockSpec((N, Din), lambda d: (0, 0)),                    # shared x
            pl.BlockSpec((pl.Squeezed(), Din, G), lambda d: (d, 0, 0)),
            pl.BlockSpec((pl.Squeezed(), 1, G), lambda d: (d, 0, 0)),
        ],
        out_specs=pl.BlockSpec((pl.Squeezed(), N, G), lambda d: (d, 0, 0)),
        compiler_params=pltpu.CompilerParams(
            dimension_semantics=("parallel",)),
    )(x2d, w_ih, b)


# ----------------------------------------------------------------------------
# Kernel 2: masked bidirectional LSTM recurrence for one layer.
# grid=(2,) over direction; whole sequence handled by one lax.fori_loop.
# Backward direction walks t = T-1..0 in-kernel (no reverse gathers in XLA).
# ----------------------------------------------------------------------------
def bilstm_kernel(g_ref, lens_ref, whh_ref, y_ref):
    d = pl.program_id(0)                 # 0 = forward, 1 = backward
    T, B, H = y_ref.shape
    w_hh = whh_ref[...]                  # (H, 4H) bf16, loaded once (VMEM-resident)
    lens = lens_ref[...]                 # (B, 1) int32

    def step(s, carry):
        h, c = carry                                      # (B, H) f32 each
        t = jnp.where(d == 0, s, T - 1 - s)               # bwd walks time reversed
        gates = g_ref[t] + jnp.dot(h.astype(jnp.bfloat16), w_hh,
                                   preferred_element_type=jnp.float32)
        i = jax.nn.sigmoid(gates[:, 0:H])                 # PyTorch gate order i,f,g,o
        f = jax.nn.sigmoid(gates[:, H:2 * H])
        g = jnp.tanh(gates[:, 2 * H:3 * H])
        o = jax.nn.sigmoid(gates[:, 3 * H:4 * H])
        c_new = f * c + i * g
        h_new = o * jnp.tanh(c_new)
        valid = t < lens                                  # (B, 1) packed-seq mask
        c = jnp.where(valid, c_new, c)                    # freeze state past length
        h = jnp.where(valid, h_new, h)
        y_ref[t] = jnp.where(valid, h_new, 0.0)           # zero padded positions
        return (h, c)

    z = jnp.zeros((B, H), jnp.float32)
    lax.fori_loop(0, T, step, (z, z))


def run_bilstm_layer(x, lens, w_ih, w_hh, b):
    T, B, Din = x.shape
    H = w_hh.shape[1]
    G = 4 * H
    gates = run_input_gates(x.reshape(T * B, Din), w_ih, b)
    gates = gates.reshape(2, T, B, G)                     # contiguous -> free
    lens2d = lens.reshape(B, 1).astype(jnp.int32)
    y = pl.pallas_call(
        bilstm_kernel,
        out_shape=jax.ShapeDtypeStruct((2, T, B, H), jnp.float32),
        grid=(2,),
        in_specs=[
            pl.BlockSpec((pl.Squeezed(), T, B, G), lambda d: (d, 0, 0, 0)),
            pl.BlockSpec((B, 1), lambda d: (0, 0)),
            pl.BlockSpec((pl.Squeezed(), H, G), lambda d: (d, 0, 0)),
        ],
        out_specs=pl.BlockSpec((pl.Squeezed(), T, B, H), lambda d: (d, 0, 0, 0)),
        compiler_params=pltpu.CompilerParams(
            dimension_semantics=("parallel",)),
    )(gates, lens2d, w_hh)
    # PyTorch bidirectional output layout: [forward_t, backward_t] features.
    return jnp.concatenate([y[0], y[1]], axis=-1)


# ----------------------------------------------------------------------------
# Kernel 3: fused key/value projection (single matmul, 128-lane-padded output,
# row-tiled so large N stays within VMEM on every TPU generation).
# ----------------------------------------------------------------------------
def proj_kernel(h_ref, w_ref, b_ref, o_ref):
    h = h_ref[...].astype(jnp.bfloat16)
    o_ref[...] = (jnp.dot(h, w_ref[...], preferred_element_type=jnp.float32)
                  + b_ref[...])


def run_projection(h2d, w_kv, b_kv, row_tile=256):
    N, D = h2d.shape
    C = w_kv.shape[1]                                     # padded to 128 multiple
    n_pad = (-N) % row_tile
    if n_pad:
        h2d = jnp.pad(h2d, ((0, n_pad), (0, 0)))
    Np = N + n_pad
    out = pl.pallas_call(
        proj_kernel,
        out_shape=jax.ShapeDtypeStruct((Np, C), jnp.float32),
        grid=(Np // row_tile,),
        in_specs=[
            pl.BlockSpec((row_tile, D), lambda i: (i, 0)),
            pl.BlockSpec((D, C), lambda i: (0, 0)),
            pl.BlockSpec((1, C), lambda i: (0, 0)),
        ],
        out_specs=pl.BlockSpec((row_tile, C), lambda i: (i, 0)),
        compiler_params=pltpu.CompilerParams(
            dimension_semantics=("parallel",)),
    )(h2d, w_kv, b_kv)
    return out[:N]


# ----------------------------------------------------------------------------
# XLA glue: SequenceShuffle (pyramid frame fusion) + full encoder forward.
# ----------------------------------------------------------------------------
def sequence_shuffle(h, lens):
    """Drop odd tail frame, fuse adjacent frames -> (T//2, B, 2D); lens //= 2."""
    T, B, D = h.shape
    T2 = (T // 2) * 2
    hb = jnp.transpose(h[:T2], (1, 0, 2)).reshape(B, T2 // 2, 2 * D)
    return jnp.transpose(hb, (1, 0, 2)), lens // 2


@functools.partial(jax.jit, static_argnames=("key_dim", "value_dim"))
def encoder_forward(params, utterances, utterance_lengths, *, key_dim, value_dim):
    # Length sort/unsort in the PyTorch code only services pack_padded_sequence;
    # per-sequence results are identical, so it is omitted here.
    h = utterances
    lens = utterance_lengths.astype(jnp.int32)
    for li in range(4):
        if li > 0:
            h, lens = sequence_shuffle(h, lens)
        p = params[f"rnn{li}"]
        h = run_bilstm_layer(h, lens, p["wih"], p["whh"], p["b"])
    Tf, B, D = h.shape
    kv = run_projection(h.reshape(Tf * B, D), params["w_kv"], params["b_kv"])
    keys = kv[:, :key_dim].reshape(Tf, B, key_dim)
    values = kv[:, key_dim:key_dim + value_dim].reshape(Tf, B, value_dim)
    return keys, values, lens       # lens == original_lengths // 8, original order


# ----------------------------------------------------------------------------
# Deterministic parameter init (PyTorch-style U(-1/sqrt(H), 1/sqrt(H))).
# Note: b_ih + b_hh folded into one bias per gate (distribution differs slightly
# from PyTorch's sum of two uniforms; functionally equivalent).
# ----------------------------------------------------------------------------
def init_params(key, enc_dim, key_dim, value_dim):
    H = enc_dim
    layer_in = [INPUT_DIM, 4 * H, 4 * H, 4 * H]
    params = {}
    scale = 1.0 / math.sqrt(H)
    ks = iter(jax.random.split(key, len(layer_in) * 6 + 4))
    for li, din in enumerate(layer_in):
        wih = jnp.stack([jax.random.uniform(next(ks), (din, 4 * H), jnp.float32,
                                            -scale, scale) for _ in range(2)])
        whh = jnp.stack([jax.random.uniform(next(ks), (H, 4 * H), jnp.float32,
                                            -scale, scale) for _ in range(2)])
        b = jnp.stack([jax.random.uniform(next(ks), (1, 4 * H), jnp.float32,
                                          -scale, scale) for _ in range(2)])
        params[f"rnn{li}"] = {"wih": wih.astype(jnp.bfloat16),
                              "whh": whh.astype(jnp.bfloat16),
                              "b": b}
    lscale = 1.0 / math.sqrt(2 * H)
    wk = jax.random.uniform(next(ks), (2 * H, key_dim), jnp.float32, -lscale, lscale)
    bk = jax.random.uniform(next(ks), (1, key_dim), jnp.float32, -lscale, lscale)
    wv = jax.random.uniform(next(ks), (2 * H, value_dim), jnp.float32, -lscale, lscale)
    bv = jax.random.uniform(next(ks), (1, value_dim), jnp.float32, -lscale, lscale)
    C = key_dim + value_dim
    c_pad = ((C + 127) // 128) * 128          # lane-dense (unmasked) output stores
    w_kv = (jnp.zeros((2 * H, c_pad), jnp.float32)
            .at[:, :key_dim].set(wk).at[:, key_dim:C].set(wv))
    b_kv = (jnp.zeros((1, c_pad), jnp.float32)
            .at[:, :key_dim].set(bk).at[:, key_dim:C].set(bv))
    params["w_kv"] = w_kv.astype(jnp.bfloat16)
    params["b_kv"] = b_kv
    return params


if __name__ == "__main__":
    enc_dim, key_dim, value_dim = 32, 16, 24
    B, T = 4, 16
    root = jax.random.PRNGKey(0)
    pkey, xkey = jax.random.split(root)
    params = init_params(pkey, enc_dim, key_dim, value_dim)
    utterances = jax.random.normal(xkey, (T, B, INPUT_DIM), jnp.float32)
    utterance_lengths = jnp.array([16, 14, 11, 8], dtype=jnp.int32)   # max == T

    keys_out, values_out, out_lens = encoder_forward(
        params, utterances, utterance_lengths,
        key_dim=key_dim, value_dim=value_dim)
    jax.block_until_ready((keys_out, values_out, out_lens))
    assert keys_out.shape == (T // 8, B, key_dim)
    assert values_out.shape == (T // 8, B, value_dim)
    assert bool(jnp.all(jnp.isfinite(keys_out))) and bool(jnp.all(jnp.isfinite(values_out)))
    print("KERNEL_OK")
</pallas_src>

<mosaic_0001>
module attributes {stable_mosaic.version = 11 : i64} {
  func.func @gates_kernel(%arg0: i32, %arg1: memref<64x39xf32, #tpu.memory_space<vmem>>, %arg2: memref<1x39x128xbf16, #tpu.memory_space<vmem>>, %arg3: memref<1x1x128xf32, #tpu.memory_space<vmem>>, %arg4: memref<1x64x128xf32, #tpu.memory_space<vmem>>) attributes {dimension_semantics = [#tpu.dimension_semantics<parallel>], iteration_bounds = array<i64: 2>, scalar_prefetch = 0 : i64, scratch_operands = 0 : i64, tpu.core_type = #tpu.core_type<tc>, window_params = [{pipeline_mode = #tpu.pipeline_mode<synchronous>, transform_indices = @transform_0, window_bounds = array<i64: 64, 39>}, {transform_indices = @transform_1, window_bounds = array<i64: 1, 39, 128>}, {transform_indices = @transform_2, window_bounds = array<i64: 1, 1, 128>}, {transform_indices = @transform_3, window_bounds = array<i64: 1, 64, 128>}]} {
    %c0 = arith.constant 0 : index
    %c0_0 = arith.constant 0 : index
    %0 = vector.load %arg1[%c0, %c0_0] : memref<64x39xf32, #tpu.memory_space<vmem>>, vector<64x39xf32>
    %1 = arith.truncf %0 : vector<64x39xf32> to vector<64x39xbf16>
    %c0_1 = arith.constant 0 : index
    %c0_2 = arith.constant 0 : index
    %c0_3 = arith.constant 0 : index
    %2 = vector.load %arg2[%c0_1, %c0_2, %c0_3] : memref<1x39x128xbf16, #tpu.memory_space<vmem>>, vector<1x39x128xbf16>
    %3 = vector.shape_cast %2 : vector<1x39x128xbf16> to vector<39x128xbf16>
    %cst = arith.constant dense<0.000000e+00> : vector<64x128xf32>
    %4 = tpu.matmul %1, %3, %cst {dimension_numbers = #tpu.dot_dimension_numbers<[1], [0], [0], [1], [0, 0, 1, 1], [], []>} : vector<64x39xbf16>, vector<39x128xbf16>, vector<64x128xf32> -> vector<64x128xf32>
    %c0_4 = arith.constant 0 : index
    %c0_5 = arith.constant 0 : index
    %c0_6 = arith.constant 0 : index
    %5 = vector.load %arg3[%c0_4, %c0_5, %c0_6] : memref<1x1x128xf32, #tpu.memory_space<vmem>>, vector<1x1x128xf32>
    %6 = vector.shape_cast %5 : vector<1x1x128xf32> to vector<1x128xf32>
    %7 = vector.broadcast %6 : vector<1x128xf32> to vector<64x128xf32>
    %8 = arith.addf %4, %7 : vector<64x128xf32>
    %c0_7 = arith.constant 0 : index
    %c0_8 = arith.constant 0 : index
    %c0_9 = arith.constant 0 : index
    %9 = vector.load %arg4[%c0_7, %c0_8, %c0_9] : memref<1x64x128xf32, #tpu.memory_space<vmem>>, vector<1x64x128xf32>
    %10 = vector.shape_cast %9 : vector<1x64x128xf32> to vector<64x128xf32>
    %11 = vector.shape_cast %8 : vector<64x128xf32> to vector<1x64x128xf32>
    tpu.vector_store %arg4[%c0_7, %c0_8, %c0_9], %11 {strides = array<i32>} : memref<1x64x128xf32, #tpu.memory_space<vmem>>, vector<1x64x128xf32>,
    return
  }
  func.func @transform_0(%arg0: i32) -> (i32, i32) {
    %c0_i32 = arith.constant 0 : i32
    %c0_i32_0 = arith.constant 0 : i32
    %c0_i32_1 = arith.constant 0 : i32
    return %c0_i32, %c0_i32_0 : i32, i32
  }
  func.func @transform_1(%arg0: i32) -> (i32, i32, i32) {
    %c0_i32 = arith.constant 0 : i32
    %c0_i32_0 = arith.constant 0 : i32
    %c0_i32_1 = arith.constant 0 : i32
    return %arg0, %c0_i32, %c0_i32_0 : i32, i32, i32
  }
  func.func @transform_2(%arg0: i32) -> (i32, i32, i32) {
    %c0_i32 = arith.constant 0 : i32
    %c0_i32_0 = arith.constant 0 : i32
    %c0_i32_1 = arith.constant 0 : i32
    return %arg0, %c0_i32, %c0_i32_0 : i32, i32, i32
  }
  func.func @transform_3(%arg0: i32) -> (i32, i32, i32) {
    %c0_i32 = arith.constant 0 : i32
    %c0_i32_0 = arith.constant 0 : i32
    %c0_i32_1 = arith.constant 0 : i32
    return %arg0, %c0_i32, %c0_i32_0 : i32, i32, i32
  }
}

module attributes {stable_mosaic.version = 11 : i64} {
  func.func @bilstm_kernel(%arg0: i32, %arg1: memref<1x16x4x128xf32, #tpu.memory_space<vmem>>, %arg2: memref<4x1xi32, #tpu.memory_space<vmem>>, %arg3: memref<1x32x128xbf16, #tpu.memory_space<vmem>>, %arg4: memref<1x16x4x32xf32, #tpu.memory_space<vmem>>) attributes {dimension_semantics = [#tpu.dimension_semantics<parallel>], iteration_bounds = array<i64: 2>, scalar_prefetch = 0 : i64, scratch_operands = 0 : i64, tpu.core_type = #tpu.core_type<tc>, window_params = [{transform_indices = @transform_0, window_bounds = array<i64: 1, 16, 4, 128>}, {pipeline_mode = #tpu.pipeline_mode<synchronous>, transform_indices = @transform_1, window_bounds = array<i64: 4, 1>}, {transform_indices = @transform_2, window_bounds = array<i64: 1, 32, 128>}, {transform_indices = @transform_3, window_bounds = array<i64: 1, 16, 4, 32>}]} {
    %c0 = arith.constant 0 : index
    %c0_0 = arith.constant 0 : index
    %c0_1 = arith.constant 0 : index
    %0 = vector.load %arg3[%c0, %c0_0, %c0_1] : memref<1x32x128xbf16, #tpu.memory_space<vmem>>, vector<1x32x128xbf16>
    %1 = vector.shape_cast %0 : vector<1x32x128xbf16> to vector<32x128xbf16>
    %c0_2 = arith.constant 0 : index
    %c0_3 = arith.constant 0 : index
    %2 = vector.load %arg2[%c0_2, %c0_3] : memref<4x1xi32, #tpu.memory_space<vmem>>, vector<4x1xi32>
    %cst = arith.constant 0.000000e+00 : f32
    %3 = vector.broadcast %cst : f32 to vector<4x32xf32>
    %c0_i32 = arith.constant 0 : i32
    %c16_i32 = arith.constant 16 : i32
    %4 = arith.addi %c0_i32, %c16_i32 : i32
    %c1_i32 = arith.constant 1 : i32
    %5:2 = scf.for %arg5 = %c0_i32 to %4 step %c1_i32 iter_args(%arg6 = %3, %arg7 = %3) -> (vector<4x32xf32>, vector<4x32xf32>)  : i32 {
      %c0_i32_5 = arith.constant 0 : i32
      %6 = arith.cmpi eq, %arg0, %c0_i32_5 : i32
      %c15_i32 = arith.constant 15 : i32
      %7 = arith.subi %c15_i32, %arg5 : i32
      %8 = arith.select %6, %arg5, %7 : i32
      %c0_6 = arith.constant 0 : index
      %9 = arith.index_cast %8 : i32 to index
      %c0_7 = arith.constant 0 : index
      %c0_8 = arith.constant 0 : index
      %10 = vector.load %arg1[%c0_6, %9, %c0_7, %c0_8] : memref<1x16x4x128xf32, #tpu.memory_space<vmem>>, vector<1x1x4x128xf32>
      %11 = vector.shape_cast %10 : vector<1x1x4x128xf32> to vector<4x128xf32>
      %12 = arith.truncf %arg6 : vector<4x32xf32> to vector<4x32xbf16>
      %cst_9 = arith.constant dense<0.000000e+00> : vector<4x128xf32>
      %13 = tpu.matmul %12, %1, %cst_9 {dimension_numbers = #tpu.dot_dimension_numbers<[1], [0], [0], [1], [0, 0, 1, 1], [], []>} : vector<4x32xbf16>, vector<32x128xbf16>, vector<4x128xf32> -> vector<4x128xf32>
      %14 = arith.addf %11, %13 : vector<4x128xf32>
      %15 = vector.extract_strided_slice %14 {offsets = [0, 0], sizes = [4, 32], strides = [1, 1]} : vector<4x128xf32> to vector<4x32xf32>
      %16 = arith.negf %15 : vector<4x32xf32>
      %17 = math.exp %16 : vector<4x32xf32>
      %cst_10 = arith.constant 1.000000e+00 : f32
      %18 = vector.broadcast %cst_10 : f32 to vector<4x32xf32>
      %19 = arith.addf %18, %17 : vector<4x32xf32>
      %20 = arith.divf %18, %19 : vector<4x32xf32>
      %21 = vector.extract_strided_slice %14 {offsets = [0, 32], sizes = [4, 32], strides = [1, 1]} : vector<4x128xf32> to vector<4x32xf32>
      %22 = arith.negf %21 : vector<4x32xf32>
      %23 = math.exp %22 : vector<4x32xf32>
      %cst_11 = arith.constant 1.000000e+00 : f32
      %24 = vector.broadcast %cst_11 : f32 to vector<4x32xf32>
      %25 = arith.addf %24, %23 : vector<4x32xf32>
      %26 = arith.divf %24, %25 : vector<4x32xf32>
      %27 = vector.extract_strided_slice %14 {offsets = [0, 64], sizes = [4, 32], strides = [1, 1]} : vector<4x128xf32> to vector<4x32xf32>
      %28 = math.tanh %27 : vector<4x32xf32>
      %29 = vector.extract_strided_slice %14 {offsets = [0, 96], sizes = [4, 32], strides = [1, 1]} : vector<4x128xf32> to vector<4x32xf32>
      %30 = arith.negf %29 : vector<4x32xf32>
      %31 = math.exp %30 : vector<4x32xf32>
      %cst_12 = arith.constant 1.000000e+00 : f32
      %32 = vector.broadcast %cst_12 : f32 to vector<4x32xf32>
      %33 = arith.addf %32, %31 : vector<4x32xf32>
      %34 = arith.divf %32, %33 : vector<4x32xf32>
      %35 = arith.mulf %26, %arg7 : vector<4x32xf32>
      %36 = arith.mulf %20, %28 : vector<4x32xf32>
      %37 = arith.addf %35, %36 : vector<4x32xf32>
      %38 = math.tanh %37 : vector<4x32xf32>
      %39 = arith.mulf %34, %38 : vector<4x32xf32>
      %40 = vector.broadcast %8 : i32 to vector<4x1xi32>
      %41 = arith.cmpi slt, %40, %2 : vector<4x1xi32>
      %42 = vector.shape_cast %41 : vector<4x1xi1> to vector<4x1xi1>
      %43 = vector.broadcast %42 : vector<4x1xi1> to vector<4x32xi1>
      %44 = arith.select %43, %37, %arg7 : vector<4x32xi1>, vector<4x32xf32>
      %45 = vector.shape_cast %41 : vector<4x1xi1> to vector<4x1xi1>
      %46 = vector.broadcast %45 : vector<4x1xi1> to vector<4x32xi1>
      %47 = arith.select %46, %39, %arg6 : vector<4x32xi1>, vector<4x32xf32>
      %cst_13 = arith.constant 0.000000e+00 : f32
      %48 = vector.shape_cast %41 : vector<4x1xi1> to vector<4x1xi1>
      %49 = vector.broadcast %48 : vector<4x1xi1> to vector<4x32xi1>
      %50 = vector.broadcast %cst_13 : f32 to vector<4x32xf32>
      %51 = arith.select %49, %39, %50 : vector<4x32xi1>, vector<4x32xf32>
      %c0_14 = arith.constant 0 : index
      %52 = arith.index_cast %8 : i32 to index
      %c0_15 = arith.constant 0 : index
      %c0_16 = arith.constant 0 : index
      %53 = vector.load %arg4[%c0_14, %52, %c0_15, %c0_16] : memref<1x16x4x32xf32, #tpu.memory_space<vmem>>, vector<1x1x4x32xf32>
      %54 = vector.shape_cast %53 : vector<1x1x4x32xf32> to vector<4x32xf32>
      %55 = vector.shape_cast %51 : vector<4x32xf32> to vector<1x1x4x32xf32>
      tpu.vector_store %arg4[%c0_14, %52, %c0_15, %c0_16], %55 {strides = array<i32>} : memref<1x16x4x32xf32, #tpu.memory_space<vmem>>, vector<1x1x4x32xf32>,
      scf.yield %47, %44 : vector<4x32xf32>, vector<4x32xf32>
    }
    %c16_i32_4 = arith.constant 16 : i32
    return
  }
  func.func @transform_0(%arg0: i32) -> (i32, i32, i32, i32) {
    %c0_i32 = arith.constant 0 : i32
    %c0_i32_0 = arith.constant 0 : i32
    %c0_i32_1 = arith.constant 0 : i32
    %c0_i32_2 = arith.constant 0 : i32
    return %arg0, %c0_i32, %c0_i32_0, %c0_i32_1 : i32, i32, i32, i32
  }
  func.func @transform_1(%arg0: i32) -> (i32, i32) {
    %c0_i32 = arith.constant 0 : i32
    %c0_i32_0 = arith.constant 0 : i32
    %c0_i32_1 = arith.constant 0 : i32
    return %c0_i32, %c0_i32_0 : i32, i32
  }
  func.func @transform_2(%arg0: i32) -> (i32, i32, i32) {
    %c0_i32 = arith.constant 0 : i32
    %c0_i32_0 = arith.constant 0 : i32
    %c0_i32_1 = arith.constant 0 : i32
    return %arg0, %c0_i32, %c0_i32_0 : i32, i32, i32
  }
  func.func @transform_3(%arg0: i32) -> (i32, i32, i32, i32) {
    %c0_i32 = arith.constant 0 : i32
    %c0_i32_0 = arith.constant 0 : i32
    %c0_i32_1 = arith.constant 0 : i32
    %c0_i32_2 = arith.constant 0 : i32
    return %arg0, %c0_i32, %c0_i32_0, %c0_i32_1 : i32, i32, i32, i32
  }
}

module attributes {stable_mosaic.version = 11 : i64} {
  func.func @gates_kernel(%arg0: i32, %arg1: memref<32x128xf32, #tpu.memory_space<vmem>>, %arg2: memref<1x128x128xbf16, #tpu.memory_space<vmem>>, %arg3: memref<1x1x128xf32, #tpu.memory_space<vmem>>, %arg4: memref<1x32x128xf32, #tpu.memory_space<vmem>>) attributes {dimension_semantics = [#tpu.dimension_semantics<parallel>], iteration_bounds = array<i64: 2>, scalar_prefetch = 0 : i64, scratch_operands = 0 : i64, tpu.core_type = #tpu.core_type<tc>, window_params = [{pipeline_mode = #tpu.pipeline_mode<synchronous>, transform_indices = @transform_0, window_bounds = array<i64: 32, 128>}, {transform_indices = @transform_1, window_bounds = array<i64: 1, 128, 128>}, {transform_indices = @transform_2, window_bounds = array<i64: 1, 1, 128>}, {transform_indices = @transform_3, window_bounds = array<i64: 1, 32, 128>}]} {
    %c0 = arith.constant 0 : index
    %c0_0 = arith.constant 0 : index
    %0 = vector.load %arg1[%c0, %c0_0] : memref<32x128xf32, #tpu.memory_space<vmem>>, vector<32x128xf32>
    %1 = arith.truncf %0 : vector<32x128xf32> to vector<32x128xbf16>
    %c0_1 = arith.constant 0 : index
    %c0_2 = arith.constant 0 : index
    %c0_3 = arith.constant 0 : index
    %2 = vector.load %arg2[%c0_1, %c0_2, %c0_3] : memref<1x128x128xbf16, #tpu.memory_space<vmem>>, vector<1x128x128xbf16>
    %3 = vector.shape_cast %2 : vector<1x128x128xbf16> to vector<128x128xbf16>
    %cst = arith.constant dense<0.000000e+00> : vector<32x128xf32>
    %4 = tpu.matmul %1, %3, %cst {dimension_numbers = #tpu.dot_dimension_numbers<[1], [0], [0], [1], [0, 0, 1, 1], [], []>} : vector<32x128xbf16>, vector<128x128xbf16>, vector<32x128xf32> -> vector<32x128xf32>
    %c0_4 = arith.constant 0 : index
    %c0_5 = arith.constant 0 : index
    %c0_6 = arith.constant 0 : index
    %5 = vector.load %arg3[%c0_4, %c0_5, %c0_6] : memref<1x1x128xf32, #tpu.memory_space<vmem>>, vector<1x1x128xf32>
    %6 = vector.shape_cast %5 : vector<1x1x128xf32> to vector<1x128xf32>
    %7 = vector.broadcast %6 : vector<1x128xf32> to vector<32x128xf32>
    %8 = arith.addf %4, %7 : vector<32x128xf32>
    %c0_7 = arith.constant 0 : index
    %c0_8 = arith.constant 0 : index
    %c0_9 = arith.constant 0 : index
    %9 = vector.load %arg4[%c0_7, %c0_8, %c0_9] : memref<1x32x128xf32, #tpu.memory_space<vmem>>, vector<1x32x128xf32>
    %10 = vector.shape_cast %9 : vector<1x32x128xf32> to vector<32x128xf32>
    %11 = vector.shape_cast %8 : vector<32x128xf32> to vector<1x32x128xf32>
    tpu.vector_store %arg4[%c0_7, %c0_8, %c0_9], %11 {strides = array<i32>} : memref<1x32x128xf32, #tpu.memory_space<vmem>>, vector<1x32x128xf32>,
    return
  }
  func.func @transform_0(%arg0: i32) -> (i32, i32) {
    %c0_i32 = arith.constant 0 : i32
    %c0_i32_0 = arith.constant 0 : i32
    %c0_i32_1 = arith.constant 0 : i32
    return %c0_i32, %c0_i32_0 : i32, i32
  }
  func.func @transform_1(%arg0: i32) -> (i32, i32, i32) {
    %c0_i32 = arith.constant 0 : i32
    %c0_i32_0 = arith.constant 0 : i32
    %c0_i32_1 = arith.constant 0 : i32
    return %arg0, %c0_i32, %c0_i32_0 : i32, i32, i32
  }
  func.func @transform_2(%arg0: i32) -> (i32, i32, i32) {
    %c0_i32 = arith.constant 0 : i32
    %c0_i32_0 = arith.constant 0 : i32
    %c0_i32_1 = arith.constant 0 : i32
    return %arg0, %c0_i32, %c0_i32_0 : i32, i32, i32
  }
  func.func @transform_3(%arg0: i32) -> (i32, i32, i32) {
    %c0_i32 = arith.constant 0 : i32
    %c0_i32_0 = arith.constant 0 : i32
    %c0_i32_1 = arith.constant 0 : i32
    return %arg0, %c0_i32, %c0_i32_0 : i32, i32, i32
  }
}

module attributes {stable_mosaic.version = 11 : i64} {
  func.func @bilstm_kernel(%arg0: i32, %arg1: memref<1x8x4x128xf32, #tpu.memory_space<vmem>>, %arg2: memref<4x1xi32, #tpu.memory_space<vmem>>, %arg3: memref<1x32x128xbf16, #tpu.memory_space<vmem>>, %arg4: memref<1x8x4x32xf32, #tpu.memory_space<vmem>>) attributes {dimension_semantics = [#tpu.dimension_semantics<parallel>], iteration_bounds = array<i64: 2>, scalar_prefetch = 0 : i64, scratch_operands = 0 : i64, tpu.core_type = #tpu.core_type<tc>, window_params = [{transform_indices = @transform_0, window_bounds = array<i64: 1, 8, 4, 128>}, {pipeline_mode = #tpu.pipeline_mode<synchronous>, transform_indices = @transform_1, window_bounds = array<i64: 4, 1>}, {transform_indices = @transform_2, window_bounds = array<i64: 1, 32, 128>}, {transform_indices = @transform_3, window_bounds = array<i64: 1, 8, 4, 32>}]} {
    %c0 = arith.constant 0 : index
    %c0_0 = arith.constant 0 : index
    %c0_1 = arith.constant 0 : index
    %0 = vector.load %arg3[%c0, %c0_0, %c0_1] : memref<1x32x128xbf16, #tpu.memory_space<vmem>>, vector<1x32x128xbf16>
    %1 = vector.shape_cast %0 : vector<1x32x128xbf16> to vector<32x128xbf16>
    %c0_2 = arith.constant 0 : index
    %c0_3 = arith.constant 0 : index
    %2 = vector.load %arg2[%c0_2, %c0_3] : memref<4x1xi32, #tpu.memory_space<vmem>>, vector<4x1xi32>
    %cst = arith.constant 0.000000e+00 : f32
    %3 = vector.broadcast %cst : f32 to vector<4x32xf32>
    %c0_i32 = arith.constant 0 : i32
    %c8_i32 = arith.constant 8 : i32
    %4 = arith.addi %c0_i32, %c8_i32 : i32
    %c1_i32 = arith.constant 1 : i32
    %5:2 = scf.for %arg5 = %c0_i32 to %4 step %c1_i32 iter_args(%arg6 = %3, %arg7 = %3) -> (vector<4x32xf32>, vector<4x32xf32>)  : i32 {
      %c0_i32_5 = arith.constant 0 : i32
      %6 = arith.cmpi eq, %arg0, %c0_i32_5 : i32
      %c7_i32 = arith.constant 7 : i32
      %7 = arith.subi %c7_i32, %arg5 : i32
      %8 = arith.select %6, %arg5, %7 : i32
      %c0_6 = arith.constant 0 : index
      %9 = arith.index_cast %8 : i32 to index
      %c0_7 = arith.constant 0 : index
      %c0_8 = arith.constant 0 : index
      %10 = vector.load %arg1[%c0_6, %9, %c0_7, %c0_8] : memref<1x8x4x128xf32, #tpu.memory_space<vmem>>, vector<1x1x4x128xf32>
      %11 = vector.shape_cast %10 : vector<1x1x4x128xf32> to vector<4x128xf32>
      %12 = arith.truncf %arg6 : vector<4x32xf32> to vector<4x32xbf16>
      %cst_9 = arith.constant dense<0.000000e+00> : vector<4x128xf32>
      %13 = tpu.matmul %12, %1, %cst_9 {dimension_numbers = #tpu.dot_dimension_numbers<[1], [0], [0], [1], [0, 0, 1, 1], [], []>} : vector<4x32xbf16>, vector<32x128xbf16>, vector<4x128xf32> -> vector<4x128xf32>
      %14 = arith.addf %11, %13 : vector<4x128xf32>
      %15 = vector.extract_strided_slice %14 {offsets = [0, 0], sizes = [4, 32], strides = [1, 1]} : vector<4x128xf32> to vector<4x32xf32>
      %16 = arith.negf %15 : vector<4x32xf32>
      %17 = math.exp %16 : vector<4x32xf32>
      %cst_10 = arith.constant 1.000000e+00 : f32
      %18 = vector.broadcast %cst_10 : f32 to vector<4x32xf32>
      %19 = arith.addf %18, %17 : vector<4x32xf32>
      %20 = arith.divf %18, %19 : vector<4x32xf32>
      %21 = vector.extract_strided_slice %14 {offsets = [0, 32], sizes = [4, 32], strides = [1, 1]} : vector<4x128xf32> to vector<4x32xf32>
      %22 = arith.negf %21 : vector<4x32xf32>
      %23 = math.exp %22 : vector<4x32xf32>
      %cst_11 = arith.constant 1.000000e+00 : f32
      %24 = vector.broadcast %cst_11 : f32 to vector<4x32xf32>
      %25 = arith.addf %24, %23 : vector<4x32xf32>
      %26 = arith.divf %24, %25 : vector<4x32xf32>
      %27 = vector.extract_strided_slice %14 {offsets = [0, 64], sizes = [4, 32], strides = [1, 1]} : vector<4x128xf32> to vector<4x32xf32>
      %28 = math.tanh %27 : vector<4x32xf32>
      %29 = vector.extract_strided_slice %14 {offsets = [0, 96], sizes = [4, 32], strides = [1, 1]} : vector<4x128xf32> to vector<4x32xf32>
      %30 = arith.negf %29 : vector<4x32xf32>
      %31 = math.exp %30 : vector<4x32xf32>
      %cst_12 = arith.constant 1.000000e+00 : f32
      %32 = vector.broadcast %cst_12 : f32 to vector<4x32xf32>
      %33 = arith.addf %32, %31 : vector<4x32xf32>
      %34 = arith.divf %32, %33 : vector<4x32xf32>
      %35 = arith.mulf %26, %arg7 : vector<4x32xf32>
      %36 = arith.mulf %20, %28 : vector<4x32xf32>
      %37 = arith.addf %35, %36 : vector<4x32xf32>
      %38 = math.tanh %37 : vector<4x32xf32>
      %39 = arith.mulf %34, %38 : vector<4x32xf32>
      %40 = vector.broadcast %8 : i32 to vector<4x1xi32>
      %41 = arith.cmpi slt, %40, %2 : vector<4x1xi32>
      %42 = vector.shape_cast %41 : vector<4x1xi1> to vector<4x1xi1>
      %43 = vector.broadcast %42 : vector<4x1xi1> to vector<4x32xi1>
      %44 = arith.select %43, %37, %arg7 : vector<4x32xi1>, vector<4x32xf32>
      %45 = vector.shape_cast %41 : vector<4x1xi1> to vector<4x1xi1>
      %46 = vector.broadcast %45 : vector<4x1xi1> to vector<4x32xi1>
      %47 = arith.select %46, %39, %arg6 : vector<4x32xi1>, vector<4x32xf32>
      %cst_13 = arith.constant 0.000000e+00 : f32
      %48 = vector.shape_cast %41 : vector<4x1xi1> to vector<4x1xi1>
      %49 = vector.broadcast %48 : vector<4x1xi1> to vector<4x32xi1>
      %50 = vector.broadcast %cst_13 : f32 to vector<4x32xf32>
      %51 = arith.select %49, %39, %50 : vector<4x32xi1>, vector<4x32xf32>
      %c0_14 = arith.constant 0 : index
      %52 = arith.index_cast %8 : i32 to index
      %c0_15 = arith.constant 0 : index
      %c0_16 = arith.constant 0 : index
      %53 = vector.load %arg4[%c0_14, %52, %c0_15, %c0_16] : memref<1x8x4x32xf32, #tpu.memory_space<vmem>>, vector<1x1x4x32xf32>
      %54 = vector.shape_cast %53 : vector<1x1x4x32xf32> to vector<4x32xf32>
      %55 = vector.shape_cast %51 : vector<4x32xf32> to vector<1x1x4x32xf32>
      tpu.vector_store %arg4[%c0_14, %52, %c0_15, %c0_16], %55 {strides = array<i32>} : memref<1x8x4x32xf32, #tpu.memory_space<vmem>>, vector<1x1x4x32xf32>,
      scf.yield %47, %44 : vector<4x32xf32>, vector<4x32xf32>
    }
    %c8_i32_4 = arith.constant 8 : i32
    return
  }
  func.func @transform_0(%arg0: i32) -> (i32, i32, i32, i32) {
    %c0_i32 = arith.constant 0 : i32
    %c0_i32_0 = arith.constant 0 : i32
    %c0_i32_1 = arith.constant 0 : i32
    %c0_i32_2 = arith.constant 0 : i32
    return %arg0, %c0_i32, %c0_i32_0, %c0_i32_1 : i32, i32, i32, i32
  }
  func.func @transform_1(%arg0: i32) -> (i32, i32) {
    %c0_i32 = arith.constant 0 : i32
    %c0_i32_0 = arith.constant 0 : i32
    %c0_i32_1 = arith.constant 0 : i32
    return %c0_i32, %c0_i32_0 : i32, i32
  }
  func.func @transform_2(%arg0: i32) -> (i32, i32, i32) {
    %c0_i32 = arith.constant 0 : i32
    %c0_i32_0 = arith.constant 0 : i32
    %c0_i32_1 = arith.constant 0 : i32
    return %arg0, %c0_i32, %c0_i32_0 : i32, i32, i32
  }
  func.func @transform_3(%arg0: i32) -> (i32, i32, i32, i32) {
    %c0_i32 = arith.constant 0 : i32
    %c0_i32_0 = arith.constant 0 : i32
    %c0_i32_1 = arith.constant 0 : i32
    %c0_i32_2 = arith.constant 0 : i32
    return %arg0, %c0_i32, %c0_i32_0, %c0_i32_1 : i32, i32, i32, i32
  }
}

module attributes {stable_mosaic.version = 11 : i64} {
  func.func @bilstm_kernel(%arg0: i32, %arg1: memref<1x4x4x128xf32, #tpu.memory_space<vmem>>, %arg2: memref<4x1xi32, #tpu.memory_space<vmem>>, %arg3: memref<1x32x128xbf16, #tpu.memory_space<vmem>>, %arg4: memref<1x4x4x32xf32, #tpu.memory_space<vmem>>) attributes {dimension_semantics = [#tpu.dimension_semantics<parallel>], iteration_bounds = array<i64: 2>, scalar_prefetch = 0 : i64, scratch_operands = 0 : i64, tpu.core_type = #tpu.core_type<tc>, window_params = [{transform_indices = @transform_0, window_bounds = array<i64: 1, 4, 4, 128>}, {pipeline_mode = #tpu.pipeline_mode<synchronous>, transform_indices = @transform_1, window_bounds = array<i64: 4, 1>}, {transform_indices = @transform_2, window_bounds = array<i64: 1, 32, 128>}, {transform_indices = @transform_3, window_bounds = array<i64: 1, 4, 4, 32>}]} {
    %c0 = arith.constant 0 : index
    %c0_0 = arith.constant 0 : index
    %c0_1 = arith.constant 0 : index
    %0 = vector.load %arg3[%c0, %c0_0, %c0_1] : memref<1x32x128xbf16, #tpu.memory_space<vmem>>, vector<1x32x128xbf16>
    %1 = vector.shape_cast %0 : vector<1x32x128xbf16> to vector<32x128xbf16>
    %c0_2 = arith.constant 0 : index
    %c0_3 = arith.constant 0 : index
    %2 = vector.load %arg2[%c0_2, %c0_3] : memref<4x1xi32, #tpu.memory_space<vmem>>, vector<4x1xi32>
    %cst = arith.constant 0.000000e+00 : f32
    %3 = vector.broadcast %cst : f32 to vector<4x32xf32>
    %c0_i32 = arith.constant 0 : i32
    %c4_i32 = arith.constant 4 : i32
    %4 = arith.addi %c0_i32, %c4_i32 : i32
    %c1_i32 = arith.constant 1 : i32
    %5:2 = scf.for %arg5 = %c0_i32 to %4 step %c1_i32 iter_args(%arg6 = %3, %arg7 = %3) -> (vector<4x32xf32>, vector<4x32xf32>)  : i32 {
      %c0_i32_5 = arith.constant 0 : i32
      %6 = arith.cmpi eq, %arg0, %c0_i32_5 : i32
      %c3_i32 = arith.constant 3 : i32
      %7 = arith.subi %c3_i32, %arg5 : i32
      %8 = arith.select %6, %arg5, %7 : i32
      %c0_6 = arith.constant 0 : index
      %9 = arith.index_cast %8 : i32 to index
      %c0_7 = arith.constant 0 : index
      %c0_8 = arith.constant 0 : index
      %10 = vector.load %arg1[%c0_6, %9, %c0_7, %c0_8] : memref<1x4x4x128xf32, #tpu.memory_space<vmem>>, vector<1x1x4x128xf32>
      %11 = vector.shape_cast %10 : vector<1x1x4x128xf32> to vector<4x128xf32>
      %12 = arith.truncf %arg6 : vector<4x32xf32> to vector<4x32xbf16>
      %cst_9 = arith.constant dense<0.000000e+00> : vector<4x128xf32>
      %13 = tpu.matmul %12, %1, %cst_9 {dimension_numbers = #tpu.dot_dimension_numbers<[1], [0], [0], [1], [0, 0, 1, 1], [], []>} : vector<4x32xbf16>, vector<32x128xbf16>, vector<4x128xf32> -> vector<4x128xf32>
      %14 = arith.addf %11, %13 : vector<4x128xf32>
      %15 = vector.extract_strided_slice %14 {offsets = [0, 0], sizes = [4, 32], strides = [1, 1]} : vector<4x128xf32> to vector<4x32xf32>
      %16 = arith.negf %15 : vector<4x32xf32>
      %17 = math.exp %16 : vector<4x32xf32>
      %cst_10 = arith.constant 1.000000e+00 : f32
      %18 = vector.broadcast %cst_10 : f32 to vector<4x32xf32>
      %19 = arith.addf %18, %17 : vector<4x32xf32>
      %20 = arith.divf %18, %19 : vector<4x32xf32>
      %21 = vector.extract_strided_slice %14 {offsets = [0, 32], sizes = [4, 32], strides = [1, 1]} : vector<4x128xf32> to vector<4x32xf32>
      %22 = arith.negf %21 : vector<4x32xf32>
      %23 = math.exp %22 : vector<4x32xf32>
      %cst_11 = arith.constant 1.000000e+00 : f32
      %24 = vector.broadcast %cst_11 : f32 to vector<4x32xf32>
      %25 = arith.addf %24, %23 : vector<4x32xf32>
      %26 = arith.divf %24, %25 : vector<4x32xf32>
      %27 = vector.extract_strided_slice %14 {offsets = [0, 64], sizes = [4, 32], strides = [1, 1]} : vector<4x128xf32> to vector<4x32xf32>
      %28 = math.tanh %27 : vector<4x32xf32>
      %29 = vector.extract_strided_slice %14 {offsets = [0, 96], sizes = [4, 32], strides = [1, 1]} : vector<4x128xf32> to vector<4x32xf32>
      %30 = arith.negf %29 : vector<4x32xf32>
      %31 = math.exp %30 : vector<4x32xf32>
      %cst_12 = arith.constant 1.000000e+00 : f32
      %32 = vector.broadcast %cst_12 : f32 to vector<4x32xf32>
      %33 = arith.addf %32, %31 : vector<4x32xf32>
      %34 = arith.divf %32, %33 : vector<4x32xf32>
      %35 = arith.mulf %26, %arg7 : vector<4x32xf32>
      %36 = arith.mulf %20, %28 : vector<4x32xf32>
      %37 = arith.addf %35, %36 : vector<4x32xf32>
      %38 = math.tanh %37 : vector<4x32xf32>
      %39 = arith.mulf %34, %38 : vector<4x32xf32>
      %40 = vector.broadcast %8 : i32 to vector<4x1xi32>
      %41 = arith.cmpi slt, %40, %2 : vector<4x1xi32>
      %42 = vector.shape_cast %41 : vector<4x1xi1> to vector<4x1xi1>
      %43 = vector.broadcast %42 : vector<4x1xi1> to vector<4x32xi1>
      %44 = arith.select %43, %37, %arg7 : vector<4x32xi1>, vector<4x32xf32>
      %45 = vector.shape_cast %41 : vector<4x1xi1> to vector<4x1xi1>
      %46 = vector.broadcast %45 : vector<4x1xi1> to vector<4x32xi1>
      %47 = arith.select %46, %39, %arg6 : vector<4x32xi1>, vector<4x32xf32>
      %cst_13 = arith.constant 0.000000e+00 : f32
      %48 = vector.shape_cast %41 : vector<4x1xi1> to vector<4x1xi1>
      %49 = vector.broadcast %48 : vector<4x1xi1> to vector<4x32xi1>
      %50 = vector.broadcast %cst_13 : f32 to vector<4x32xf32>
      %51 = arith.select %49, %39, %50 : vector<4x32xi1>, vector<4x32xf32>
      %c0_14 = arith.constant 0 : index
      %52 = arith.index_cast %8 : i32 to index
      %c0_15 = arith.constant 0 : index
      %c0_16 = arith.constant 0 : index
      %53 = vector.load %arg4[%c0_14, %52, %c0_15, %c0_16] : memref<1x4x4x32xf32, #tpu.memory_space<vmem>>, vector<1x1x4x32xf32>
      %54 = vector.shape_cast %53 : vector<1x1x4x32xf32> to vector<4x32xf32>
      %55 = vector.shape_cast %51 : vector<4x32xf32> to vector<1x1x4x32xf32>
      tpu.vector_store %arg4[%c0_14, %52, %c0_15, %c0_16], %55 {strides = array<i32>} : memref<1x4x4x32xf32, #tpu.memory_space<vmem>>, vector<1x1x4x32xf32>,
      scf.yield %47, %44 : vector<4x32xf32>, vector<4x32xf32>
    }
    %c4_i32_4 = arith.constant 4 : i32
    return
  }
  func.func @transform_0(%arg0: i32) -> (i32, i32, i32, i32) {
    %c0_i32 = arith.constant 0 : i32
    %c0_i32_0 = arith.constant 0 : i32
    %c0_i32_1 = arith.constant 0 : i32
    %c0_i32_2 = arith.constant 0 : i32
    return %arg0, %c0_i32, %c0_i32_0, %c0_i32_1 : i32, i32, i32, i32
  }
  func.func @transform_1(%arg0: i32) -> (i32, i32) {
    %c0_i32 = arith.constant 0 : i32
    %c0_i32_0 = arith.constant 0 : i32
    %c0_i32_1 = arith.constant 0 : i32
    return %c0_i32, %c0_i32_0 : i32, i32
  }
  func.func @transform_2(%arg0: i32) -> (i32, i32, i32) {
    %c0_i32 = arith.constant 0 : i32
    %c0_i32_0 = arith.constant 0 : i32
    %c0_i32_1 = arith.constant 0 : i32
    return %arg0, %c0_i32, %c0_i32_0 : i32, i32, i32
  }
  func.func @transform_3(%arg0: i32) -> (i32, i32, i32, i32) {
    %c0_i32 = arith.constant 0 : i32
    %c0_i32_0 = arith.constant 0 : i32
    %c0_i32_1 = arith.constant 0 : i32
    %c0_i32_2 = arith.constant 0 : i32
    return %arg0, %c0_i32, %c0_i32_0, %c0_i32_1 : i32, i32, i32, i32
  }
}

module attributes {stable_mosaic.version = 11 : i64} {
  func.func @gates_kernel(%arg0: i32, %arg1: memref<8x128xf32, #tpu.memory_space<vmem>>, %arg2: memref<1x128x128xbf16, #tpu.memory_space<vmem>>, %arg3: memref<1x1x128xf32, #tpu.memory_space<vmem>>, %arg4: memref<1x8x128xf32, #tpu.memory_space<vmem>>) attributes {dimension_semantics = [#tpu.dimension_semantics<parallel>], iteration_bounds = array<i64: 2>, scalar_prefetch = 0 : i64, scratch_operands = 0 : i64, tpu.core_type = #tpu.core_type<tc>, window_params = [{pipeline_mode = #tpu.pipeline_mode<synchronous>, transform_indices = @transform_0, window_bounds = array<i64: 8, 128>}, {transform_indices = @transform_1, window_bounds = array<i64: 1, 128, 128>}, {transform_indices = @transform_2, window_bounds = array<i64: 1, 1, 128>}, {transform_indices = @transform_3, window_bounds = array<i64: 1, 8, 128>}]} {
    %c0 = arith.constant 0 : index
    %c0_0 = arith.constant 0 : index
    %0 = vector.load %arg1[%c0, %c0_0] : memref<8x128xf32, #tpu.memory_space<vmem>>, vector<8x128xf32>
    %1 = arith.truncf %0 : vector<8x128xf32> to vector<8x128xbf16>
    %c0_1 = arith.constant 0 : index
    %c0_2 = arith.constant 0 : index
    %c0_3 = arith.constant 0 : index
    %2 = vector.load %arg2[%c0_1, %c0_2, %c0_3] : memref<1x128x128xbf16, #tpu.memory_space<vmem>>, vector<1x128x128xbf16>
    %3 = vector.shape_cast %2 : vector<1x128x128xbf16> to vector<128x128xbf16>
    %cst = arith.constant dense<0.000000e+00> : vector<8x128xf32>
    %4 = tpu.matmul %1, %3, %cst {dimension_numbers = #tpu.dot_dimension_numbers<[1], [0], [0], [1], [0, 0, 1, 1], [], []>} : vector<8x128xbf16>, vector<128x128xbf16>, vector<8x128xf32> -> vector<8x128xf32>
    %c0_4 = arith.constant 0 : index
    %c0_5 = arith.constant 0 : index
    %c0_6 = arith.constant 0 : index
    %5 = vector.load %arg3[%c0_4, %c0_5, %c0_6] : memref<1x1x128xf32, #tpu.memory_space<vmem>>, vector<1x1x128xf32>
    %6 = vector.shape_cast %5 : vector<1x1x128xf32> to vector<1x128xf32>
    %7 = vector.broadcast %6 : vector<1x128xf32> to vector<8x128xf32>
    %8 = arith.addf %4, %7 : vector<8x128xf32>
    %c0_7 = arith.constant 0 : index
    %c0_8 = arith.constant 0 : index
    %c0_9 = arith.constant 0 : index
    %9 = vector.load %arg4[%c0_7, %c0_8, %c0_9] : memref<1x8x128xf32, #tpu.memory_space<vmem>>, vector<1x8x128xf32>
    %10 = vector.shape_cast %9 : vector<1x8x128xf32> to vector<8x128xf32>
    %11 = vector.shape_cast %8 : vector<8x128xf32> to vector<1x8x128xf32>
    tpu.vector_store %arg4[%c0_7, %c0_8, %c0_9], %11 {strides = array<i32>} : memref<1x8x128xf32, #tpu.memory_space<vmem>>, vector<1x8x128xf32>,
    return
  }
  func.func @transform_0(%arg0: i32) -> (i32, i32) {
    %c0_i32 = arith.constant 0 : i32
    %c0_i32_0 = arith.constant 0 : i32
    %c0_i32_1 = arith.constant 0 : i32
    return %c0_i32, %c0_i32_0 : i32, i32
  }
  func.func @transform_1(%arg0: i32) -> (i32, i32, i32) {
    %c0_i32 = arith.constant 0 : i32
    %c0_i32_0 = arith.constant 0 : i32
    %c0_i32_1 = arith.constant 0 : i32
    return %arg0, %c0_i32, %c0_i32_0 : i32, i32, i32
  }
  func.func @transform_2(%arg0: i32) -> (i32, i32, i32) {
    %c0_i32 = arith.constant 0 : i32
    %c0_i32_0 = arith.constant 0 : i32
    %c0_i32_1 = arith.constant 0 : i32
    return %arg0, %c0_i32, %c0_i32_0 : i32, i32, i32
  }
  func.func @transform_3(%arg0: i32) -> (i32, i32, i32) {
    %c0_i32 = arith.constant 0 : i32
    %c0_i32_0 = arith.constant 0 : i32
    %c0_i32_1 = arith.constant 0 : i32
    return %arg0, %c0_i32, %c0_i32_0 : i32, i32, i32
  }
}

module attributes {stable_mosaic.version = 11 : i64} {
  func.func @bilstm_kernel(%arg0: i32, %arg1: memref<1x2x4x128xf32, #tpu.memory_space<vmem>>, %arg2: memref<4x1xi32, #tpu.memory_space<vmem>>, %arg3: memref<1x32x128xbf16, #tpu.memory_space<vmem>>, %arg4: memref<1x2x4x32xf32, #tpu.memory_space<vmem>>) attributes {dimension_semantics = [#tpu.dimension_semantics<parallel>], iteration_bounds = array<i64: 2>, scalar_prefetch = 0 : i64, scratch_operands = 0 : i64, tpu.core_type = #tpu.core_type<tc>, window_params = [{transform_indices = @transform_0, window_bounds = array<i64: 1, 2, 4, 128>}, {pipeline_mode = #tpu.pipeline_mode<synchronous>, transform_indices = @transform_1, window_bounds = array<i64: 4, 1>}, {transform_indices = @transform_2, window_bounds = array<i64: 1, 32, 128>}, {transform_indices = @transform_3, window_bounds = array<i64: 1, 2, 4, 32>}]} {
    %c0 = arith.constant 0 : index
    %c0_0 = arith.constant 0 : index
    %c0_1 = arith.constant 0 : index
    %0 = vector.load %arg3[%c0, %c0_0, %c0_1] : memref<1x32x128xbf16, #tpu.memory_space<vmem>>, vector<1x32x128xbf16>
    %1 = vector.shape_cast %0 : vector<1x32x128xbf16> to vector<32x128xbf16>
    %c0_2 = arith.constant 0 : index
    %c0_3 = arith.constant 0 : index
    %2 = vector.load %arg2[%c0_2, %c0_3] : memref<4x1xi32, #tpu.memory_space<vmem>>, vector<4x1xi32>
    %cst = arith.constant 0.000000e+00 : f32
    %3 = vector.broadcast %cst : f32 to vector<4x32xf32>
    %c0_i32 = arith.constant 0 : i32
    %c2_i32 = arith.constant 2 : i32
    %4 = arith.addi %c0_i32, %c2_i32 : i32
    %c1_i32 = arith.constant 1 : i32
    %5:2 = scf.for %arg5 = %c0_i32 to %4 step %c1_i32 iter_args(%arg6 = %3, %arg7 = %3) -> (vector<4x32xf32>, vector<4x32xf32>)  : i32 {
      %c0_i32_5 = arith.constant 0 : i32
      %6 = arith.cmpi eq, %arg0, %c0_i32_5 : i32
      %c1_i32_6 = arith.constant 1 : i32
      %7 = arith.subi %c1_i32_6, %arg5 : i32
      %8 = arith.select %6, %arg5, %7 : i32
      %c0_7 = arith.constant 0 : index
      %9 = arith.index_cast %8 : i32 to index
      %c0_8 = arith.constant 0 : index
      %c0_9 = arith.constant 0 : index
      %10 = vector.load %arg1[%c0_7, %9, %c0_8, %c0_9] : memref<1x2x4x128xf32, #tpu.memory_space<vmem>>, vector<1x1x4x128xf32>
      %11 = vector.shape_cast %10 : vector<1x1x4x128xf32> to vector<4x128xf32>
      %12 = arith.truncf %arg6 : vector<4x32xf32> to vector<4x32xbf16>
      %cst_10 = arith.constant dense<0.000000e+00> : vector<4x128xf32>
      %13 = tpu.matmul %12, %1, %cst_10 {dimension_numbers = #tpu.dot_dimension_numbers<[1], [0], [0], [1], [0, 0, 1, 1], [], []>} : vector<4x32xbf16>, vector<32x128xbf16>, vector<4x128xf32> -> vector<4x128xf32>
      %14 = arith.addf %11, %13 : vector<4x128xf32>
      %15 = vector.extract_strided_slice %14 {offsets = [0, 0], sizes = [4, 32], strides = [1, 1]} : vector<4x128xf32> to vector<4x32xf32>
      %16 = arith.negf %15 : vector<4x32xf32>
      %17 = math.exp %16 : vector<4x32xf32>
      %cst_11 = arith.constant 1.000000e+00 : f32
      %18 = vector.broadcast %cst_11 : f32 to vector<4x32xf32>
      %19 = arith.addf %18, %17 : vector<4x32xf32>
      %20 = arith.divf %18, %19 : vector<4x32xf32>
      %21 = vector.extract_strided_slice %14 {offsets = [0, 32], sizes = [4, 32], strides = [1, 1]} : vector<4x128xf32> to vector<4x32xf32>
      %22 = arith.negf %21 : vector<4x32xf32>
      %23 = math.exp %22 : vector<4x32xf32>
      %cst_12 = arith.constant 1.000000e+00 : f32
      %24 = vector.broadcast %cst_12 : f32 to vector<4x32xf32>
      %25 = arith.addf %24, %23 : vector<4x32xf32>
      %26 = arith.divf %24, %25 : vector<4x32xf32>
      %27 = vector.extract_strided_slice %14 {offsets = [0, 64], sizes = [4, 32], strides = [1, 1]} : vector<4x128xf32> to vector<4x32xf32>
      %28 = math.tanh %27 : vector<4x32xf32>
      %29 = vector.extract_strided_slice %14 {offsets = [0, 96], sizes = [4, 32], strides = [1, 1]} : vector<4x128xf32> to vector<4x32xf32>
      %30 = arith.negf %29 : vector<4x32xf32>
      %31 = math.exp %30 : vector<4x32xf32>
      %cst_13 = arith.constant 1.000000e+00 : f32
      %32 = vector.broadcast %cst_13 : f32 to vector<4x32xf32>
      %33 = arith.addf %32, %31 : vector<4x32xf32>
      %34 = arith.divf %32, %33 : vector<4x32xf32>
      %35 = arith.mulf %26, %arg7 : vector<4x32xf32>
      %36 = arith.mulf %20, %28 : vector<4x32xf32>
      %37 = arith.addf %35, %36 : vector<4x32xf32>
      %38 = math.tanh %37 : vector<4x32xf32>
      %39 = arith.mulf %34, %38 : vector<4x32xf32>
      %40 = vector.broadcast %8 : i32 to vector<4x1xi32>
      %41 = arith.cmpi slt, %40, %2 : vector<4x1xi32>
      %42 = vector.shape_cast %41 : vector<4x1xi1> to vector<4x1xi1>
      %43 = vector.broadcast %42 : vector<4x1xi1> to vector<4x32xi1>
      %44 = arith.select %43, %37, %arg7 : vector<4x32xi1>, vector<4x32xf32>
      %45 = vector.shape_cast %41 : vector<4x1xi1> to vector<4x1xi1>
      %46 = vector.broadcast %45 : vector<4x1xi1> to vector<4x32xi1>
      %47 = arith.select %46, %39, %arg6 : vector<4x32xi1>, vector<4x32xf32>
      %cst_14 = arith.constant 0.000000e+00 : f32
      %48 = vector.shape_cast %41 : vector<4x1xi1> to vector<4x1xi1>
      %49 = vector.broadcast %48 : vector<4x1xi1> to vector<4x32xi1>
      %50 = vector.broadcast %cst_14 : f32 to vector<4x32xf32>
      %51 = arith.select %49, %39, %50 : vector<4x32xi1>, vector<4x32xf32>
      %c0_15 = arith.constant 0 : index
      %52 = arith.index_cast %8 : i32 to index
      %c0_16 = arith.constant 0 : index
      %c0_17 = arith.constant 0 : index
      %53 = vector.load %arg4[%c0_15, %52, %c0_16, %c0_17] : memref<1x2x4x32xf32, #tpu.memory_space<vmem>>, vector<1x1x4x32xf32>
      %54 = vector.shape_cast %53 : vector<1x1x4x32xf32> to vector<4x32xf32>
      %55 = vector.shape_cast %51 : vector<4x32xf32> to vector<1x1x4x32xf32>
      tpu.vector_store %arg4[%c0_15, %52, %c0_16, %c0_17], %55 {strides = array<i32>} : memref<1x2x4x32xf32, #tpu.memory_space<vmem>>, vector<1x1x4x32xf32>,
      scf.yield %47, %44 : vector<4x32xf32>, vector<4x32xf32>
    }
    %c2_i32_4 = arith.constant 2 : i32
    return
  }
  func.func @transform_0(%arg0: i32) -> (i32, i32, i32, i32) {
    %c0_i32 = arith.constant 0 : i32
    %c0_i32_0 = arith.constant 0 : i32
    %c0_i32_1 = arith.constant 0 : i32
    %c0_i32_2 = arith.constant 0 : i32
    return %arg0, %c0_i32, %c0_i32_0, %c0_i32_1 : i32, i32, i32, i32
  }
  func.func @transform_1(%arg0: i32) -> (i32, i32) {
    %c0_i32 = arith.constant 0 : i32
    %c0_i32_0 = arith.constant 0 : i32
    %c0_i32_1 = arith.constant 0 : i32
    return %c0_i32, %c0_i32_0 : i32, i32
  }
  func.func @transform_2(%arg0: i32) -> (i32, i32, i32) {
    %c0_i32 = arith.constant 0 : i32
    %c0_i32_0 = arith.constant 0 : i32
    %c0_i32_1 = arith.constant 0 : i32
    return %arg0, %c0_i32, %c0_i32_0 : i32, i32, i32
  }
  func.func @transform_3(%arg0: i32) -> (i32, i32, i32, i32) {
    %c0_i32 = arith.constant 0 : i32
    %c0_i32_0 = arith.constant 0 : i32
    %c0_i32_1 = arith.constant 0 : i32
    %c0_i32_2 = arith.constant 0 : i32
    return %arg0, %c0_i32, %c0_i32_0, %c0_i32_1 : i32, i32, i32, i32
  }
}

module attributes {stable_mosaic.version = 11 : i64} {
  func.func @gates_kernel(%arg0: i32, %arg1: memref<16x128xf32, #tpu.memory_space<vmem>>, %arg2: memref<1x128x128xbf16, #tpu.memory_space<vmem>>, %arg3: memref<1x1x128xf32, #tpu.memory_space<vmem>>, %arg4: memref<1x16x128xf32, #tpu.memory_space<vmem>>) attributes {dimension_semantics = [#tpu.dimension_semantics<parallel>], iteration_bounds = array<i64: 2>, scalar_prefetch = 0 : i64, scratch_operands = 0 : i64, tpu.core_type = #tpu.core_type<tc>, window_params = [{pipeline_mode = #tpu.pipeline_mode<synchronous>, transform_indices = @transform_0, window_bounds = array<i64: 16, 128>}, {transform_indices = @transform_1, window_bounds = array<i64: 1, 128, 128>}, {transform_indices = @transform_2, window_bounds = array<i64: 1, 1, 128>}, {transform_indices = @transform_3, window_bounds = array<i64: 1, 16, 128>}]} {
    %c0 = arith.constant 0 : index
    %c0_0 = arith.constant 0 : index
    %0 = vector.load %arg1[%c0, %c0_0] : memref<16x128xf32, #tpu.memory_space<vmem>>, vector<16x128xf32>
    %1 = arith.truncf %0 : vector<16x128xf32> to vector<16x128xbf16>
    %c0_1 = arith.constant 0 : index
    %c0_2 = arith.constant 0 : index
    %c0_3 = arith.constant 0 : index
    %2 = vector.load %arg2[%c0_1, %c0_2, %c0_3] : memref<1x128x128xbf16, #tpu.memory_space<vmem>>, vector<1x128x128xbf16>
    %3 = vector.shape_cast %2 : vector<1x128x128xbf16> to vector<128x128xbf16>
    %cst = arith.constant dense<0.000000e+00> : vector<16x128xf32>
    %4 = tpu.matmul %1, %3, %cst {dimension_numbers = #tpu.dot_dimension_numbers<[1], [0], [0], [1], [0, 0, 1, 1], [], []>} : vector<16x128xbf16>, vector<128x128xbf16>, vector<16x128xf32> -> vector<16x128xf32>
    %c0_4 = arith.constant 0 : index
    %c0_5 = arith.constant 0 : index
    %c0_6 = arith.constant 0 : index
    %5 = vector.load %arg3[%c0_4, %c0_5, %c0_6] : memref<1x1x128xf32, #tpu.memory_space<vmem>>, vector<1x1x128xf32>
    %6 = vector.shape_cast %5 : vector<1x1x128xf32> to vector<1x128xf32>
    %7 = vector.broadcast %6 : vector<1x128xf32> to vector<16x128xf32>
    %8 = arith.addf %4, %7 : vector<16x128xf32>
    %c0_7 = arith.constant 0 : index
    %c0_8 = arith.constant 0 : index
    %c0_9 = arith.constant 0 : index
    %9 = vector.load %arg4[%c0_7, %c0_8, %c0_9] : memref<1x16x128xf32, #tpu.memory_space<vmem>>, vector<1x16x128xf32>
    %10 = vector.shape_cast %9 : vector<1x16x128xf32> to vector<16x128xf32>
    %11 = vector.shape_cast %8 : vector<16x128xf32> to vector<1x16x128xf32>
    tpu.vector_store %arg4[%c0_7, %c0_8, %c0_9], %11 {strides = array<i32>} : memref<1x16x128xf32, #tpu.memory_space<vmem>>, vector<1x16x128xf32>,
    return
  }
  func.func @transform_0(%arg0: i32) -> (i32, i32) {
    %c0_i32 = arith.constant 0 : i32
    %c0_i32_0 = arith.constant 0 : i32
    %c0_i32_1 = arith.constant 0 : i32
    return %c0_i32, %c0_i32_0 : i32, i32
  }
  func.func @transform_1(%arg0: i32) -> (i32, i32, i32) {
    %c0_i32 = arith.constant 0 : i32
    %c0_i32_0 = arith.constant 0 : i32
    %c0_i32_1 = arith.constant 0 : i32
    return %arg0, %c0_i32, %c0_i32_0 : i32, i32, i32
  }
  func.func @transform_2(%arg0: i32) -> (i32, i32, i32) {
    %c0_i32 = arith.constant 0 : i32
    %c0_i32_0 = arith.constant 0 : i32
    %c0_i32_1 = arith.constant 0 : i32
    return %arg0, %c0_i32, %c0_i32_0 : i32, i32, i32
  }
  func.func @transform_3(%arg0: i32) -> (i32, i32, i32) {
    %c0_i32 = arith.constant 0 : i32
    %c0_i32_0 = arith.constant 0 : i32
    %c0_i32_1 = arith.constant 0 : i32
    return %arg0, %c0_i32, %c0_i32_0 : i32, i32, i32
  }
}

module attributes {stable_mosaic.version = 11 : i64} {
  func.func @proj_kernel(%arg0: i32, %arg1: memref<256x64xf32, #tpu.memory_space<vmem>>, %arg2: memref<64x128xbf16, #tpu.memory_space<vmem>>, %arg3: memref<1x128xf32, #tpu.memory_space<vmem>>, %arg4: memref<256x128xf32, #tpu.memory_space<vmem>>) attributes {dimension_semantics = [#tpu.dimension_semantics<parallel>], iteration_bounds = array<i64: 1>, scalar_prefetch = 0 : i64, scratch_operands = 0 : i64, tpu.core_type = #tpu.core_type<tc>, window_params = [{transform_indices = @transform_0, window_bounds = array<i64: 256, 64>}, {pipeline_mode = #tpu.pipeline_mode<synchronous>, transform_indices = @transform_1, window_bounds = array<i64: 64, 128>}, {pipeline_mode = #tpu.pipeline_mode<synchronous>, transform_indices = @transform_2, window_bounds = array<i64: 1, 128>}, {transform_indices = @transform_3, window_bounds = array<i64: 256, 128>}]} {
    %c0 = arith.constant 0 : index
    %c0_0 = arith.constant 0 : index
    %0 = vector.load %arg1[%c0, %c0_0] : memref<256x64xf32, #tpu.memory_space<vmem>>, vector<256x64xf32>
    %1 = arith.truncf %0 : vector<256x64xf32> to vector<256x64xbf16>
    %c0_1 = arith.constant 0 : index
    %c0_2 = arith.constant 0 : index
    %2 = vector.load %arg2[%c0_1, %c0_2] : memref<64x128xbf16, #tpu.memory_space<vmem>>, vector<64x128xbf16>
    %cst = arith.constant dense<0.000000e+00> : vector<256x128xf32>
    %3 = tpu.matmul %1, %2, %cst {dimension_numbers = #tpu.dot_dimension_numbers<[1], [0], [0], [1], [0, 0, 1, 1], [], []>} : vector<256x64xbf16>, vector<64x128xbf16>, vector<256x128xf32> -> vector<256x128xf32>
    %c0_3 = arith.constant 0 : index
    %c0_4 = arith.constant 0 : index
    %4 = vector.load %arg3[%c0_3, %c0_4] : memref<1x128xf32, #tpu.memory_space<vmem>>, vector<1x128xf32>
    %5 = vector.broadcast %4 : vector<1x128xf32> to vector<256x128xf32>
    %6 = arith.addf %3, %5 : vector<256x128xf32>
    %c0_5 = arith.constant 0 : index
    %c0_6 = arith.constant 0 : index
    %7 = vector.load %arg4[%c0_5, %c0_6] : memref<256x128xf32, #tpu.memory_space<vmem>>, vector<256x128xf32>
    tpu.vector_store %arg4[%c0_5, %c0_6], %6 {strides = array<i32>} : memref<256x128xf32, #tpu.memory_space<vmem>>, vector<256x128xf32>,
    return
  }
  func.func @transform_0(%arg0: i32) -> (i32, i32) {
    %c0_i32 = arith.constant 0 : i32
    %c0_i32_0 = arith.constant 0 : i32
    return %arg0, %c0_i32 : i32, i32
  }
  func.func @transform_1(%arg0: i32) -> (i32, i32) {
    %c0_i32 = arith.constant 0 : i32
    %c0_i32_0 = arith.constant 0 : i32
    %c0_i32_1 = arith.constant 0 : i32
    return %c0_i32, %c0_i32_0 : i32, i32
  }
  func.func @transform_2(%arg0: i32) -> (i32, i32) {
    %c0_i32 = arith.constant 0 : i32
    %c0_i32_0 = arith.constant 0 : i32
    %c0_i32_1 = arith.constant 0 : i32
    return %c0_i32, %c0_i32_0 : i32, i32
  }
  func.func @transform_3(%arg0: i32) -> (i32, i32) {
    %c0_i32 = arith.constant 0 : i32
    %c0_i32_0 = arith.constant 0 : i32
    return %arg0, %c0_i32 : i32, i32
  }
}

</mosaic_0001>

<llo_original>
// kernel: encoder_forward.9
$region0: #{encoder_forward.9}
  #allocation0 [shape = 'u32[]', space=smem, size = 0x4, offset = 0x4, fixed_abs, tag = 'smem constant byte address 0x4 - core index']
  #allocation1 [shape = 'u32[72,128]{1,0:T(1,128)}', space=vmem, size = 0x9000, scoped, tag = 'internal scratch']
  %s0 = inlined_call_operand.vmem [shape: f32[64,39], index: 0, kind: input, shape index: {}]
  %s1 = inlined_call_operand.vmem [shape: bf16[2,39,128], index: 1, kind: input, shape index: {}]
  %s2 = inlined_call_operand.vmem [shape: f32[2,1,128], index: 2, kind: input, shape index: {}]
  %s3 = inlined_call_operand.vmem [shape: f32[2,64,128], index: 3, kind: output, shape index: {}]
  %s4 = sld [smem:[#allocation0]]
  $region45: #{encoder_forward.9} parent=0
    _
  %s6 = ssub.s32 1, %s4
  %s7 = scalar_select 0, %s6, %s4
  loop: start=0, step=1, limit=4
  $region2: #{encoder_forward.9} parent=0 // loop_pre_header
    _
  $region3: #{encoder_forward.9} parent=0 // loop_header
    %s9 = sphi 0, %s13
    %p10 = scmp.ge.s32.totalorder %s9, 4
    %s17 = sphi 0, %s17
    %s19 = sphi 0, %s17
    %s20 = sphi 0, %s19
    %s34 = sphi 0, %s20
    %s40 = sphi 0, %s42
    %s43 = sphi 0, %s40
    %s44 = sphi 0, %s43
    %s60 = sphi 0, %s44
    %s66 = sphi 0, %s68
    %s69 = sphi 0, %s66
    %s70 = sphi 0, %s69
    %s86 = sphi 0, %s70
    %s92 = sphi 0, %s94
    %s95 = sphi 0, %s92
    %s96 = sphi 0, %s95
    %s112 = sphi 0, %s96
  $region4: #{encoder_forward.9} parent=0 // loop_header_branch
    %12 = sbr.rel (%p10) target = $region8
  $region5: #{encoder_forward.9} parent=0 // loop_body
    %s14 = ssub.s32 %s9, 1
    %s15 = ssub.s32 %s9, 2
    %s16 = sadd.s32 %s9, 1
    %s18 = sadd.s32 %s17, 1
    %p21 = scmp.eq.s32.totalorder %s9, 1
    %p22 = scmp.ne.s32.totalorder %s17, %s19
    %p23 = scmp.eq.s32.totalorder %s9, 0
    %p24 = por %p22, %p23
    %p25 = scmp.ne.s32.totalorder %s17, %s19
    %p26 = scmp.eq.s32.totalorder %s14, 1
    %p27 = por %p25, %p26
    %p28 = scmp.ne.s32.totalorder %s19, %s20
    %p29 = scmp.eq.s32.totalorder %s14, 0
    %p30 = por %p28, %p29
    %p31 = scmp.ne.s32.totalorder %s19, %s20
    %p32 = scmp.eq.s32.totalorder %s15, 1
    %p33 = por %p31, %p32
    %p35 = scmp.ne.s32.totalorder %s20, %s34
    %p36 = scmp.eq.s32.totalorder %s15, 0
    %p37 = por %p35, %p36
    %s38 = ssub.s32 %s9, %s16
    %p39 = scmp.eq.s32.totalorder %s38, 0
    %s41 = sadd.s32 %s40, 1
    %s42 = scalar_select %p39, %s40, %s41
    %p45 = pneg %p39
    %p46 = scmp.eq.s32.totalorder %s9, 1
    %p47 = por %p45, %p46
    %p48 = scmp.ne.s32.totalorder %s40, %s43
    %p49 = scmp.eq.s32.totalorder %s9, 0
    %p50 = por %p48, %p49
    %p51 = scmp.ne.s32.totalorder %s40, %s43
    %p52 = scmp.eq.s32.totalorder %s14, 1
    %p53 = por %p51, %p52
    %p54 = scmp.ne.s32.totalorder %s43, %s44
    %p55 = scmp.eq.s32.totalorder %s14, 0
    %p56 = por %p54, %p55
    %p57 = scmp.ne.s32.totalorder %s43, %s44
    %p58 = scmp.eq.s32.totalorder %s15, 1
    %p59 = por %p57, %p58
    %p61 = scmp.ne.s32.totalorder %s44, %s60
    %p62 = scmp.eq.s32.totalorder %s15, 0
    %p63 = por %p61, %p62
    %s64 = ssub.s32 %s9, %s16
    %p65 = scmp.eq.s32.totalorder %s64, 0
    %s67 = sadd.s32 %s66, 1
    %s68 = scalar_select %p65, %s66, %s67
    %p71 = pneg %p65
    %p72 = scmp.eq.s32.totalorder %s9, 1
    %p73 = por %p71, %p72
    %p74 = scmp.ne.s32.totalorder %s66, %s69
    %p75 = scmp.eq.s32.totalorder %s9, 0
    %p76 = por %p74, %p75
    %p77 = scmp.ne.s32.totalorder %s66, %s69
    %p78 = scmp.eq.s32.totalorder %s14, 1
    %p79 = por %p77, %p78
    %p80 = scmp.ne.s32.totalorder %s69, %s70
    %p81 = scmp.eq.s32.totalorder %s14, 0
    %p82 = por %p80, %p81
    %p83 = scmp.ne.s32.totalorder %s69, %s70
    %p84 = scmp.eq.s32.totalorder %s15, 1
    %p85 = por %p83, %p84
    %p87 = scmp.ne.s32.totalorder %s70, %s86
    %p88 = scmp.eq.s32.totalorder %s15, 0
    %p89 = por %p87, %p88
    %s90 = ssub.s32 %s9, %s16
    %p91 = scmp.eq.s32.totalorder %s90, 0
    %s93 = sadd.s32 %s92, 1
    %s94 = scalar_select %p91, %s92, %s93
    %p97 = pneg %p91
    %p98 = scmp.eq.s32.totalorder %s9, 1
    %p99 = por %p97, %p98
    %p100 = scmp.ne.s32.totalorder %s92, %s95
    %p101 = scmp.eq.s32.totalorder %s9, 0
    %p102 = por %p100, %p101
    %p103 = scmp.ne.s32.totalorder %s92, %s95
    %p104 = scmp.eq.s32.totalorder %s14, 1
    %p105 = por %p103, %p104
    %p106 = scmp.ne.s32.totalorder %s95, %s96
    %p107 = scmp.eq.s32.totalorder %s14, 0
    %p108 = por %p106, %p107
    %p109 = scmp.ne.s32.totalorder %s95, %s96
    %p110 = scmp.eq.s32.totalorder %s15, 1
    %p111 = por %p109, %p110
    %p113 = scmp.ne.s32.totalorder %s96, %s112
    %p114 = scmp.eq.s32.totalorder %s15, 0
    %p115 = por %p113, %p114
    %p116 = scmp.le.s32.totalorder 1, %s9
    %p117 = scmp.lt.s32.totalorder %s9, 3
    %p118 = pnand %p116, %p117
    %p119 = pneg %p118
    // Predicated region
    $region9: #{encoder_forward.9} parent=5 // pred_check
      _
    $region10: #{encoder_forward.9} parent=5 // pred_check_branch
      %121 = sbr.rel (%p118) target = $region12
    $region11: #{encoder_forward.9} parent=5 // pred_region
      %s122 = ssub.s32 %s9, 1
      // Predicated region
      $region13: #{encoder_forward.9} parent=11 // pred_check
        %p123 = pneg %p30
      $region14: #{encoder_forward.9} parent=11 // pred_check_branch
        %125 = sbr.rel (%p123) target = $region16
      $region15: #{encoder_forward.9} parent=11 // pred_region
        _
      $region16: #{encoder_forward.9} parent=11 // pred_fallthru
        _
    $region12: #{encoder_forward.9} parent=5 // pred_fallthru
      _
    %p126 = scmp.lt.s32.totalorder %s9, 2
    // Predicated region
    $region17: #{encoder_forward.9} parent=5 // pred_check
      %p127 = pneg %p126
    $region18: #{encoder_forward.9} parent=5 // pred_check_branch
      %129 = sbr.rel (%p127) target = $region20
    $region19: #{encoder_forward.9} parent=5 // pred_region
      // Predicated region
      $region21: #{encoder_forward.9} parent=19 // pred_check
        %p130 = pneg %p50
      $region22: #{encoder_forward.9} parent=19 // pred_check_branch
        %132 = sbr.rel (%p130) target = $region24
      $region23: #{encoder_forward.9} parent=19 // pred_region
        %p133 = scmp.lt.s32.totalorder %s9, 1
        %s134 = scalar_select %p133, %s9, 1
        %s135 = smul.addr %s134, 5
        %s136 = smul.addr %s135, 4
        %s137 = scalar_lea.vmem %s1, %s136
      $region24: #{encoder_forward.9} parent=19 // pred_fallthru
        _
      // Predicated region
      $region25: #{encoder_forward.9} parent=19 // pred_check
        %p138 = pneg %p76
      $region26: #{encoder_forward.9} parent=19 // pred_check_branch
        %140 = sbr.rel (%p138) target = $region28
      $region27: #{encoder_forward.9} parent=19 // pred_region
        %p141 = scmp.lt.s32.totalorder %s9, 1
        %s142 = scalar_select %p141, %s9, 1
        %s143 = scalar_lea.vmem %s2, %s142
      $region28: #{encoder_forward.9} parent=19 // pred_fallthru
        _
    $region20: #{encoder_forward.9} parent=5 // pred_fallthru
      _
    %p144 = scmp.le.s32.totalorder 1, %s9
    %p145 = scmp.lt.s32.totalorder %s9, 3
    %p146 = pnand %p144, %p145
    %p147 = pneg %p146
    // Predicated region
    $region29: #{encoder_forward.9} parent=5 // pred_check
      _
    $region30: #{encoder_forward.9} parent=5 // pred_check_branch
      %149 = sbr.rel (%p146) target = $region32
    $region31: #{encoder_forward.9} parent=5 // pred_region
      %s150 = ssub.s32 %s9, 1
      %p151 = pneg %p30
      %p152 = pneg %p27
      %p153 = scmp.lt.s32.totalorder %s14, 1
      %s154 = scalar_select %p153, %s14, 1
      %s155 = smul.addr %s154, 5
      %s156 = smul.addr %s155, 4
      %s157 = scalar_lea.vmem %s1, %s156
      %p158 = pneg %p56
      %p159 = pneg %p53
      %p160 = scmp.lt.s32.totalorder %s14, 1
      %s161 = scalar_select %p160, %s14, 1
      %s162 = scalar_lea.vmem %s2, %s161
      %p163 = pneg %p82
      %p164 = pneg %p79
      %p165 = pneg %p108
      %p166 = pneg %p105
      %p167 = scmp.lt.s32.totalorder %s14, 1
      %s168 = scalar_select %p167, %s14, 1
      %s169 = smul.addr %s168, 8
      %s170 = smul.addr %s169, 8
      %s171 = scalar_lea.vmem %s3, %s170
      %p172 = scmp.lt.s32.totalorder %s14, 1
      %s173 = scalar_select %p172, %s14, 1
      %s174 = smul.addr %s173, 5
      %s175 = smul.addr %s174, 4
      %s176 = scalar_lea.vmem %s1, %s175
      %p177 = scmp.lt.s32.totalorder %s14, 1
      %s178 = scalar_select %p177, %s14, 1
      %s179 = scalar_lea.vmem %s2, %s178
      %p180 = scmp.lt.s32.totalorder %s14, 1
      %s181 = scalar_select %p180, %s14, 1
      %s182 = smul.addr %s181, 8
      %s183 = smul.addr %s182, 8
      %s184 = scalar_lea.vmem %s3, %s183
      %v186 = vld [vmem:[%s0] sm:$0xff]
      %v187 = vld [vmem:[%s0 + $0x8] sm:$0xff]
      %v188 = vld [vmem:[%s0 + $0x10] sm:$0xff]
      %v189 = vld [vmem:[%s0 + $0x18] sm:$0xff]
      %v190 = vld [vmem:[%s0 + $0x20] sm:$0xff]
      %v191 = vld [vmem:[%s0 + $0x28] sm:$0xff]
      %v192 = vld [vmem:[%s0 + $0x30] sm:$0xff]
      %v193 = vld [vmem:[%s0 + $0x38] sm:$0xff]
      %v194 = vpack.c.bf16 %v187, %v186
      %v195 = vpack.c.bf16 %v189, %v188
      %v196 = vpack.c.bf16 %v191, %v190
      %v197 = vpack.c.bf16 %v193, %v192
      %v198 = vld [vmem:[%s176] sm:$0xf]
      %v199 = vld [vmem:[%s176 + $0x4] sm:$0xf]
      %v200 = vld [vmem:[%s176 + $0x8] sm:$0xf]
      %v201 = vld [vmem:[%s176 + $0xc] sm:$0xf]
      %v202 = vld [vmem:[%s176 + $0x10] sm:$0xf]
      %v203 = vld [vmem:[%s179] sm:$0x1]
      %v205 = vperm.slane %v203, 0
      %v212 = vunpack.c.l.b16 %v198
      %v213 = vunpack.c.l.b16 %v199
      %v214 = vunpack.c.l.b16 %v200
      %v215 = vunpack.c.l.b16 %v201
      %v216 = vunpack.c.l.b16 %v202
      %v217 = vpack.c.b16 %v213, %v212
      %v218 = vpack.c.b16 %v215, %v214
      %v219 = vpack.c.b16 %v216, %v216
      %vm222 = vcmask 318464
      %v224 = vsel %vm222, %v194, 0
      %v227 = vsel %vm222, %v195, 0
      %v230 = vsel %vm222, %v196, 0
      %v233 = vsel %vm222, %v197, 0
      %vm235 = vcmask 1042432
      %vm236 = vcmask 1043456
      %v237 = vsel %vm235, 4294967295, 65535
      %v238 = vsel %vm236, %v237, 0
      %v240 = vand.u32 %v219, %v238
      %242 = vmatpush.bf16.msra.mxu0 0
      %243 = vmatpush.bf16.msra.mxu0 0
      %244 = vmatpush.bf16.msra.mxu0 0
      %245 = vmatpush.bf16.msra.mxu0 0
      %246 = vmatpush.bf16.msra.mxu0 0
      %247 = vmatpush.bf16.msra.mxu0 %v240
      %248 = vmatpush.bf16.msra.mxu0 %v218
      %249 = vmatpush.bf16.msra.mxu0 %v217
      %250 = vmatmul.bf16.gmra.mxu0 %v224
      %v251 = vpop.f32.mrf.mxu0
      %v252 = vadd.f32 %v205, %v251
      %v253 = vpop.f32.mrf.mxu0
      %v254 = vadd.f32 %v205, %v253
      %255 = vmatmul.bf16.gmra.mxu0 %v227
      %v256 = vpop.f32.mrf.mxu0
      %v257 = vadd.f32 %v205, %v256
      %v258 = vpop.f32.mrf.mxu0
      %v259 = vadd.f32 %v205, %v258
      %260 = vmatmul.bf16.gmra.mxu0 %v230
      %v261 = vpop.f32.mrf.mxu0
      %v262 = vadd.f32 %v205, %v261
      %v263 = vpop.f32.mrf.mxu0
      %v264 = vadd.f32 %v205, %v263
      %265 = vmatmul.bf16.gmra.mxu0 %v233
      %v266 = vpop.f32.mrf.mxu0
      %v267 = vadd.f32 %v205, %v266
      %v268 = vpop.f32.mrf.mxu0
      %v269 = vadd.f32 %v205, %v268
      %270 = vdwg.mxu0
      %271 = vst [vmem:[%s184] sm:$0xff] %v252
      %272 = vst [vmem:[%s184 + $0x8] sm:$0xff] %v254
      %273 = vst [vmem:[%s184 + $0x10] sm:$0xff] %v257
      %274 = vst [vmem:[%s184 + $0x18] sm:$0xff] %v259
      %275 = vst [vmem:[%s184 + $0x20] sm:$0xff] %v262
      %276 = vst [vmem:[%s184 + $0x28] sm:$0xff] %v264
      %277 = vst [vmem:[%s184 + $0x30] sm:$0xff] %v267
      %278 = vst [vmem:[%s184 + $0x38] sm:$0xff] %v269
      %p279 = scmp.lt.s32.totalorder %s14, 1
      %s280 = scalar_select %p279, %s14, 1
      %s281 = smul.addr %s280, 8
      %s282 = smul.addr %s281, 8
      %s283 = scalar_lea.vmem %s3, %s282
      // Predicated region
      $region33: #{encoder_forward.9} parent=31 // pred_check
        %p284 = pneg %p105
      $region34: #{encoder_forward.9} parent=31 // pred_check_branch
        %286 = sbr.rel (%p284) target = $region36
      $region35: #{encoder_forward.9} parent=31 // pred_region
        _
      $region36: #{encoder_forward.9} parent=31 // pred_fallthru
        _
    $region32: #{encoder_forward.9} parent=5 // pred_fallthru
      _
    %p287 = scmp.le.s32.totalorder 2, %s9
    // Predicated region
    $region37: #{encoder_forward.9} parent=5 // pred_check
      %p288 = pneg %p287
    $region38: #{encoder_forward.9} parent=5 // pred_check_branch
      %290 = sbr.rel (%p288) target = $region40
    $region39: #{encoder_forward.9} parent=5 // pred_region
      %s291 = ssub.s32 %s9, 2
      // Predicated region
      $region41: #{encoder_forward.9} parent=39 // pred_check
        %p292 = pneg %p111
      $region42: #{encoder_forward.9} parent=39 // pred_check_branch
        %294 = sbr.rel (%p292) target = $region44
      $region43: #{encoder_forward.9} parent=39 // pred_region
        %p295 = scmp.lt.s32.totalorder %s15, 1
        %s296 = scalar_select %p295, %s15, 1
        %s297 = smul.addr %s296, 8
        %s298 = smul.addr %s297, 8
        %s299 = scalar_lea.vmem %s3, %s298
      $region44: #{encoder_forward.9} parent=39 // pred_fallthru
        _
    $region40: #{encoder_forward.9} parent=5 // pred_fallthru
      _
  $region6: #{encoder_forward.9} parent=0 // loop_footer
    %s13 = sadd.s32 1, %s9
  $region7: #{encoder_forward.9} parent=0 // loop_footer_branch
    %8 = sbr.rel target = $region3
  $region8: #{encoder_forward.9} parent=0 // loop_exit
    _

// kernel: encoder_forward.11
$region0: #{encoder_forward.11}
  #allocation0 [shape = 'u32[]', space=smem, size = 0x4, offset = 0x4, fixed_abs, tag = 'smem constant byte address 0x4 - core index']
  #allocation1 [shape = 'u32[72,128]{1,0:T(1,128)}', space=vmem, size = 0x9000, scoped, tag = 'internal scratch']
  %s0 = inlined_call_operand.vmem [shape: f32[32,128], index: 0, kind: input, shape index: {}]
  %s1 = inlined_call_operand.vmem [shape: bf16[2,128,128], index: 1, kind: input, shape index: {}]
  %s2 = inlined_call_operand.vmem [shape: f32[2,1,128], index: 2, kind: input, shape index: {}]
  %s3 = inlined_call_operand.vmem [shape: f32[2,32,128], index: 3, kind: output, shape index: {}]
  %s4 = sld [smem:[#allocation0]]
  $region45: #{encoder_forward.11} parent=0
    _
  %s6 = ssub.s32 1, %s4
  %s7 = scalar_select 0, %s6, %s4
  loop: start=0, step=1, limit=4
  $region2: #{encoder_forward.11} parent=0 // loop_pre_header
    _
  $region3: #{encoder_forward.11} parent=0 // loop_header
    %s9 = sphi 0, %s13
    %p10 = scmp.ge.s32.totalorder %s9, 4
    %s17 = sphi 0, %s17
    %s19 = sphi 0, %s17
    %s20 = sphi 0, %s19
    %s34 = sphi 0, %s20
    %s40 = sphi 0, %s42
    %s43 = sphi 0, %s40
    %s44 = sphi 0, %s43
    %s60 = sphi 0, %s44
    %s66 = sphi 0, %s68
    %s69 = sphi 0, %s66
    %s70 = sphi 0, %s69
    %s86 = sphi 0, %s70
    %s92 = sphi 0, %s94
    %s95 = sphi 0, %s92
    %s96 = sphi 0, %s95
    %s112 = sphi 0, %s96
  $region4: #{encoder_forward.11} parent=0 // loop_header_branch
    %12 = sbr.rel (%p10) target = $region8
  $region5: #{encoder_forward.11} parent=0 // loop_body
    %s14 = ssub.s32 %s9, 1
    %s15 = ssub.s32 %s9, 2
    %s16 = sadd.s32 %s9, 1
    %s18 = sadd.s32 %s17, 1
    %p21 = scmp.eq.s32.totalorder %s9, 1
    %p22 = scmp.ne.s32.totalorder %s17, %s19
    %p23 = scmp.eq.s32.totalorder %s9, 0
    %p24 = por %p22, %p23
    %p25 = scmp.ne.s32.totalorder %s17, %s19
    %p26 = scmp.eq.s32.totalorder %s14, 1
    %p27 = por %p25, %p26
    %p28 = scmp.ne.s32.totalorder %s19, %s20
    %p29 = scmp.eq.s32.totalorder %s14, 0
    %p30 = por %p28, %p29
    %p31 = scmp.ne.s32.totalorder %s19, %s20
    %p32 = scmp.eq.s32.totalorder %s15, 1
    %p33 = por %p31, %p32
    %p35 = scmp.ne.s32.totalorder %s20, %s34
    %p36 = scmp.eq.s32.totalorder %s15, 0
    %p37 = por %p35, %p36
    %s38 = ssub.s32 %s9, %s16
    %p39 = scmp.eq.s32.totalorder %s38, 0
    %s41 = sadd.s32 %s40, 1
    %s42 = scalar_select %p39, %s40, %s41
    %p45 = pneg %p39
    %p46 = scmp.eq.s32.totalorder %s9, 1
    %p47 = por %p45, %p46
    %p48 = scmp.ne.s32.totalorder %s40, %s43
    %p49 = scmp.eq.s32.totalorder %s9, 0
    %p50 = por %p48, %p49
    %p51 = scmp.ne.s32.totalorder %s40, %s43
    %p52 = scmp.eq.s32.totalorder %s14, 1
    %p53 = por %p51, %p52
    %p54 = scmp.ne.s32.totalorder %s43, %s44
    %p55 = scmp.eq.s32.totalorder %s14, 0
    %p56 = por %p54, %p55
    %p57 = scmp.ne.s32.totalorder %s43, %s44
    %p58 = scmp.eq.s32.totalorder %s15, 1
    %p59 = por %p57, %p58
    %p61 = scmp.ne.s32.totalorder %s44, %s60
    %p62 = scmp.eq.s32.totalorder %s15, 0
    %p63 = por %p61, %p62
    %s64 = ssub.s32 %s9, %s16
    %p65 = scmp.eq.s32.totalorder %s64, 0
    %s67 = sadd.s32 %s66, 1
    %s68 = scalar_select %p65, %s66, %s67
    %p71 = pneg %p65
    %p72 = scmp.eq.s32.totalorder %s9, 1
    %p73 = por %p71, %p72
    %p74 = scmp.ne.s32.totalorder %s66, %s69
    %p75 = scmp.eq.s32.totalorder %s9, 0
    %p76 = por %p74, %p75
    %p77 = scmp.ne.s32.totalorder %s66, %s69
    %p78 = scmp.eq.s32.totalorder %s14, 1
    %p79 = por %p77, %p78
    %p80 = scmp.ne.s32.totalorder %s69, %s70
    %p81 = scmp.eq.s32.totalorder %s14, 0
    %p82 = por %p80, %p81
    %p83 = scmp.ne.s32.totalorder %s69, %s70
    %p84 = scmp.eq.s32.totalorder %s15, 1
    %p85 = por %p83, %p84
    %p87 = scmp.ne.s32.totalorder %s70, %s86
    %p88 = scmp.eq.s32.totalorder %s15, 0
    %p89 = por %p87, %p88
    %s90 = ssub.s32 %s9, %s16
    %p91 = scmp.eq.s32.totalorder %s90, 0
    %s93 = sadd.s32 %s92, 1
    %s94 = scalar_select %p91, %s92, %s93
    %p97 = pneg %p91
    %p98 = scmp.eq.s32.totalorder %s9, 1
    %p99 = por %p97, %p98
    %p100 = scmp.ne.s32.totalorder %s92, %s95
    %p101 = scmp.eq.s32.totalorder %s9, 0
    %p102 = por %p100, %p101
    %p103 = scmp.ne.s32.totalorder %s92, %s95
    %p104 = scmp.eq.s32.totalorder %s14, 1
    %p105 = por %p103, %p104
    %p106 = scmp.ne.s32.totalorder %s95, %s96
    %p107 = scmp.eq.s32.totalorder %s14, 0
    %p108 = por %p106, %p107
    %p109 = scmp.ne.s32.totalorder %s95, %s96
    %p110 = scmp.eq.s32.totalorder %s15, 1
    %p111 = por %p109, %p110
    %p113 = scmp.ne.s32.totalorder %s96, %s112
    %p114 = scmp.eq.s32.totalorder %s15, 0
    %p115 = por %p113, %p114
    %p116 = scmp.le.s32.totalorder 1, %s9
    %p117 = scmp.lt.s32.totalorder %s9, 3
    %p118 = pnand %p116, %p117
    %p119 = pneg %p118
    // Predicated region
    $region9: #{encoder_forward.11} parent=5 // pred_check
      _
    $region10: #{encoder_forward.11} parent=5 // pred_check_branch
      %121 = sbr.rel (%p118) target = $region12
    $region11: #{encoder_forward.11} parent=5 // pred_region
      %s122 = ssub.s32 %s9, 1
      // Predicated region
      $region13: #{encoder_forward.11} parent=11 // pred_check
        %p123 = pneg %p30
      $region14: #{encoder_forward.11} parent=11 // pred_check_branch
        %125 = sbr.rel (%p123) target = $region16
      $region15: #{encoder_forward.11} parent=11 // pred_region
        _
      $region16: #{encoder_forward.11} parent=11 // pred_fallthru
        _
    $region12: #{encoder_forward.11} parent=5 // pred_fallthru
      _
    %p126 = scmp.lt.s32.totalorder %s9, 2
    // Predicated region
    $region17: #{encoder_forward.11} parent=5 // pred_check
      %p127 = pneg %p126
    $region18: #{encoder_forward.11} parent=5 // pred_check_branch
      %129 = sbr.rel (%p127) target = $region20
    $region19: #{encoder_forward.11} parent=5 // pred_region
      // Predicated region
      $region21: #{encoder_forward.11} parent=19 // pred_check
        %p130 = pneg %p50
      $region22: #{encoder_forward.11} parent=19 // pred_check_branch
        %132 = sbr.rel (%p130) target = $region24
      $region23: #{encoder_forward.11} parent=19 // pred_region
        %p133 = scmp.lt.s32.totalorder %s9, 1
        %s134 = scalar_select %p133, %s9, 1
        %s135 = smul.addr %s134, 16
        %s136 = smul.addr %s135, 4
        %s137 = scalar_lea.vmem %s1, %s136
      $region24: #{encoder_forward.11} parent=19 // pred_fallthru
        _
      // Predicated region
      $region25: #{encoder_forward.11} parent=19 // pred_check
        %p138 = pneg %p76
      $region26: #{encoder_forward.11} parent=19 // pred_check_branch
        %140 = sbr.rel (%p138) target = $region28
      $region27: #{encoder_forward.11} parent=19 // pred_region
        %p141 = scmp.lt.s32.totalorder %s9, 1
        %s142 = scalar_select %p141, %s9, 1
        %s143 = scalar_lea.vmem %s2, %s142
      $region28: #{encoder_forward.11} parent=19 // pred_fallthru
        _
    $region20: #{encoder_forward.11} parent=5 // pred_fallthru
      _
    %p144 = scmp.le.s32.totalorder 1, %s9
    %p145 = scmp.lt.s32.totalorder %s9, 3
    %p146 = pnand %p144, %p145
    %p147 = pneg %p146
    // Predicated region
    $region29: #{encoder_forward.11} parent=5 // pred_check
      _
    $region30: #{encoder_forward.11} parent=5 // pred_check_branch
      %149 = sbr.rel (%p146) target = $region32
    $region31: #{encoder_forward.11} parent=5 // pred_region
      %s150 = ssub.s32 %s9, 1
      %p151 = pneg %p30
      %p152 = pneg %p27
      %p153 = scmp.lt.s32.totalorder %s14, 1
      %s154 = scalar_select %p153, %s14, 1
      %s155 = smul.addr %s154, 16
      %s156 = smul.addr %s155, 4
      %s157 = scalar_lea.vmem %s1, %s156
      %p158 = pneg %p56
      %p159 = pneg %p53
      %p160 = scmp.lt.s32.totalorder %s14, 1
      %s161 = scalar_select %p160, %s14, 1
      %s162 = scalar_lea.vmem %s2, %s161
      %p163 = pneg %p82
      %p164 = pneg %p79
      %p165 = pneg %p108
      %p166 = pneg %p105
      %p167 = scmp.lt.s32.totalorder %s14, 1
      %s168 = scalar_select %p167, %s14, 1
      %s169 = smul.addr %s168, 4
      %s170 = smul.addr %s169, 8
      %s171 = scalar_lea.vmem %s3, %s170
      %p172 = scmp.lt.s32.totalorder %s14, 1
      %s173 = scalar_select %p172, %s14, 1
      %s174 = smul.addr %s173, 16
      %s175 = smul.addr %s174, 4
      %s176 = scalar_lea.vmem %s1, %s175
      %p177 = scmp.lt.s32.totalorder %s14, 1
      %s178 = scalar_select %p177, %s14, 1
      %s179 = scalar_lea.vmem %s2, %s178
      %p180 = scmp.lt.s32.totalorder %s14, 1
      %s181 = scalar_select %p180, %s14, 1
      %s182 = smul.addr %s181, 4
      %s183 = smul.addr %s182, 8
      %s184 = scalar_lea.vmem %s3, %s183
      %v185 = vld [vmem:[%s0] sm:$0xff]
      %v186 = vld [vmem:[%s0 + $0x8] sm:$0xff]
      %v187 = vld [vmem:[%s0 + $0x10] sm:$0xff]
      %v188 = vld [vmem:[%s0 + $0x18] sm:$0xff]
      %v189 = vpack.c.bf16 %v186, %v185
      %v190 = vpack.c.bf16 %v188, %v187
      %v191 = vld [vmem:[%s176] sm:$0xf]
      %v192 = vld [vmem:[%s176 + $0x4] sm:$0xf]
      %v193 = vld [vmem:[%s176 + $0x8] sm:$0xf]
      %v194 = vld [vmem:[%s176 + $0xc] sm:$0xf]
      %v195 = vld [vmem:[%s176 + $0x10] sm:$0xf]
      %v196 = vld [vmem:[%s176 + $0x14] sm:$0xf]
      %v197 = vld [vmem:[%s176 + $0x18] sm:$0xf]
      %v198 = vld [vmem:[%s176 + $0x1c] sm:$0xf]
      %v199 = vld [vmem:[%s176 + $0x20] sm:$0xf]
      %v200 = vld [vmem:[%s176 + $0x24] sm:$0xf]
      %v201 = vld [vmem:[%s176 + $0x28] sm:$0xf]
      %v202 = vld [vmem:[%s176 + $0x2c] sm:$0xf]
      %v203 = vld [vmem:[%s176 + $0x30] sm:$0xf]
      %v204 = vld [vmem:[%s176 + $0x34] sm:$0xf]
      %v205 = vld [vmem:[%s176 + $0x38] sm:$0xf]
      %v206 = vld [vmem:[%s176 + $0x3c] sm:$0xf]
      %v207 = vld [vmem:[%s179] sm:$0x1]
      %v209 = vperm.slane %v207, 0
      %v227 = vunpack.c.l.b16 %v191
      %v228 = vunpack.c.l.b16 %v192
      %v229 = vunpack.c.l.b16 %v193
      %v230 = vunpack.c.l.b16 %v194
      %v231 = vunpack.c.l.b16 %v195
      %v232 = vunpack.c.l.b16 %v196
      %v233 = vunpack.c.l.b16 %v197
      %v234 = vunpack.c.l.b16 %v198
      %v235 = vunpack.c.l.b16 %v199
      %v236 = vunpack.c.l.b16 %v200
      %v237 = vunpack.c.l.b16 %v201
      %v238 = vunpack.c.l.b16 %v202
      %v239 = vunpack.c.l.b16 %v203
      %v240 = vunpack.c.l.b16 %v204
      %v241 = vunpack.c.l.b16 %v205
      %v242 = vunpack.c.l.b16 %v206
      %v243 = vpack.c.b16 %v228, %v227
      %v244 = vpack.c.b16 %v230, %v229
      %v245 = vpack.c.b16 %v232, %v231
      %v246 = vpack.c.b16 %v234, %v233
      %v247 = vpack.c.b16 %v236, %v235
      %v248 = vpack.c.b16 %v238, %v237
      %v249 = vpack.c.b16 %v240, %v239
      %v250 = vpack.c.b16 %v242, %v241
      %259 = vmatpush.bf16.msra.mxu0 %v250
      %260 = vmatpush.bf16.msra.mxu0 %v249
      %261 = vmatpush.bf16.msra.mxu0 %v248
      %262 = vmatpush.bf16.msra.mxu0 %v247
      %263 = vmatpush.bf16.msra.mxu0 %v246
      %264 = vmatpush.bf16.msra.mxu0 %v245
      %265 = vmatpush.bf16.msra.mxu0 %v244
      %266 = vmatpush.bf16.msra.mxu0 %v243
      %267 = vmatmul.bf16.gmra.mxu0 %v189
      %v268 = vpop.f32.mrf.mxu0
      %v269 = vadd.f32 %v209, %v268
      %v270 = vpop.f32.mrf.mxu0
      %v271 = vadd.f32 %v209, %v270
      %272 = vmatmul.bf16.gmra.mxu0 %v190
      %v273 = vpop.f32.mrf.mxu0
      %v274 = vadd.f32 %v209, %v273
      %v275 = vpop.f32.mrf.mxu0
      %v276 = vadd.f32 %v209, %v275
      %277 = vdwg.mxu0
      %278 = vst [vmem:[%s184] sm:$0xff] %v269
      %279 = vst [vmem:[%s184 + $0x8] sm:$0xff] %v271
      %280 = vst [vmem:[%s184 + $0x10] sm:$0xff] %v274
      %281 = vst [vmem:[%s184 + $0x18] sm:$0xff] %v276
      %p282 = scmp.lt.s32.totalorder %s14, 1
      %s283 = scalar_select %p282, %s14, 1
      %s284 = smul.addr %s283, 4
      %s285 = smul.addr %s284, 8
      %s286 = scalar_lea.vmem %s3, %s285
      // Predicated region
      $region33: #{encoder_forward.11} parent=31 // pred_check
        %p287 = pneg %p105
      $region34: #{encoder_forward.11} parent=31 // pred_check_branch
        %289 = sbr.rel (%p287) target = $region36
      $region35: #{encoder_forward.11} parent=31 // pred_region
        _
      $region36: #{encoder_forward.11} parent=31 // pred_fallthru
        _
    $region32: #{encoder_forward.11} parent=5 // pred_fallthru
      _
    %p290 = scmp.le.s32.totalorder 2, %s9
    // Predicated region
    $region37: #{encoder_forward.11} parent=5 // pred_check
      %p291 = pneg %p290
    $region38: #{encoder_forward.11} parent=5 // pred_check_branch
      %293 = sbr.rel (%p291) target = $region40
    $region39: #{encoder_forward.11} parent=5 // pred_region
      %s294 = ssub.s32 %s9, 2
      // Predicated region
      $region41: #{encoder_forward.11} parent=39 // pred_check
        %p295 = pneg %p111
      $region42: #{encoder_forward.11} parent=39 // pred_check_branch
        %297 = sbr.rel (%p295) target = $region44
      $region43: #{encoder_forward.11} parent=39 // pred_region
        %p298 = scmp.lt.s32.totalorder %s15, 1
        %s299 = scalar_select %p298, %s15, 1
        %s300 = smul.addr %s299, 4
        %s301 = smul.addr %s300, 8
        %s302 = scalar_lea.vmem %s3, %s301
      $region44: #{encoder_forward.11} parent=39 // pred_fallthru
        _
    $region40: #{encoder_forward.11} parent=5 // pred_fallthru
      _
  $region6: #{encoder_forward.11} parent=0 // loop_footer
    %s13 = sadd.s32 1, %s9
  $region7: #{encoder_forward.11} parent=0 // loop_footer_branch
    %8 = sbr.rel target = $region3
  $region8: #{encoder_forward.11} parent=0 // loop_exit
    _

// kernel: encoder_forward.12
$region0: #{encoder_forward.12}
  #allocation0 [shape = 'u32[]', space=smem, size = 0x4, offset = 0x4, fixed_abs, tag = 'smem constant byte address 0x4 - core index']
  #allocation1 [shape = 'u32[72,128]{1,0:T(1,128)}', space=vmem, size = 0x9000, scoped, tag = 'internal scratch']
  %s0 = inlined_call_operand.vmem [shape: f32[2,8,4,128], index: 0, kind: input, shape index: {}]
  %s1 = inlined_call_operand.vmem [shape: s32[4,1], index: 1, kind: input, shape index: {}]
  %s2 = inlined_call_operand.vmem [shape: bf16[2,32,128], index: 2, kind: input, shape index: {}]
  %s3 = inlined_call_operand.vmem [shape: f32[2,8,4,32], index: 3, kind: output, shape index: {}]
  %s4 = sld [smem:[#allocation0]]
  $region52: #{encoder_forward.12} parent=0
    _
  %s6 = ssub.s32 1, %s4
  %s7 = scalar_select 0, %s6, %s4
  loop: start=0, step=1, limit=4
  $region2: #{encoder_forward.12} parent=0 // loop_pre_header
    _
  $region3: #{encoder_forward.12} parent=0 // loop_header
    %s9 = sphi 0, %s13
    %p10 = scmp.ge.s32.totalorder %s9, 4
    %s19 = sphi 0, %s21
    %s22 = sphi 0, %s19
    %s23 = sphi 0, %s22
    %s39 = sphi 0, %s23
    %s43 = sphi 0, %s43
    %s45 = sphi 0, %s43
    %s46 = sphi 0, %s45
    %s60 = sphi 0, %s46
    %s66 = sphi 0, %s68
    %s69 = sphi 0, %s66
    %s70 = sphi 0, %s69
    %s86 = sphi 0, %s70
    %s92 = sphi 0, %s94
    %s95 = sphi 0, %s92
    %s96 = sphi 0, %s95
    %s112 = sphi 0, %s96
  $region4: #{encoder_forward.12} parent=0 // loop_header_branch
    %12 = sbr.rel (%p10) target = $region8
  $region5: #{encoder_forward.12} parent=0 // loop_body
    %s14 = ssub.s32 %s9, 1
    %s15 = ssub.s32 %s9, 2
    %s16 = sadd.s32 %s9, 1
    %s17 = ssub.s32 %s9, %s16
    %p18 = scmp.eq.s32.totalorder %s17, 0
    %s20 = sadd.s32 %s19, 1
    %s21 = scalar_select %p18, %s19, %s20
    %p24 = pneg %p18
    %p25 = scmp.eq.s32.totalorder %s9, 1
    %p26 = por %p24, %p25
    %p27 = scmp.ne.s32.totalorder %s19, %s22
    %p28 = scmp.eq.s32.totalorder %s9, 0
    %p29 = por %p27, %p28
    %p30 = scmp.ne.s32.totalorder %s19, %s22
    %p31 = scmp.eq.s32.totalorder %s14, 1
    %p32 = por %p30, %p31
    %p33 = scmp.ne.s32.totalorder %s22, %s23
    %p34 = scmp.eq.s32.totalorder %s14, 0
    %p35 = por %p33, %p34
    %p36 = scmp.ne.s32.totalorder %s22, %s23
    %p37 = scmp.eq.s32.totalorder %s15, 1
    %p38 = por %p36, %p37
    %p40 = scmp.ne.s32.totalorder %s23, %s39
    %p41 = scmp.eq.s32.totalorder %s15, 0
    %p42 = por %p40, %p41
    %s44 = sadd.s32 %s43, 1
    %p47 = scmp.eq.s32.totalorder %s9, 1
    %p48 = scmp.ne.s32.totalorder %s43, %s45
    %p49 = scmp.eq.s32.totalorder %s9, 0
    %p50 = por %p48, %p49
    %p51 = scmp.ne.s32.totalorder %s43, %s45
    %p52 = scmp.eq.s32.totalorder %s14, 1
    %p53 = por %p51, %p52
    %p54 = scmp.ne.s32.totalorder %s45, %s46
    %p55 = scmp.eq.s32.totalorder %s14, 0
    %p56 = por %p54, %p55
    %p57 = scmp.ne.s32.totalorder %s45, %s46
    %p58 = scmp.eq.s32.totalorder %s15, 1
    %p59 = por %p57, %p58
    %p61 = scmp.ne.s32.totalorder %s46, %s60
    %p62 = scmp.eq.s32.totalorder %s15, 0
    %p63 = por %p61, %p62
    %s64 = ssub.s32 %s9, %s16
    %p65 = scmp.eq.s32.totalorder %s64, 0
    %s67 = sadd.s32 %s66, 1
    %s68 = scalar_select %p65, %s66, %s67
    %p71 = pneg %p65
    %p72 = scmp.eq.s32.totalorder %s9, 1
    %p73 = por %p71, %p72
    %p74 = scmp.ne.s32.totalorder %s66, %s69
    %p75 = scmp.eq.s32.totalorder %s9, 0
    %p76 = por %p74, %p75
    %p77 = scmp.ne.s32.totalorder %s66, %s69
    %p78 = scmp.eq.s32.totalorder %s14, 1
    %p79 = por %p77, %p78
    %p80 = scmp.ne.s32.totalorder %s69, %s70
    %p81 = scmp.eq.s32.totalorder %s14, 0
    %p82 = por %p80, %p81
    %p83 = scmp.ne.s32.totalorder %s69, %s70
    %p84 = scmp.eq.s32.totalorder %s15, 1
    %p85 = por %p83, %p84
    %p87 = scmp.ne.s32.totalorder %s70, %s86
    %p88 = scmp.eq.s32.totalorder %s15, 0
    %p89 = por %p87, %p88
    %s90 = ssub.s32 %s9, %s16
    %p91 = scmp.eq.s32.totalorder %s90, 0
    %s93 = sadd.s32 %s92, 1
    %s94 = scalar_select %p91, %s92, %s93
    %p97 = pneg %p91
    %p98 = scmp.eq.s32.totalorder %s9, 1
    %p99 = por %p97, %p98
    %p100 = scmp.ne.s32.totalorder %s92, %s95
    %p101 = scmp.eq.s32.totalorder %s9, 0
    %p102 = por %p100, %p101
    %p103 = scmp.ne.s32.totalorder %s92, %s95
    %p104 = scmp.eq.s32.totalorder %s14, 1
    %p105 = por %p103, %p104
    %p106 = scmp.ne.s32.totalorder %s95, %s96
    %p107 = scmp.eq.s32.totalorder %s14, 0
    %p108 = por %p106, %p107
    %p109 = scmp.ne.s32.totalorder %s95, %s96
    %p110 = scmp.eq.s32.totalorder %s15, 1
    %p111 = por %p109, %p110
    %p113 = scmp.ne.s32.totalorder %s96, %s112
    %p114 = scmp.eq.s32.totalorder %s15, 0
    %p115 = por %p113, %p114
    %p116 = scmp.le.s32.totalorder 1, %s9
    %p117 = scmp.lt.s32.totalorder %s9, 3
    %p118 = pnand %p116, %p117
    %p119 = pneg %p118
    // Predicated region
    $region9: #{encoder_forward.12} parent=5 // pred_check
      _
    $region10: #{encoder_forward.12} parent=5 // pred_check_branch
      %121 = sbr.rel (%p118) target = $region12
    $region11: #{encoder_forward.12} parent=5 // pred_region
      %s122 = ssub.s32 %s9, 1
      // Predicated region
      $region13: #{encoder_forward.12} parent=11 // pred_check
        %p123 = pneg %p56
      $region14: #{encoder_forward.12} parent=11 // pred_check_branch
        %125 = sbr.rel (%p123) target = $region16
      $region15: #{encoder_forward.12} parent=11 // pred_region
        _
      $region16: #{encoder_forward.12} parent=11 // pred_fallthru
        _
    $region12: #{encoder_forward.12} parent=5 // pred_fallthru
      _
    %p126 = scmp.lt.s32.totalorder %s9, 2
    // Predicated region
    $region17: #{encoder_forward.12} parent=5 // pred_check
      %p127 = pneg %p126
    $region18: #{encoder_forward.12} parent=5 // pred_check_branch
      %129 = sbr.rel (%p127) target = $region20
    $region19: #{encoder_forward.12} parent=5 // pred_region
      // Predicated region
      $region21: #{encoder_forward.12} parent=19 // pred_check
        %p130 = pneg %p29
      $region22: #{encoder_forward.12} parent=19 // pred_check_branch
        %132 = sbr.rel (%p130) target = $region24
      $region23: #{encoder_forward.12} parent=19 // pred_region
        %p133 = scmp.lt.s32.totalorder %s9, 1
        %s134 = scalar_select %p133, %s9, 1
        %s135 = smul.addr %s134, 8
        %s136 = smul.addr %s135, 4
        %s137 = scalar_lea.vmem %s0, %s136
      $region24: #{encoder_forward.12} parent=19 // pred_fallthru
        _
      // Predicated region
      $region25: #{encoder_forward.12} parent=19 // pred_check
        %p138 = pneg %p76
      $region26: #{encoder_forward.12} parent=19 // pred_check_branch
        %140 = sbr.rel (%p138) target = $region28
      $region27: #{encoder_forward.12} parent=19 // pred_region
        %p141 = scmp.lt.s32.totalorder %s9, 1
        %s142 = scalar_select %p141, %s9, 1
        %s143 = smul.addr %s142, 4
        %s144 = smul.addr %s143, 4
        %s145 = scalar_lea.vmem %s2, %s144
      $region28: #{encoder_forward.12} parent=19 // pred_fallthru
        _
    $region20: #{encoder_forward.12} parent=5 // pred_fallthru
      _
    %p146 = scmp.le.s32.totalorder 1, %s9
    %p147 = scmp.lt.s32.totalorder %s9, 3
    %p148 = pnand %p146, %p147
    %p149 = pneg %p148
    // Predicated region
    $region29: #{encoder_forward.12} parent=5 // pred_check
      _
    $region30: #{encoder_forward.12} parent=5 // pred_check_branch
      %151 = sbr.rel (%p148) target = $region32
    $region31: #{encoder_forward.12} parent=5 // pred_region
      %s152 = ssub.s32 %s9, 1
      %p153 = scmp.lt.s32.totalorder %s14, 1
      %s154 = scalar_select %p153, %s14, 1
      %s155 = smul.addr %s154, 8
      %s156 = smul.addr %s155, 4
      %s157 = scalar_lea.vmem %s0, %s156
      %p158 = pneg %p35
      %p159 = pneg %p32
      %p160 = pneg %p56
      %p161 = pneg %p53
      %p162 = scmp.lt.s32.totalorder %s14, 1
      %s163 = scalar_select %p162, %s14, 1
      %s164 = smul.addr %s163, 4
      %s165 = smul.addr %s164, 4
      %s166 = scalar_lea.vmem %s2, %s165
      %p167 = pneg %p82
      %p168 = pneg %p79
      %p169 = pneg %p108
      %p170 = pneg %p105
      %p171 = scmp.lt.s32.totalorder %s14, 1
      %s172 = scalar_select %p171, %s14, 1
      %s173 = smul.addr %s172, 8
      %s174 = smul.addr %s173, 4
      %s175 = scalar_lea.vmem %s3, %s174
      %p176 = scmp.lt.s32.totalorder %s14, 1
      %s177 = scalar_select %p176, %s14, 1
      %s178 = smul.addr %s177, 8
      %s179 = smul.addr %s178, 4
      %s180 = scalar_lea.vmem %s0, %s179
      %p181 = scmp.lt.s32.totalorder %s14, 1
      %s182 = scalar_select %p181, %s14, 1
      %s183 = smul.addr %s182, 4
      %s184 = smul.addr %s183, 4
      %s185 = scalar_lea.vmem %s2, %s184
      %p186 = scmp.lt.s32.totalorder %s14, 1
      %s187 = scalar_select %p186, %s14, 1
      %s188 = smul.addr %s187, 8
      %s189 = smul.addr %s188, 4
      %s190 = scalar_lea.vmem %s3, %s189
      %v192 = vld [vmem:[%s185] sm:$0xf]
      %v193 = vld [vmem:[%s185 + $0x4] sm:$0xf]
      %v194 = vld [vmem:[%s185 + $0x8] sm:$0xf]
      %v195 = vld [vmem:[%s185 + $0xc] sm:$0xf]
      %v196 = vld [vmem:[%s1] sm:$0xf]
      loop: start=0, step=1, limit=8
      $region33: #{encoder_forward.12} parent=31 // loop_pre_header
        _
      $region34: #{encoder_forward.12} parent=31 // loop_header
        %s198 = sphi 0, %s202
        %p199 = scmp.ge.s32.totalorder %s198, 8
        %v203 = vphi 0.0, %v290
        %v204 = vphi 0.0, %v289
      $region35: #{encoder_forward.12} parent=31 // loop_header_branch
        %201 = sbr.rel (%p199) target = $region39
      $region36: #{encoder_forward.12} parent=31 // loop_body
        %p205 = scmp.eq.s32.totalorder %s14, 0
        %s206 = ssub.s32 7, %s198
        %s207 = scalar_select %p205, %s198, %s206
        %s208 = smul.u32 %s207, 4
        %s209 = scalar_lea.vmem %s180, %s208
        %v210 = vld [vmem:[%s209] sm:$0xf]
        %v211 = vpack.c.bf16 %v203, %v203
        %213 = vrot.lane.b32.xlu0 %v211, 32
        %v214 = vpop.permute.xlu0 %213
        %v219 = vunpack.c.l.b16 %v192
        %v220 = vunpack.c.l.b16 %v193
        %v221 = vunpack.c.l.b16 %v194
        %v222 = vunpack.c.l.b16 %v195
        %v223 = vpack.c.b16 %v220, %v219
        %v224 = vpack.c.b16 %v222, %v221
        %vm227 = vcmask 261120
        %v229 = vsel %vm227, %v214, 0
        %231 = vmatpush.bf16.msra.mxu0 0
        %232 = vmatpush.bf16.msra.mxu0 0
        %233 = vmatpush.bf16.msra.mxu0 0
        %234 = vmatpush.bf16.msra.mxu0 0
        %235 = vmatpush.bf16.msra.mxu0 0
        %236 = vmatpush.bf16.msra.mxu0 0
        %237 = vmatpush.bf16.msra.mxu0 %v224
        %238 = vmatpush.bf16.msra.mxu0 %v223
        %239 = vmatmul.bf16.gmra.mxu0 %v229
        %v240 = vpop.f32.mrf.mxu0
        %v241 = vadd.f32 0.0, %v240
        %v242 = vpop.f32.mrf.mxu0
        %243 = vdwg.mxu0
        %v244 = vadd.f32 %v210, %v241
        %v245 = vxor.u32 %v244, 2147483648
        %v246 = vmul.f32 %v245, 1.442695
        %v247 = vpow.pop %v246
        %v248 = vadd.f32 %v247, 1.0
        %v249 = vrcp.pop %v248
        %v250 = vmul.f32 %v248, %v249
        %v251 = vsub.f32 1.0, %v250
        %v252 = vmul.f32 %v249, %v251
        %v253 = vadd.f32 %v249, %v252
        %vm254 = vweird.f32 %v248
        %vm255 = vweird.f32 %v249
        %vm256 = vmor %vm254, %vm255
        %v257 = vsel %vm256, %v249, %v253
        %v258 = vand.u32 2147483647, %v248
        %vm259 = vcmp.eq.f32.partialorder %v258, 8.507059e+37
        %v260 = vand.u32 %v248, 2147483648
        %v261 = vor.u32 1.1754944e-38, %v260
        %v262 = vsel %vm259, %v261, %v257
        %v263 = vmul.f32 1.0, %v262
        %v264 = vtanh.pop %v244
        %v265 = vmul.f32 %v263, %v204
        %267 = vrot.lane.b32.xlu0 %v264, 64
        %v268 = vpop.permute.xlu0 %267
        %v270 = vmul.f32 %v263, %v268
        %272 = vrot.lane.b32.xlu0 %v270, 32
        %v273 = vpop.permute.xlu0 %272
        %v275 = vadd.f32 %v265, %v273
        %v276 = vtanh.pop %v275
        %278 = vrot.lane.b32.xlu0 %v276, 64
        %v279 = vpop.permute.xlu0 %278
        %v281 = vmul.f32 %v263, %v279
        %v282 = vstv %s207
        %vm283 = vcmp.lt.s32.totalorder %v282, %v196
        %v284 = vsel %vm283, 1, 0
        %285 = vset.pattern.permute.xlu0 0
        %286 = vperm.xlu0 %285, %v284
        %v287 = vpop.permute.xlu0 %286
        %vm288 = vcmp.eq.s32.totalorder %v287, 1
        %v289 = vsel %vm288, %v275, %v204
        %v290 = vsel %vm288, %v281, %v203
        %v291 = vsel %vm288, %v281, 0.0
        %293 = vrot.lane.b32.xlu0 %v291, 32
        %v294 = vpop.permute.xlu0 %293
        %s296 = scalar_lea.vmem %s190, %s208
        %vm297 = vcmask 257024
        %298 = vst.msk [vmem:[%s296] sm:$0xf] %vm297, %v294
      $region37: #{encoder_forward.12} parent=31 // loop_footer
        %s202 = sadd.s32 1, %s198
      $region38: #{encoder_forward.12} parent=31 // loop_footer_branch
        %197 = sbr.rel target = $region34
      $region39: #{encoder_forward.12} parent=31 // loop_exit
        _
      %p299 = scmp.lt.s32.totalorder %s14, 1
      %s300 = scalar_select %p299, %s14, 1
      %s301 = smul.addr %s300, 8
      %s302 = smul.addr %s301, 4
      %s303 = scalar_lea.vmem %s3, %s302
      // Predicated region
      $region40: #{encoder_forward.12} parent=31 // pred_check
        %p304 = pneg %p105
      $region41: #{encoder_forward.12} parent=31 // pred_check_branch
        %306 = sbr.rel (%p304) target = $region43
      $region42: #{encoder_forward.12} parent=31 // pred_region
        _
      $region43: #{encoder_forward.12} parent=31 // pred_fallthru
        _
    $region32: #{encoder_forward.12} parent=5 // pred_fallthru
      _
    %p307 = scmp.le.s32.totalorder 2, %s9
    // Predicated region
    $region44: #{encoder_forward.12} parent=5 // pred_check
      %p308 = pneg %p307
    $region45: #{encoder_forward.12} parent=5 // pred_check_branch
      %310 = sbr.rel (%p308) target = $region47
    $region46: #{encoder_forward.12} parent=5 // pred_region
      %s311 = ssub.s32 %s9, 2
      // Predicated region
      $region48: #{encoder_forward.12} parent=46 // pred_check
        %p312 = pneg %p111
      $region49: #{encoder_forward.12} parent=46 // pred_check_branch
        %314 = sbr.rel (%p312) target = $region51
      $region50: #{encoder_forward.12} parent=46 // pred_region
        %p315 = scmp.lt.s32.totalorder %s15, 1
        %s316 = scalar_select %p315, %s15, 1
        %s317 = smul.addr %s316, 8
        %s318 = smul.addr %s317, 4
        %s319 = scalar_lea.vmem %s3, %s318
      $region51: #{encoder_forward.12} parent=46 // pred_fallthru
        _
    $region47: #{encoder_forward.12} parent=5 // pred_fallthru
      _
  $region6: #{encoder_forward.12} parent=0 // loop_footer
    %s13 = sadd.s32 1, %s9
  $region7: #{encoder_forward.12} parent=0 // loop_footer_branch
    %8 = sbr.rel target = $region3
  $region8: #{encoder_forward.12} parent=0 // loop_exit
    _

// kernel: encoder_forward.10
$region0: #{encoder_forward.10}
  #allocation0 [shape = 'u32[]', space=smem, size = 0x4, offset = 0x4, fixed_abs, tag = 'smem constant byte address 0x4 - core index']
  #allocation1 [shape = 'u32[72,128]{1,0:T(1,128)}', space=vmem, size = 0x9000, scoped, tag = 'internal scratch']
  %s0 = inlined_call_operand.vmem [shape: f32[2,16,4,128], index: 0, kind: input, shape index: {}]
  %s1 = inlined_call_operand.vmem [shape: s32[4,1], index: 1, kind: input, shape index: {}]
  %s2 = inlined_call_operand.vmem [shape: bf16[2,32,128], index: 2, kind: input, shape index: {}]
  %s3 = inlined_call_operand.vmem [shape: f32[2,16,4,32], index: 3, kind: output, shape index: {}]
  %s4 = sld [smem:[#allocation0]]
  $region52: #{encoder_forward.10} parent=0
    _
  %s6 = ssub.s32 1, %s4
  %s7 = scalar_select 0, %s6, %s4
  loop: start=0, step=1, limit=4
  $region2: #{encoder_forward.10} parent=0 // loop_pre_header
    _
  $region3: #{encoder_forward.10} parent=0 // loop_header
    %s9 = sphi 0, %s13
    %p10 = scmp.ge.s32.totalorder %s9, 4
    %s19 = sphi 0, %s21
    %s22 = sphi 0, %s19
    %s23 = sphi 0, %s22
    %s39 = sphi 0, %s23
    %s43 = sphi 0, %s43
    %s45 = sphi 0, %s43
    %s46 = sphi 0, %s45
    %s60 = sphi 0, %s46
    %s66 = sphi 0, %s68
    %s69 = sphi 0, %s66
    %s70 = sphi 0, %s69
    %s86 = sphi 0, %s70
    %s92 = sphi 0, %s94
    %s95 = sphi 0, %s92
    %s96 = sphi 0, %s95
    %s112 = sphi 0, %s96
  $region4: #{encoder_forward.10} parent=0 // loop_header_branch
    %12 = sbr.rel (%p10) target = $region8
  $region5: #{encoder_forward.10} parent=0 // loop_body
    %s14 = ssub.s32 %s9, 1
    %s15 = ssub.s32 %s9, 2
    %s16 = sadd.s32 %s9, 1
    %s17 = ssub.s32 %s9, %s16
    %p18 = scmp.eq.s32.totalorder %s17, 0
    %s20 = sadd.s32 %s19, 1
    %s21 = scalar_select %p18, %s19, %s20
    %p24 = pneg %p18
    %p25 = scmp.eq.s32.totalorder %s9, 1
    %p26 = por %p24, %p25
    %p27 = scmp.ne.s32.totalorder %s19, %s22
    %p28 = scmp.eq.s32.totalorder %s9, 0
    %p29 = por %p27, %p28
    %p30 = scmp.ne.s32.totalorder %s19, %s22
    %p31 = scmp.eq.s32.totalorder %s14, 1
    %p32 = por %p30, %p31
    %p33 = scmp.ne.s32.totalorder %s22, %s23
    %p34 = scmp.eq.s32.totalorder %s14, 0
    %p35 = por %p33, %p34
    %p36 = scmp.ne.s32.totalorder %s22, %s23
    %p37 = scmp.eq.s32.totalorder %s15, 1
    %p38 = por %p36, %p37
    %p40 = scmp.ne.s32.totalorder %s23, %s39
    %p41 = scmp.eq.s32.totalorder %s15, 0
    %p42 = por %p40, %p41
    %s44 = sadd.s32 %s43, 1
    %p47 = scmp.eq.s32.totalorder %s9, 1
    %p48 = scmp.ne.s32.totalorder %s43, %s45
    %p49 = scmp.eq.s32.totalorder %s9, 0
    %p50 = por %p48, %p49
    %p51 = scmp.ne.s32.totalorder %s43, %s45
    %p52 = scmp.eq.s32.totalorder %s14, 1
    %p53 = por %p51, %p52
    %p54 = scmp.ne.s32.totalorder %s45, %s46
    %p55 = scmp.eq.s32.totalorder %s14, 0
    %p56 = por %p54, %p55
    %p57 = scmp.ne.s32.totalorder %s45, %s46
    %p58 = scmp.eq.s32.totalorder %s15, 1
    %p59 = por %p57, %p58
    %p61 = scmp.ne.s32.totalorder %s46, %s60
    %p62 = scmp.eq.s32.totalorder %s15, 0
    %p63 = por %p61, %p62
    %s64 = ssub.s32 %s9, %s16
    %p65 = scmp.eq.s32.totalorder %s64, 0
    %s67 = sadd.s32 %s66, 1
    %s68 = scalar_select %p65, %s66, %s67
    %p71 = pneg %p65
    %p72 = scmp.eq.s32.totalorder %s9, 1
    %p73 = por %p71, %p72
    %p74 = scmp.ne.s32.totalorder %s66, %s69
    %p75 = scmp.eq.s32.totalorder %s9, 0
    %p76 = por %p74, %p75
    %p77 = scmp.ne.s32.totalorder %s66, %s69
    %p78 = scmp.eq.s32.totalorder %s14, 1
    %p79 = por %p77, %p78
    %p80 = scmp.ne.s32.totalorder %s69, %s70
    %p81 = scmp.eq.s32.totalorder %s14, 0
    %p82 = por %p80, %p81
    %p83 = scmp.ne.s32.totalorder %s69, %s70
    %p84 = scmp.eq.s32.totalorder %s15, 1
    %p85 = por %p83, %p84
    %p87 = scmp.ne.s32.totalorder %s70, %s86
    %p88 = scmp.eq.s32.totalorder %s15, 0
    %p89 = por %p87, %p88
    %s90 = ssub.s32 %s9, %s16
    %p91 = scmp.eq.s32.totalorder %s90, 0
    %s93 = sadd.s32 %s92, 1
    %s94 = scalar_select %p91, %s92, %s93
    %p97 = pneg %p91
    %p98 = scmp.eq.s32.totalorder %s9, 1
    %p99 = por %p97, %p98
    %p100 = scmp.ne.s32.totalorder %s92, %s95
    %p101 = scmp.eq.s32.totalorder %s9, 0
    %p102 = por %p100, %p101
    %p103 = scmp.ne.s32.totalorder %s92, %s95
    %p104 = scmp.eq.s32.totalorder %s14, 1
    %p105 = por %p103, %p104
    %p106 = scmp.ne.s32.totalorder %s95, %s96
    %p107 = scmp.eq.s32.totalorder %s14, 0
    %p108 = por %p106, %p107
    %p109 = scmp.ne.s32.totalorder %s95, %s96
    %p110 = scmp.eq.s32.totalorder %s15, 1
    %p111 = por %p109, %p110
    %p113 = scmp.ne.s32.totalorder %s96, %s112
    %p114 = scmp.eq.s32.totalorder %s15, 0
    %p115 = por %p113, %p114
    %p116 = scmp.le.s32.totalorder 1, %s9
    %p117 = scmp.lt.s32.totalorder %s9, 3
    %p118 = pnand %p116, %p117
    %p119 = pneg %p118
    // Predicated region
    $region9: #{encoder_forward.10} parent=5 // pred_check
      _
    $region10: #{encoder_forward.10} parent=5 // pred_check_branch
      %121 = sbr.rel (%p118) target = $region12
    $region11: #{encoder_forward.10} parent=5 // pred_region
      %s122 = ssub.s32 %s9, 1
      // Predicated region
      $region13: #{encoder_forward.10} parent=11 // pred_check
        %p123 = pneg %p56
      $region14: #{encoder_forward.10} parent=11 // pred_check_branch
        %125 = sbr.rel (%p123) target = $region16
      $region15: #{encoder_forward.10} parent=11 // pred_region
        _
      $region16: #{encoder_forward.10} parent=11 // pred_fallthru
        _
    $region12: #{encoder_forward.10} parent=5 // pred_fallthru
      _
    %p126 = scmp.lt.s32.totalorder %s9, 2
    // Predicated region
    $region17: #{encoder_forward.10} parent=5 // pred_check
      %p127 = pneg %p126
    $region18: #{encoder_forward.10} parent=5 // pred_check_branch
      %129 = sbr.rel (%p127) target = $region20
    $region19: #{encoder_forward.10} parent=5 // pred_region
      // Predicated region
      $region21: #{encoder_forward.10} parent=19 // pred_check
        %p130 = pneg %p29
      $region22: #{encoder_forward.10} parent=19 // pred_check_branch
        %132 = sbr.rel (%p130) target = $region24
      $region23: #{encoder_forward.10} parent=19 // pred_region
        %p133 = scmp.lt.s32.totalorder %s9, 1
        %s134 = scalar_select %p133, %s9, 1
        %s135 = smul.addr %s134, 16
        %s136 = smul.addr %s135, 4
        %s137 = scalar_lea.vmem %s0, %s136
      $region24: #{encoder_forward.10} parent=19 // pred_fallthru
        _
      // Predicated region
      $region25: #{encoder_forward.10} parent=19 // pred_check
        %p138 = pneg %p76
      $region26: #{encoder_forward.10} parent=19 // pred_check_branch
        %140 = sbr.rel (%p138) target = $region28
      $region27: #{encoder_forward.10} parent=19 // pred_region
        %p141 = scmp.lt.s32.totalorder %s9, 1
        %s142 = scalar_select %p141, %s9, 1
        %s143 = smul.addr %s142, 4
        %s144 = smul.addr %s143, 4
        %s145 = scalar_lea.vmem %s2, %s144
      $region28: #{encoder_forward.10} parent=19 // pred_fallthru
        _
    $region20: #{encoder_forward.10} parent=5 // pred_fallthru
      _
    %p146 = scmp.le.s32.totalorder 1, %s9
    %p147 = scmp.lt.s32.totalorder %s9, 3
    %p148 = pnand %p146, %p147
    %p149 = pneg %p148
    // Predicated region
    $region29: #{encoder_forward.10} parent=5 // pred_check
      _
    $region30: #{encoder_forward.10} parent=5 // pred_check_branch
      %151 = sbr.rel (%p148) target = $region32
    $region31: #{encoder_forward.10} parent=5 // pred_region
      %s152 = ssub.s32 %s9, 1
      %p153 = scmp.lt.s32.totalorder %s14, 1
      %s154 = scalar_select %p153, %s14, 1
      %s155 = smul.addr %s154, 16
      %s156 = smul.addr %s155, 4
      %s157 = scalar_lea.vmem %s0, %s156
      %p158 = pneg %p35
      %p159 = pneg %p32
      %p160 = pneg %p56
      %p161 = pneg %p53
      %p162 = scmp.lt.s32.totalorder %s14, 1
      %s163 = scalar_select %p162, %s14, 1
      %s164 = smul.addr %s163, 4
      %s165 = smul.addr %s164, 4
      %s166 = scalar_lea.vmem %s2, %s165
      %p167 = pneg %p82
      %p168 = pneg %p79
      %p169 = pneg %p108
      %p170 = pneg %p105
      %p171 = scmp.lt.s32.totalorder %s14, 1
      %s172 = scalar_select %p171, %s14, 1
      %s173 = smul.addr %s172, 16
      %s174 = smul.addr %s173, 4
      %s175 = scalar_lea.vmem %s3, %s174
      %p176 = scmp.lt.s32.totalorder %s14, 1
      %s177 = scalar_select %p176, %s14, 1
      %s178 = smul.addr %s177, 16
      %s179 = smul.addr %s178, 4
      %s180 = scalar_lea.vmem %s0, %s179
      %p181 = scmp.lt.s32.totalorder %s14, 1
      %s182 = scalar_select %p181, %s14, 1
      %s183 = smul.addr %s182, 4
      %s184 = smul.addr %s183, 4
      %s185 = scalar_lea.vmem %s2, %s184
      %p186 = scmp.lt.s32.totalorder %s14, 1
      %s187 = scalar_select %p186, %s14, 1
      %s188 = smul.addr %s187, 16
      %s189 = smul.addr %s188, 4
      %s190 = scalar_lea.vmem %s3, %s189
      %v192 = vld [vmem:[%s185] sm:$0xf]
      %v193 = vld [vmem:[%s185 + $0x4] sm:$0xf]
      %v194 = vld [vmem:[%s185 + $0x8] sm:$0xf]
      %v195 = vld [vmem:[%s185 + $0xc] sm:$0xf]
      %v196 = vld [vmem:[%s1] sm:$0xf]
      loop: start=0, step=1, limit=16
      $region33: #{encoder_forward.10} parent=31 // loop_pre_header
        _
      $region34: #{encoder_forward.10} parent=31 // loop_header
        %s198 = sphi 0, %s202
        %p199 = scmp.ge.s32.totalorder %s198, 16
        %v203 = vphi 0.0, %v290
        %v204 = vphi 0.0, %v289
      $region35: #{encoder_forward.10} parent=31 // loop_header_branch
        %201 = sbr.rel (%p199) target = $region39
      $region36: #{encoder_forward.10} parent=31 // loop_body
        %p205 = scmp.eq.s32.totalorder %s14, 0
        %s206 = ssub.s32 15, %s198
        %s207 = scalar_select %p205, %s198, %s206
        %s208 = smul.u32 %s207, 4
        %s209 = scalar_lea.vmem %s180, %s208
        %v210 = vld [vmem:[%s209] sm:$0xf]
        %v211 = vpack.c.bf16 %v203, %v203
        %213 = vrot.lane.b32.xlu0 %v211, 32
        %v214 = vpop.permute.xlu0 %213
        %v219 = vunpack.c.l.b16 %v192
        %v220 = vunpack.c.l.b16 %v193
        %v221 = vunpack.c.l.b16 %v194
        %v222 = vunpack.c.l.b16 %v195
        %v223 = vpack.c.b16 %v220, %v219
        %v224 = vpack.c.b16 %v222, %v221
        %vm227 = vcmask 261120
        %v229 = vsel %vm227, %v214, 0
        %231 = vmatpush.bf16.msra.mxu0 0
        %232 = vmatpush.bf16.msra.mxu0 0
        %233 = vmatpush.bf16.msra.mxu0 0
        %234 = vmatpush.bf16.msra.mxu0 0
        %235 = vmatpush.bf16.msra.mxu0 0
        %236 = vmatpush.bf16.msra.mxu0 0
        %237 = vmatpush.bf16.msra.mxu0 %v224
        %238 = vmatpush.bf16.msra.mxu0 %v223
        %239 = vmatmul.bf16.gmra.mxu0 %v229
        %v240 = vpop.f32.mrf.mxu0
        %v241 = vadd.f32 0.0, %v240
        %v242 = vpop.f32.mrf.mxu0
        %243 = vdwg.mxu0
        %v244 = vadd.f32 %v210, %v241
        %v245 = vxor.u32 %v244, 2147483648
        %v246 = vmul.f32 %v245, 1.442695
        %v247 = vpow.pop %v246
        %v248 = vadd.f32 %v247, 1.0
        %v249 = vrcp.pop %v248
        %v250 = vmul.f32 %v248, %v249
        %v251 = vsub.f32 1.0, %v250
        %v252 = vmul.f32 %v249, %v251
        %v253 = vadd.f32 %v249, %v252
        %vm254 = vweird.f32 %v248
        %vm255 = vweird.f32 %v249
        %vm256 = vmor %vm254, %vm255
        %v257 = vsel %vm256, %v249, %v253
        %v258 = vand.u32 2147483647, %v248
        %vm259 = vcmp.eq.f32.partialorder %v258, 8.507059e+37
        %v260 = vand.u32 %v248, 2147483648
        %v261 = vor.u32 1.1754944e-38, %v260
        %v262 = vsel %vm259, %v261, %v257
        %v263 = vmul.f32 1.0, %v262
        %v264 = vtanh.pop %v244
        %v265 = vmul.f32 %v263, %v204
        %267 = vrot.lane.b32.xlu0 %v264, 64
        %v268 = vpop.permute.xlu0 %267
        %v270 = vmul.f32 %v263, %v268
        %272 = vrot.lane.b32.xlu0 %v270, 32
        %v273 = vpop.permute.xlu0 %272
        %v275 = vadd.f32 %v265, %v273
        %v276 = vtanh.pop %v275
        %278 = vrot.lane.b32.xlu0 %v276, 64
        %v279 = vpop.permute.xlu0 %278
        %v281 = vmul.f32 %v263, %v279
        %v282 = vstv %s207
        %vm283 = vcmp.lt.s32.totalorder %v282, %v196
        %v284 = vsel %vm283, 1, 0
        %285 = vset.pattern.permute.xlu0 0
        %286 = vperm.xlu0 %285, %v284
        %v287 = vpop.permute.xlu0 %286
        %vm288 = vcmp.eq.s32.totalorder %v287, 1
        %v289 = vsel %vm288, %v275, %v204
        %v290 = vsel %vm288, %v281, %v203
        %v291 = vsel %vm288, %v281, 0.0
        %293 = vrot.lane.b32.xlu0 %v291, 32
        %v294 = vpop.permute.xlu0 %293
        %s296 = scalar_lea.vmem %s190, %s208
        %vm297 = vcmask 257024
        %298 = vst.msk [vmem:[%s296] sm:$0xf] %vm297, %v294
      $region37: #{encoder_forward.10} parent=31 // loop_footer
        %s202 = sadd.s32 1, %s198
      $region38: #{encoder_forward.10} parent=31 // loop_footer_branch
        %197 = sbr.rel target = $region34
      $region39: #{encoder_forward.10} parent=31 // loop_exit
        _
      %p299 = scmp.lt.s32.totalorder %s14, 1
      %s300 = scalar_select %p299, %s14, 1
      %s301 = smul.addr %s300, 16
      %s302 = smul.addr %s301, 4
      %s303 = scalar_lea.vmem %s3, %s302
      // Predicated region
      $region40: #{encoder_forward.10} parent=31 // pred_check
        %p304 = pneg %p105
      $region41: #{encoder_forward.10} parent=31 // pred_check_branch
        %306 = sbr.rel (%p304) target = $region43
      $region42: #{encoder_forward.10} parent=31 // pred_region
        _
      $region43: #{encoder_forward.10} parent=31 // pred_fallthru
        _
    $region32: #{encoder_forward.10} parent=5 // pred_fallthru
      _
    %p307 = scmp.le.s32.totalorder 2, %s9
    // Predicated region
    $region44: #{encoder_forward.10} parent=5 // pred_check
      %p308 = pneg %p307
    $region45: #{encoder_forward.10} parent=5 // pred_check_branch
      %310 = sbr.rel (%p308) target = $region47
    $region46: #{encoder_forward.10} parent=5 // pred_region
      %s311 = ssub.s32 %s9, 2
      // Predicated region
      $region48: #{encoder_forward.10} parent=46 // pred_check
        %p312 = pneg %p111
      $region49: #{encoder_forward.10} parent=46 // pred_check_branch
        %314 = sbr.rel (%p312) target = $region51
      $region50: #{encoder_forward.10} parent=46 // pred_region
        %p315 = scmp.lt.s32.totalorder %s15, 1
        %s316 = scalar_select %p315, %s15, 1
        %s317 = smul.addr %s316, 16
        %s318 = smul.addr %s317, 4
        %s319 = scalar_lea.vmem %s3, %s318
      $region51: #{encoder_forward.10} parent=46 // pred_fallthru
        _
    $region47: #{encoder_forward.10} parent=5 // pred_fallthru
      _
  $region6: #{encoder_forward.10} parent=0 // loop_footer
    %s13 = sadd.s32 1, %s9
  $region7: #{encoder_forward.10} parent=0 // loop_footer_branch
    %8 = sbr.rel target = $region3
  $region8: #{encoder_forward.10} parent=0 // loop_exit
    _

// kernel: encoder_forward.14
$region0: #{encoder_forward.14}
  #allocation0 [shape = 'u32[]', space=smem, size = 0x4, offset = 0x4, fixed_abs, tag = 'smem constant byte address 0x4 - core index']
  #allocation1 [shape = 'u32[72,128]{1,0:T(1,128)}', space=vmem, size = 0x9000, scoped, tag = 'internal scratch']
  %s0 = inlined_call_operand.vmem [shape: f32[2,4,4,128], index: 0, kind: input, shape index: {}]
  %s1 = inlined_call_operand.vmem [shape: s32[4,1], index: 1, kind: input, shape index: {}]
  %s2 = inlined_call_operand.vmem [shape: bf16[2,32,128], index: 2, kind: input, shape index: {}]
  %s3 = inlined_call_operand.vmem [shape: f32[2,4,4,32], index: 3, kind: output, shape index: {}]
  %s4 = sld [smem:[#allocation0]]
  $region52: #{encoder_forward.14} parent=0
    _
  %s6 = ssub.s32 1, %s4
  %s7 = scalar_select 0, %s6, %s4
  loop: start=0, step=1, limit=4
  $region2: #{encoder_forward.14} parent=0 // loop_pre_header
    _
  $region3: #{encoder_forward.14} parent=0 // loop_header
    %s9 = sphi 0, %s13
    %p10 = scmp.ge.s32.totalorder %s9, 4
    %s19 = sphi 0, %s21
    %s22 = sphi 0, %s19
    %s23 = sphi 0, %s22
    %s39 = sphi 0, %s23
    %s43 = sphi 0, %s43
    %s45 = sphi 0, %s43
    %s46 = sphi 0, %s45
    %s60 = sphi 0, %s46
    %s66 = sphi 0, %s68
    %s69 = sphi 0, %s66
    %s70 = sphi 0, %s69
    %s86 = sphi 0, %s70
    %s92 = sphi 0, %s94
    %s95 = sphi 0, %s92
    %s96 = sphi 0, %s95
    %s112 = sphi 0, %s96
  $region4: #{encoder_forward.14} parent=0 // loop_header_branch
    %12 = sbr.rel (%p10) target = $region8
  $region5: #{encoder_forward.14} parent=0 // loop_body
    %s14 = ssub.s32 %s9, 1
    %s15 = ssub.s32 %s9, 2
    %s16 = sadd.s32 %s9, 1
    %s17 = ssub.s32 %s9, %s16
    %p18 = scmp.eq.s32.totalorder %s17, 0
    %s20 = sadd.s32 %s19, 1
    %s21 = scalar_select %p18, %s19, %s20
    %p24 = pneg %p18
    %p25 = scmp.eq.s32.totalorder %s9, 1
    %p26 = por %p24, %p25
    %p27 = scmp.ne.s32.totalorder %s19, %s22
    %p28 = scmp.eq.s32.totalorder %s9, 0
    %p29 = por %p27, %p28
    %p30 = scmp.ne.s32.totalorder %s19, %s22
    %p31 = scmp.eq.s32.totalorder %s14, 1
    %p32 = por %p30, %p31
    %p33 = scmp.ne.s32.totalorder %s22, %s23
    %p34 = scmp.eq.s32.totalorder %s14, 0
    %p35 = por %p33, %p34
    %p36 = scmp.ne.s32.totalorder %s22, %s23
    %p37 = scmp.eq.s32.totalorder %s15, 1
    %p38 = por %p36, %p37
    %p40 = scmp.ne.s32.totalorder %s23, %s39
    %p41 = scmp.eq.s32.totalorder %s15, 0
    %p42 = por %p40, %p41
    %s44 = sadd.s32 %s43, 1
    %p47 = scmp.eq.s32.totalorder %s9, 1
    %p48 = scmp.ne.s32.totalorder %s43, %s45
    %p49 = scmp.eq.s32.totalorder %s9, 0
    %p50 = por %p48, %p49
    %p51 = scmp.ne.s32.totalorder %s43, %s45
    %p52 = scmp.eq.s32.totalorder %s14, 1
    %p53 = por %p51, %p52
    %p54 = scmp.ne.s32.totalorder %s45, %s46
    %p55 = scmp.eq.s32.totalorder %s14, 0
    %p56 = por %p54, %p55
    %p57 = scmp.ne.s32.totalorder %s45, %s46
    %p58 = scmp.eq.s32.totalorder %s15, 1
    %p59 = por %p57, %p58
    %p61 = scmp.ne.s32.totalorder %s46, %s60
    %p62 = scmp.eq.s32.totalorder %s15, 0
    %p63 = por %p61, %p62
    %s64 = ssub.s32 %s9, %s16
    %p65 = scmp.eq.s32.totalorder %s64, 0
    %s67 = sadd.s32 %s66, 1
    %s68 = scalar_select %p65, %s66, %s67
    %p71 = pneg %p65
    %p72 = scmp.eq.s32.totalorder %s9, 1
    %p73 = por %p71, %p72
    %p74 = scmp.ne.s32.totalorder %s66, %s69
    %p75 = scmp.eq.s32.totalorder %s9, 0
    %p76 = por %p74, %p75
    %p77 = scmp.ne.s32.totalorder %s66, %s69
    %p78 = scmp.eq.s32.totalorder %s14, 1
    %p79 = por %p77, %p78
    %p80 = scmp.ne.s32.totalorder %s69, %s70
    %p81 = scmp.eq.s32.totalorder %s14, 0
    %p82 = por %p80, %p81
    %p83 = scmp.ne.s32.totalorder %s69, %s70
    %p84 = scmp.eq.s32.totalorder %s15, 1
    %p85 = por %p83, %p84
    %p87 = scmp.ne.s32.totalorder %s70, %s86
    %p88 = scmp.eq.s32.totalorder %s15, 0
    %p89 = por %p87, %p88
    %s90 = ssub.s32 %s9, %s16
    %p91 = scmp.eq.s32.totalorder %s90, 0
    %s93 = sadd.s32 %s92, 1
    %s94 = scalar_select %p91, %s92, %s93
    %p97 = pneg %p91
    %p98 = scmp.eq.s32.totalorder %s9, 1
    %p99 = por %p97, %p98
    %p100 = scmp.ne.s32.totalorder %s92, %s95
    %p101 = scmp.eq.s32.totalorder %s9, 0
    %p102 = por %p100, %p101
    %p103 = scmp.ne.s32.totalorder %s92, %s95
    %p104 = scmp.eq.s32.totalorder %s14, 1
    %p105 = por %p103, %p104
    %p106 = scmp.ne.s32.totalorder %s95, %s96
    %p107 = scmp.eq.s32.totalorder %s14, 0
    %p108 = por %p106, %p107
    %p109 = scmp.ne.s32.totalorder %s95, %s96
    %p110 = scmp.eq.s32.totalorder %s15, 1
    %p111 = por %p109, %p110
    %p113 = scmp.ne.s32.totalorder %s96, %s112
    %p114 = scmp.eq.s32.totalorder %s15, 0
    %p115 = por %p113, %p114
    %p116 = scmp.le.s32.totalorder 1, %s9
    %p117 = scmp.lt.s32.totalorder %s9, 3
    %p118 = pnand %p116, %p117
    %p119 = pneg %p118
    // Predicated region
    $region9: #{encoder_forward.14} parent=5 // pred_check
      _
    $region10: #{encoder_forward.14} parent=5 // pred_check_branch
      %121 = sbr.rel (%p118) target = $region12
    $region11: #{encoder_forward.14} parent=5 // pred_region
      %s122 = ssub.s32 %s9, 1
      // Predicated region
      $region13: #{encoder_forward.14} parent=11 // pred_check
        %p123 = pneg %p56
      $region14: #{encoder_forward.14} parent=11 // pred_check_branch
        %125 = sbr.rel (%p123) target = $region16
      $region15: #{encoder_forward.14} parent=11 // pred_region
        _
      $region16: #{encoder_forward.14} parent=11 // pred_fallthru
        _
    $region12: #{encoder_forward.14} parent=5 // pred_fallthru
      _
    %p126 = scmp.lt.s32.totalorder %s9, 2
    // Predicated region
    $region17: #{encoder_forward.14} parent=5 // pred_check
      %p127 = pneg %p126
    $region18: #{encoder_forward.14} parent=5 // pred_check_branch
      %129 = sbr.rel (%p127) target = $region20
    $region19: #{encoder_forward.14} parent=5 // pred_region
      // Predicated region
      $region21: #{encoder_forward.14} parent=19 // pred_check
        %p130 = pneg %p29
      $region22: #{encoder_forward.14} parent=19 // pred_check_branch
        %132 = sbr.rel (%p130) target = $region24
      $region23: #{encoder_forward.14} parent=19 // pred_region
        %p133 = scmp.lt.s32.totalorder %s9, 1
        %s134 = scalar_select %p133, %s9, 1
        %s135 = smul.addr %s134, 4
        %s136 = smul.addr %s135, 4
        %s137 = scalar_lea.vmem %s0, %s136
      $region24: #{encoder_forward.14} parent=19 // pred_fallthru
        _
      // Predicated region
      $region25: #{encoder_forward.14} parent=19 // pred_check
        %p138 = pneg %p76
      $region26: #{encoder_forward.14} parent=19 // pred_check_branch
        %140 = sbr.rel (%p138) target = $region28
      $region27: #{encoder_forward.14} parent=19 // pred_region
        %p141 = scmp.lt.s32.totalorder %s9, 1
        %s142 = scalar_select %p141, %s9, 1
        %s143 = smul.addr %s142, 4
        %s144 = smul.addr %s143, 4
        %s145 = scalar_lea.vmem %s2, %s144
      $region28: #{encoder_forward.14} parent=19 // pred_fallthru
        _
    $region20: #{encoder_forward.14} parent=5 // pred_fallthru
      _
    %p146 = scmp.le.s32.totalorder 1, %s9
    %p147 = scmp.lt.s32.totalorder %s9, 3
    %p148 = pnand %p146, %p147
    %p149 = pneg %p148
    // Predicated region
    $region29: #{encoder_forward.14} parent=5 // pred_check
      _
    $region30: #{encoder_forward.14} parent=5 // pred_check_branch
      %151 = sbr.rel (%p148) target = $region32
    $region31: #{encoder_forward.14} parent=5 // pred_region
      %s152 = ssub.s32 %s9, 1
      %p153 = scmp.lt.s32.totalorder %s14, 1
      %s154 = scalar_select %p153, %s14, 1
      %s155 = smul.addr %s154, 4
      %s156 = smul.addr %s155, 4
      %s157 = scalar_lea.vmem %s0, %s156
      %p158 = pneg %p35
      %p159 = pneg %p32
      %p160 = pneg %p56
      %p161 = pneg %p53
      %p162 = scmp.lt.s32.totalorder %s14, 1
      %s163 = scalar_select %p162, %s14, 1
      %s164 = smul.addr %s163, 4
      %s165 = smul.addr %s164, 4
      %s166 = scalar_lea.vmem %s2, %s165
      %p167 = pneg %p82
      %p168 = pneg %p79
      %p169 = pneg %p108
      %p170 = pneg %p105
      %p171 = scmp.lt.s32.totalorder %s14, 1
      %s172 = scalar_select %p171, %s14, 1
      %s173 = smul.addr %s172, 4
      %s174 = smul.addr %s173, 4
      %s175 = scalar_lea.vmem %s3, %s174
      %p176 = scmp.lt.s32.totalorder %s14, 1
      %s177 = scalar_select %p176, %s14, 1
      %s178 = smul.addr %s177, 4
      %s179 = smul.addr %s178, 4
      %s180 = scalar_lea.vmem %s0, %s179
      %p181 = scmp.lt.s32.totalorder %s14, 1
      %s182 = scalar_select %p181, %s14, 1
      %s183 = smul.addr %s182, 4
      %s184 = smul.addr %s183, 4
      %s185 = scalar_lea.vmem %s2, %s184
      %p186 = scmp.lt.s32.totalorder %s14, 1
      %s187 = scalar_select %p186, %s14, 1
      %s188 = smul.addr %s187, 4
      %s189 = smul.addr %s188, 4
      %s190 = scalar_lea.vmem %s3, %s189
      %v192 = vld [vmem:[%s185] sm:$0xf]
      %v193 = vld [vmem:[%s185 + $0x4] sm:$0xf]
      %v194 = vld [vmem:[%s185 + $0x8] sm:$0xf]
      %v195 = vld [vmem:[%s185 + $0xc] sm:$0xf]
      %v196 = vld [vmem:[%s1] sm:$0xf]
      loop: start=0, step=1, limit=4
      $region33: #{encoder_forward.14} parent=31 // loop_pre_header
        _
      $region34: #{encoder_forward.14} parent=31 // loop_header
        %s198 = sphi 0, %s202
        %p199 = scmp.ge.s32.totalorder %s198, 4
        %v203 = vphi 0.0, %v290
        %v204 = vphi 0.0, %v289
      $region35: #{encoder_forward.14} parent=31 // loop_header_branch
        %201 = sbr.rel (%p199) target = $region39
      $region36: #{encoder_forward.14} parent=31 // loop_body
        %p205 = scmp.eq.s32.totalorder %s14, 0
        %s206 = ssub.s32 3, %s198
        %s207 = scalar_select %p205, %s198, %s206
        %s208 = smul.u32 %s207, 4
        %s209 = scalar_lea.vmem %s180, %s208
        %v210 = vld [vmem:[%s209] sm:$0xf]
        %v211 = vpack.c.bf16 %v203, %v203
        %213 = vrot.lane.b32.xlu0 %v211, 32
        %v214 = vpop.permute.xlu0 %213
        %v219 = vunpack.c.l.b16 %v192
        %v220 = vunpack.c.l.b16 %v193
        %v221 = vunpack.c.l.b16 %v194
        %v222 = vunpack.c.l.b16 %v195
        %v223 = vpack.c.b16 %v220, %v219
        %v224 = vpack.c.b16 %v222, %v221
        %vm227 = vcmask 261120
        %v229 = vsel %vm227, %v214, 0
        %231 = vmatpush.bf16.msra.mxu0 0
        %232 = vmatpush.bf16.msra.mxu0 0
        %233 = vmatpush.bf16.msra.mxu0 0
        %234 = vmatpush.bf16.msra.mxu0 0
        %235 = vmatpush.bf16.msra.mxu0 0
        %236 = vmatpush.bf16.msra.mxu0 0
        %237 = vmatpush.bf16.msra.mxu0 %v224
        %238 = vmatpush.bf16.msra.mxu0 %v223
        %239 = vmatmul.bf16.gmra.mxu0 %v229
        %v240 = vpop.f32.mrf.mxu0
        %v241 = vadd.f32 0.0, %v240
        %v242 = vpop.f32.mrf.mxu0
        %243 = vdwg.mxu0
        %v244 = vadd.f32 %v210, %v241
        %v245 = vxor.u32 %v244, 2147483648
        %v246 = vmul.f32 %v245, 1.442695
        %v247 = vpow.pop %v246
        %v248 = vadd.f32 %v247, 1.0
        %v249 = vrcp.pop %v248
        %v250 = vmul.f32 %v248, %v249
        %v251 = vsub.f32 1.0, %v250
        %v252 = vmul.f32 %v249, %v251
        %v253 = vadd.f32 %v249, %v252
        %vm254 = vweird.f32 %v248
        %vm255 = vweird.f32 %v249
        %vm256 = vmor %vm254, %vm255
        %v257 = vsel %vm256, %v249, %v253
        %v258 = vand.u32 2147483647, %v248
        %vm259 = vcmp.eq.f32.partialorder %v258, 8.507059e+37
        %v260 = vand.u32 %v248, 2147483648
        %v261 = vor.u32 1.1754944e-38, %v260
        %v262 = vsel %vm259, %v261, %v257
        %v263 = vmul.f32 1.0, %v262
        %v264 = vtanh.pop %v244
        %v265 = vmul.f32 %v263, %v204
        %267 = vrot.lane.b32.xlu0 %v264, 64
        %v268 = vpop.permute.xlu0 %267
        %v270 = vmul.f32 %v263, %v268
        %272 = vrot.lane.b32.xlu0 %v270, 32
        %v273 = vpop.permute.xlu0 %272
        %v275 = vadd.f32 %v265, %v273
        %v276 = vtanh.pop %v275
        %278 = vrot.lane.b32.xlu0 %v276, 64
        %v279 = vpop.permute.xlu0 %278
        %v281 = vmul.f32 %v263, %v279
        %v282 = vstv %s207
        %vm283 = vcmp.lt.s32.totalorder %v282, %v196
        %v284 = vsel %vm283, 1, 0
        %285 = vset.pattern.permute.xlu0 0
        %286 = vperm.xlu0 %285, %v284
        %v287 = vpop.permute.xlu0 %286
        %vm288 = vcmp.eq.s32.totalorder %v287, 1
        %v289 = vsel %vm288, %v275, %v204
        %v290 = vsel %vm288, %v281, %v203
        %v291 = vsel %vm288, %v281, 0.0
        %293 = vrot.lane.b32.xlu0 %v291, 32
        %v294 = vpop.permute.xlu0 %293
        %s296 = scalar_lea.vmem %s190, %s208
        %vm297 = vcmask 257024
        %298 = vst.msk [vmem:[%s296] sm:$0xf] %vm297, %v294
      $region37: #{encoder_forward.14} parent=31 // loop_footer
        %s202 = sadd.s32 1, %s198
      $region38: #{encoder_forward.14} parent=31 // loop_footer_branch
        %197 = sbr.rel target = $region34
      $region39: #{encoder_forward.14} parent=31 // loop_exit
        _
      %p299 = scmp.lt.s32.totalorder %s14, 1
      %s300 = scalar_select %p299, %s14, 1
      %s301 = smul.addr %s300, 4
      %s302 = smul.addr %s301, 4
      %s303 = scalar_lea.vmem %s3, %s302
      // Predicated region
      $region40: #{encoder_forward.14} parent=31 // pred_check
        %p304 = pneg %p105
      $region41: #{encoder_forward.14} parent=31 // pred_check_branch
        %306 = sbr.rel (%p304) target = $region43
      $region42: #{encoder_forward.14} parent=31 // pred_region
        _
      $region43: #{encoder_forward.14} parent=31 // pred_fallthru
        _
    $region32: #{encoder_forward.14} parent=5 // pred_fallthru
      _
    %p307 = scmp.le.s32.totalorder 2, %s9
    // Predicated region
    $region44: #{encoder_forward.14} parent=5 // pred_check
      %p308 = pneg %p307
    $region45: #{encoder_forward.14} parent=5 // pred_check_branch
      %310 = sbr.rel (%p308) target = $region47
    $region46: #{encoder_forward.14} parent=5 // pred_region
      %s311 = ssub.s32 %s9, 2
      // Predicated region
      $region48: #{encoder_forward.14} parent=46 // pred_check
        %p312 = pneg %p111
      $region49: #{encoder_forward.14} parent=46 // pred_check_branch
        %314 = sbr.rel (%p312) target = $region51
      $region50: #{encoder_forward.14} parent=46 // pred_region
        %p315 = scmp.lt.s32.totalorder %s15, 1
        %s316 = scalar_select %p315, %s15, 1
        %s317 = smul.addr %s316, 4
        %s318 = smul.addr %s317, 4
        %s319 = scalar_lea.vmem %s3, %s318
      $region51: #{encoder_forward.14} parent=46 // pred_fallthru
        _
    $region47: #{encoder_forward.14} parent=5 // pred_fallthru
      _
  $region6: #{encoder_forward.14} parent=0 // loop_footer
    %s13 = sadd.s32 1, %s9
  $region7: #{encoder_forward.14} parent=0 // loop_footer_branch
    %8 = sbr.rel target = $region3
  $region8: #{encoder_forward.14} parent=0 // loop_exit
    _

// kernel: encoder_forward.15
$region0: #{encoder_forward.15}
  #allocation0 [shape = 'u32[]', space=smem, size = 0x4, offset = 0x4, fixed_abs, tag = 'smem constant byte address 0x4 - core index']
  #allocation1 [shape = 'u32[72,128]{1,0:T(1,128)}', space=vmem, size = 0x9000, scoped, tag = 'internal scratch']
  %s0 = inlined_call_operand.vmem [shape: f32[8,128], index: 0, kind: input, shape index: {}]
  %s1 = inlined_call_operand.vmem [shape: bf16[2,128,128], index: 1, kind: input, shape index: {}]
  %s2 = inlined_call_operand.vmem [shape: f32[2,1,128], index: 2, kind: input, shape index: {}]
  %s3 = inlined_call_operand.vmem [shape: f32[2,8,128], index: 3, kind: output, shape index: {}]
  %s4 = sld [smem:[#allocation0]]
  $region45: #{encoder_forward.15} parent=0
    _
  %s6 = ssub.s32 1, %s4
  %s7 = scalar_select 0, %s6, %s4
  loop: start=0, step=1, limit=4
  $region2: #{encoder_forward.15} parent=0 // loop_pre_header
    _
  $region3: #{encoder_forward.15} parent=0 // loop_header
    %s9 = sphi 0, %s13
    %p10 = scmp.ge.s32.totalorder %s9, 4
    %s17 = sphi 0, %s17
    %s19 = sphi 0, %s17
    %s20 = sphi 0, %s19
    %s34 = sphi 0, %s20
    %s40 = sphi 0, %s42
    %s43 = sphi 0, %s40
    %s44 = sphi 0, %s43
    %s60 = sphi 0, %s44
    %s66 = sphi 0, %s68
    %s69 = sphi 0, %s66
    %s70 = sphi 0, %s69
    %s86 = sphi 0, %s70
    %s92 = sphi 0, %s94
    %s95 = sphi 0, %s92
    %s96 = sphi 0, %s95
    %s112 = sphi 0, %s96
  $region4: #{encoder_forward.15} parent=0 // loop_header_branch
    %12 = sbr.rel (%p10) target = $region8
  $region5: #{encoder_forward.15} parent=0 // loop_body
    %s14 = ssub.s32 %s9, 1
    %s15 = ssub.s32 %s9, 2
    %s16 = sadd.s32 %s9, 1
    %s18 = sadd.s32 %s17, 1
    %p21 = scmp.eq.s32.totalorder %s9, 1
    %p22 = scmp.ne.s32.totalorder %s17, %s19
    %p23 = scmp.eq.s32.totalorder %s9, 0
    %p24 = por %p22, %p23
    %p25 = scmp.ne.s32.totalorder %s17, %s19
    %p26 = scmp.eq.s32.totalorder %s14, 1
    %p27 = por %p25, %p26
    %p28 = scmp.ne.s32.totalorder %s19, %s20
    %p29 = scmp.eq.s32.totalorder %s14, 0
    %p30 = por %p28, %p29
    %p31 = scmp.ne.s32.totalorder %s19, %s20
    %p32 = scmp.eq.s32.totalorder %s15, 1
    %p33 = por %p31, %p32
    %p35 = scmp.ne.s32.totalorder %s20, %s34
    %p36 = scmp.eq.s32.totalorder %s15, 0
    %p37 = por %p35, %p36
    %s38 = ssub.s32 %s9, %s16
    %p39 = scmp.eq.s32.totalorder %s38, 0
    %s41 = sadd.s32 %s40, 1
    %s42 = scalar_select %p39, %s40, %s41
    %p45 = pneg %p39
    %p46 = scmp.eq.s32.totalorder %s9, 1
    %p47 = por %p45, %p46
    %p48 = scmp.ne.s32.totalorder %s40, %s43
    %p49 = scmp.eq.s32.totalorder %s9, 0
    %p50 = por %p48, %p49
    %p51 = scmp.ne.s32.totalorder %s40, %s43
    %p52 = scmp.eq.s32.totalorder %s14, 1
    %p53 = por %p51, %p52
    %p54 = scmp.ne.s32.totalorder %s43, %s44
    %p55 = scmp.eq.s32.totalorder %s14, 0
    %p56 = por %p54, %p55
    %p57 = scmp.ne.s32.totalorder %s43, %s44
    %p58 = scmp.eq.s32.totalorder %s15, 1
    %p59 = por %p57, %p58
    %p61 = scmp.ne.s32.totalorder %s44, %s60
    %p62 = scmp.eq.s32.totalorder %s15, 0
    %p63 = por %p61, %p62
    %s64 = ssub.s32 %s9, %s16
    %p65 = scmp.eq.s32.totalorder %s64, 0
    %s67 = sadd.s32 %s66, 1
    %s68 = scalar_select %p65, %s66, %s67
    %p71 = pneg %p65
    %p72 = scmp.eq.s32.totalorder %s9, 1
    %p73 = por %p71, %p72
    %p74 = scmp.ne.s32.totalorder %s66, %s69
    %p75 = scmp.eq.s32.totalorder %s9, 0
    %p76 = por %p74, %p75
    %p77 = scmp.ne.s32.totalorder %s66, %s69
    %p78 = scmp.eq.s32.totalorder %s14, 1
    %p79 = por %p77, %p78
    %p80 = scmp.ne.s32.totalorder %s69, %s70
    %p81 = scmp.eq.s32.totalorder %s14, 0
    %p82 = por %p80, %p81
    %p83 = scmp.ne.s32.totalorder %s69, %s70
    %p84 = scmp.eq.s32.totalorder %s15, 1
    %p85 = por %p83, %p84
    %p87 = scmp.ne.s32.totalorder %s70, %s86
    %p88 = scmp.eq.s32.totalorder %s15, 0
    %p89 = por %p87, %p88
    %s90 = ssub.s32 %s9, %s16
    %p91 = scmp.eq.s32.totalorder %s90, 0
    %s93 = sadd.s32 %s92, 1
    %s94 = scalar_select %p91, %s92, %s93
    %p97 = pneg %p91
    %p98 = scmp.eq.s32.totalorder %s9, 1
    %p99 = por %p97, %p98
    %p100 = scmp.ne.s32.totalorder %s92, %s95
    %p101 = scmp.eq.s32.totalorder %s9, 0
    %p102 = por %p100, %p101
    %p103 = scmp.ne.s32.totalorder %s92, %s95
    %p104 = scmp.eq.s32.totalorder %s14, 1
    %p105 = por %p103, %p104
    %p106 = scmp.ne.s32.totalorder %s95, %s96
    %p107 = scmp.eq.s32.totalorder %s14, 0
    %p108 = por %p106, %p107
    %p109 = scmp.ne.s32.totalorder %s95, %s96
    %p110 = scmp.eq.s32.totalorder %s15, 1
    %p111 = por %p109, %p110
    %p113 = scmp.ne.s32.totalorder %s96, %s112
    %p114 = scmp.eq.s32.totalorder %s15, 0
    %p115 = por %p113, %p114
    %p116 = scmp.le.s32.totalorder 1, %s9
    %p117 = scmp.lt.s32.totalorder %s9, 3
    %p118 = pnand %p116, %p117
    %p119 = pneg %p118
    // Predicated region
    $region9: #{encoder_forward.15} parent=5 // pred_check
      _
    $region10: #{encoder_forward.15} parent=5 // pred_check_branch
      %121 = sbr.rel (%p118) target = $region12
    $region11: #{encoder_forward.15} parent=5 // pred_region
      %s122 = ssub.s32 %s9, 1
      // Predicated region
      $region13: #{encoder_forward.15} parent=11 // pred_check
        %p123 = pneg %p30
      $region14: #{encoder_forward.15} parent=11 // pred_check_branch
        %125 = sbr.rel (%p123) target = $region16
      $region15: #{encoder_forward.15} parent=11 // pred_region
        _
      $region16: #{encoder_forward.15} parent=11 // pred_fallthru
        _
    $region12: #{encoder_forward.15} parent=5 // pred_fallthru
      _
    %p126 = scmp.lt.s32.totalorder %s9, 2
    // Predicated region
    $region17: #{encoder_forward.15} parent=5 // pred_check
      %p127 = pneg %p126
    $region18: #{encoder_forward.15} parent=5 // pred_check_branch
      %129 = sbr.rel (%p127) target = $region20
    $region19: #{encoder_forward.15} parent=5 // pred_region
      // Predicated region
      $region21: #{encoder_forward.15} parent=19 // pred_check
        %p130 = pneg %p50
      $region22: #{encoder_forward.15} parent=19 // pred_check_branch
        %132 = sbr.rel (%p130) target = $region24
      $region23: #{encoder_forward.15} parent=19 // pred_region
        %p133 = scmp.lt.s32.totalorder %s9, 1
        %s134 = scalar_select %p133, %s9, 1
        %s135 = smul.addr %s134, 16
        %s136 = smul.addr %s135, 4
        %s137 = scalar_lea.vmem %s1, %s136
      $region24: #{encoder_forward.15} parent=19 // pred_fallthru
        _
      // Predicated region
      $region25: #{encoder_forward.15} parent=19 // pred_check
        %p138 = pneg %p76
      $region26: #{encoder_forward.15} parent=19 // pred_check_branch
        %140 = sbr.rel (%p138) target = $region28
      $region27: #{encoder_forward.15} parent=19 // pred_region
        %p141 = scmp.lt.s32.totalorder %s9, 1
        %s142 = scalar_select %p141, %s9, 1
        %s143 = scalar_lea.vmem %s2, %s142
      $region28: #{encoder_forward.15} parent=19 // pred_fallthru
        _
    $region20: #{encoder_forward.15} parent=5 // pred_fallthru
      _
    %p144 = scmp.le.s32.totalorder 1, %s9
    %p145 = scmp.lt.s32.totalorder %s9, 3
    %p146 = pnand %p144, %p145
    %p147 = pneg %p146
    // Predicated region
    $region29: #{encoder_forward.15} parent=5 // pred_check
      _
    $region30: #{encoder_forward.15} parent=5 // pred_check_branch
      %149 = sbr.rel (%p146) target = $region32
    $region31: #{encoder_forward.15} parent=5 // pred_region
      %s150 = ssub.s32 %s9, 1
      %p151 = pneg %p30
      %p152 = pneg %p27
      %p153 = scmp.lt.s32.totalorder %s14, 1
      %s154 = scalar_select %p153, %s14, 1
      %s155 = smul.addr %s154, 16
      %s156 = smul.addr %s155, 4
      %s157 = scalar_lea.vmem %s1, %s156
      %p158 = pneg %p56
      %p159 = pneg %p53
      %p160 = scmp.lt.s32.totalorder %s14, 1
      %s161 = scalar_select %p160, %s14, 1
      %s162 = scalar_lea.vmem %s2, %s161
      %p163 = pneg %p82
      %p164 = pneg %p79
      %p165 = pneg %p108
      %p166 = pneg %p105
      %p167 = scmp.lt.s32.totalorder %s14, 1
      %s168 = scalar_select %p167, %s14, 1
      %s169 = smul.addr %s168, 8
      %s170 = scalar_lea.vmem %s3, %s169
      %p171 = scmp.lt.s32.totalorder %s14, 1
      %s172 = scalar_select %p171, %s14, 1
      %s173 = smul.addr %s172, 16
      %s174 = smul.addr %s173, 4
      %s175 = scalar_lea.vmem %s1, %s174
      %p176 = scmp.lt.s32.totalorder %s14, 1
      %s177 = scalar_select %p176, %s14, 1
      %s178 = scalar_lea.vmem %s2, %s177
      %p179 = scmp.lt.s32.totalorder %s14, 1
      %s180 = scalar_select %p179, %s14, 1
      %s181 = smul.addr %s180, 8
      %s182 = scalar_lea.vmem %s3, %s181
      %v183 = vld [vmem:[%s0] sm:$0xff]
      %v184 = vpack.c.bf16 %v183, %v183
      %v185 = vld [vmem:[%s175] sm:$0xf]
      %v186 = vld [vmem:[%s175 + $0x4] sm:$0xf]
      %v187 = vld [vmem:[%s175 + $0x8] sm:$0xf]
      %v188 = vld [vmem:[%s175 + $0xc] sm:$0xf]
      %v189 = vld [vmem:[%s175 + $0x10] sm:$0xf]
      %v190 = vld [vmem:[%s175 + $0x14] sm:$0xf]
      %v191 = vld [vmem:[%s175 + $0x18] sm:$0xf]
      %v192 = vld [vmem:[%s175 + $0x1c] sm:$0xf]
      %v193 = vld [vmem:[%s175 + $0x20] sm:$0xf]
      %v194 = vld [vmem:[%s175 + $0x24] sm:$0xf]
      %v195 = vld [vmem:[%s175 + $0x28] sm:$0xf]
      %v196 = vld [vmem:[%s175 + $0x2c] sm:$0xf]
      %v197 = vld [vmem:[%s175 + $0x30] sm:$0xf]
      %v198 = vld [vmem:[%s175 + $0x34] sm:$0xf]
      %v199 = vld [vmem:[%s175 + $0x38] sm:$0xf]
      %v200 = vld [vmem:[%s175 + $0x3c] sm:$0xf]
      %v201 = vld [vmem:[%s178] sm:$0x1]
      %v203 = vperm.slane %v201, 0
      %v221 = vunpack.c.l.b16 %v185
      %v222 = vunpack.c.l.b16 %v186
      %v223 = vunpack.c.l.b16 %v187
      %v224 = vunpack.c.l.b16 %v188
      %v225 = vunpack.c.l.b16 %v189
      %v226 = vunpack.c.l.b16 %v190
      %v227 = vunpack.c.l.b16 %v191
      %v228 = vunpack.c.l.b16 %v192
      %v229 = vunpack.c.l.b16 %v193
      %v230 = vunpack.c.l.b16 %v194
      %v231 = vunpack.c.l.b16 %v195
      %v232 = vunpack.c.l.b16 %v196
      %v233 = vunpack.c.l.b16 %v197
      %v234 = vunpack.c.l.b16 %v198
      %v235 = vunpack.c.l.b16 %v199
      %v236 = vunpack.c.l.b16 %v200
      %v237 = vpack.c.b16 %v222, %v221
      %v238 = vpack.c.b16 %v224, %v223
      %v239 = vpack.c.b16 %v226, %v225
      %v240 = vpack.c.b16 %v228, %v227
      %v241 = vpack.c.b16 %v230, %v229
      %v242 = vpack.c.b16 %v232, %v231
      %v243 = vpack.c.b16 %v234, %v233
      %v244 = vpack.c.b16 %v236, %v235
      %253 = vmatpush.bf16.msra.mxu0 %v244
      %254 = vmatpush.bf16.msra.mxu0 %v243
      %255 = vmatpush.bf16.msra.mxu0 %v242
      %256 = vmatpush.bf16.msra.mxu0 %v241
      %257 = vmatpush.bf16.msra.mxu0 %v240
      %258 = vmatpush.bf16.msra.mxu0 %v239
      %259 = vmatpush.bf16.msra.mxu0 %v238
      %260 = vmatpush.bf16.msra.mxu0 %v237
      %261 = vmatmul.bf16.gmra.mxu0 %v184
      %v262 = vpop.f32.mrf.mxu0
      %v263 = vadd.f32 %v203, %v262
      %v264 = vpop.f32.mrf.mxu0
      %265 = vdwg.mxu0
      %266 = vst [vmem:[%s182] sm:$0xff] %v263
      %p267 = scmp.lt.s32.totalorder %s14, 1
      %s268 = scalar_select %p267, %s14, 1
      %s269 = smul.addr %s268, 8
      %s270 = scalar_lea.vmem %s3, %s269
      // Predicated region
      $region33: #{encoder_forward.15} parent=31 // pred_check
        %p271 = pneg %p105
      $region34: #{encoder_forward.15} parent=31 // pred_check_branch
        %273 = sbr.rel (%p271) target = $region36
      $region35: #{encoder_forward.15} parent=31 // pred_region
        _
      $region36: #{encoder_forward.15} parent=31 // pred_fallthru
        _
    $region32: #{encoder_forward.15} parent=5 // pred_fallthru
      _
    %p274 = scmp.le.s32.totalorder 2, %s9
    // Predicated region
    $region37: #{encoder_forward.15} parent=5 // pred_check
      %p275 = pneg %p274
    $region38: #{encoder_forward.15} parent=5 // pred_check_branch
      %277 = sbr.rel (%p275) target = $region40
    $region39: #{encoder_forward.15} parent=5 // pred_region
      %s278 = ssub.s32 %s9, 2
      // Predicated region
      $region41: #{encoder_forward.15} parent=39 // pred_check
        %p279 = pneg %p111
      $region42: #{encoder_forward.15} parent=39 // pred_check_branch
        %281 = sbr.rel (%p279) target = $region44
      $region43: #{encoder_forward.15} parent=39 // pred_region
        %p282 = scmp.lt.s32.totalorder %s15, 1
        %s283 = scalar_select %p282, %s15, 1
        %s284 = smul.addr %s283, 8
        %s285 = scalar_lea.vmem %s3, %s284
      $region44: #{encoder_forward.15} parent=39 // pred_fallthru
        _
    $region40: #{encoder_forward.15} parent=5 // pred_fallthru
      _
  $region6: #{encoder_forward.15} parent=0 // loop_footer
    %s13 = sadd.s32 1, %s9
  $region7: #{encoder_forward.15} parent=0 // loop_footer_branch
    %8 = sbr.rel target = $region3
  $region8: #{encoder_forward.15} parent=0 // loop_exit
    _

// kernel: encoder_forward.16
$region0: #{encoder_forward.16}
  #allocation0 [shape = 'u32[]', space=smem, size = 0x4, offset = 0x4, fixed_abs, tag = 'smem constant byte address 0x4 - core index']
  #allocation1 [shape = 'u32[72,128]{1,0:T(1,128)}', space=vmem, size = 0x9000, scoped, tag = 'internal scratch']
  %s0 = inlined_call_operand.vmem [shape: f32[2,2,4,128], index: 0, kind: input, shape index: {}]
  %s1 = inlined_call_operand.vmem [shape: s32[4,1], index: 1, kind: input, shape index: {}]
  %s2 = inlined_call_operand.vmem [shape: bf16[2,32,128], index: 2, kind: input, shape index: {}]
  %s3 = inlined_call_operand.vmem [shape: f32[2,2,4,32], index: 3, kind: output, shape index: {}]
  %s4 = sld [smem:[#allocation0]]
  $region52: #{encoder_forward.16} parent=0
    _
  %s6 = ssub.s32 1, %s4
  %s7 = scalar_select 0, %s6, %s4
  loop: start=0, step=1, limit=4
  $region2: #{encoder_forward.16} parent=0 // loop_pre_header
    _
  $region3: #{encoder_forward.16} parent=0 // loop_header
    %s9 = sphi 0, %s13
    %p10 = scmp.ge.s32.totalorder %s9, 4
    %s19 = sphi 0, %s21
    %s22 = sphi 0, %s19
    %s23 = sphi 0, %s22
    %s39 = sphi 0, %s23
    %s43 = sphi 0, %s43
    %s45 = sphi 0, %s43
    %s46 = sphi 0, %s45
    %s60 = sphi 0, %s46
    %s66 = sphi 0, %s68
    %s69 = sphi 0, %s66
    %s70 = sphi 0, %s69
    %s86 = sphi 0, %s70
    %s92 = sphi 0, %s94
    %s95 = sphi 0, %s92
    %s96 = sphi 0, %s95
    %s112 = sphi 0, %s96
  $region4: #{encoder_forward.16} parent=0 // loop_header_branch
    %12 = sbr.rel (%p10) target = $region8
  $region5: #{encoder_forward.16} parent=0 // loop_body
    %s14 = ssub.s32 %s9, 1
    %s15 = ssub.s32 %s9, 2
    %s16 = sadd.s32 %s9, 1
    %s17 = ssub.s32 %s9, %s16
    %p18 = scmp.eq.s32.totalorder %s17, 0
    %s20 = sadd.s32 %s19, 1
    %s21 = scalar_select %p18, %s19, %s20
    %p24 = pneg %p18
    %p25 = scmp.eq.s32.totalorder %s9, 1
    %p26 = por %p24, %p25
    %p27 = scmp.ne.s32.totalorder %s19, %s22
    %p28 = scmp.eq.s32.totalorder %s9, 0
    %p29 = por %p27, %p28
    %p30 = scmp.ne.s32.totalorder %s19, %s22
    %p31 = scmp.eq.s32.totalorder %s14, 1
    %p32 = por %p30, %p31
    %p33 = scmp.ne.s32.totalorder %s22, %s23
    %p34 = scmp.eq.s32.totalorder %s14, 0
    %p35 = por %p33, %p34
    %p36 = scmp.ne.s32.totalorder %s22, %s23
    %p37 = scmp.eq.s32.totalorder %s15, 1
    %p38 = por %p36, %p37
    %p40 = scmp.ne.s32.totalorder %s23, %s39
    %p41 = scmp.eq.s32.totalorder %s15, 0
    %p42 = por %p40, %p41
    %s44 = sadd.s32 %s43, 1
    %p47 = scmp.eq.s32.totalorder %s9, 1
    %p48 = scmp.ne.s32.totalorder %s43, %s45
    %p49 = scmp.eq.s32.totalorder %s9, 0
    %p50 = por %p48, %p49
    %p51 = scmp.ne.s32.totalorder %s43, %s45
    %p52 = scmp.eq.s32.totalorder %s14, 1
    %p53 = por %p51, %p52
    %p54 = scmp.ne.s32.totalorder %s45, %s46
    %p55 = scmp.eq.s32.totalorder %s14, 0
    %p56 = por %p54, %p55
    %p57 = scmp.ne.s32.totalorder %s45, %s46
    %p58 = scmp.eq.s32.totalorder %s15, 1
    %p59 = por %p57, %p58
    %p61 = scmp.ne.s32.totalorder %s46, %s60
    %p62 = scmp.eq.s32.totalorder %s15, 0
    %p63 = por %p61, %p62
    %s64 = ssub.s32 %s9, %s16
    %p65 = scmp.eq.s32.totalorder %s64, 0
    %s67 = sadd.s32 %s66, 1
    %s68 = scalar_select %p65, %s66, %s67
    %p71 = pneg %p65
    %p72 = scmp.eq.s32.totalorder %s9, 1
    %p73 = por %p71, %p72
    %p74 = scmp.ne.s32.totalorder %s66, %s69
    %p75 = scmp.eq.s32.totalorder %s9, 0
    %p76 = por %p74, %p75
    %p77 = scmp.ne.s32.totalorder %s66, %s69
    %p78 = scmp.eq.s32.totalorder %s14, 1
    %p79 = por %p77, %p78
    %p80 = scmp.ne.s32.totalorder %s69, %s70
    %p81 = scmp.eq.s32.totalorder %s14, 0
    %p82 = por %p80, %p81
    %p83 = scmp.ne.s32.totalorder %s69, %s70
    %p84 = scmp.eq.s32.totalorder %s15, 1
    %p85 = por %p83, %p84
    %p87 = scmp.ne.s32.totalorder %s70, %s86
    %p88 = scmp.eq.s32.totalorder %s15, 0
    %p89 = por %p87, %p88
    %s90 = ssub.s32 %s9, %s16
    %p91 = scmp.eq.s32.totalorder %s90, 0
    %s93 = sadd.s32 %s92, 1
    %s94 = scalar_select %p91, %s92, %s93
    %p97 = pneg %p91
    %p98 = scmp.eq.s32.totalorder %s9, 1
    %p99 = por %p97, %p98
    %p100 = scmp.ne.s32.totalorder %s92, %s95
    %p101 = scmp.eq.s32.totalorder %s9, 0
    %p102 = por %p100, %p101
    %p103 = scmp.ne.s32.totalorder %s92, %s95
    %p104 = scmp.eq.s32.totalorder %s14, 1
    %p105 = por %p103, %p104
    %p106 = scmp.ne.s32.totalorder %s95, %s96
    %p107 = scmp.eq.s32.totalorder %s14, 0
    %p108 = por %p106, %p107
    %p109 = scmp.ne.s32.totalorder %s95, %s96
    %p110 = scmp.eq.s32.totalorder %s15, 1
    %p111 = por %p109, %p110
    %p113 = scmp.ne.s32.totalorder %s96, %s112
    %p114 = scmp.eq.s32.totalorder %s15, 0
    %p115 = por %p113, %p114
    %p116 = scmp.le.s32.totalorder 1, %s9
    %p117 = scmp.lt.s32.totalorder %s9, 3
    %p118 = pnand %p116, %p117
    %p119 = pneg %p118
    // Predicated region
    $region9: #{encoder_forward.16} parent=5 // pred_check
      _
    $region10: #{encoder_forward.16} parent=5 // pred_check_branch
      %121 = sbr.rel (%p118) target = $region12
    $region11: #{encoder_forward.16} parent=5 // pred_region
      %s122 = ssub.s32 %s9, 1
      // Predicated region
      $region13: #{encoder_forward.16} parent=11 // pred_check
        %p123 = pneg %p56
      $region14: #{encoder_forward.16} parent=11 // pred_check_branch
        %125 = sbr.rel (%p123) target = $region16
      $region15: #{encoder_forward.16} parent=11 // pred_region
        _
      $region16: #{encoder_forward.16} parent=11 // pred_fallthru
        _
    $region12: #{encoder_forward.16} parent=5 // pred_fallthru
      _
    %p126 = scmp.lt.s32.totalorder %s9, 2
    // Predicated region
    $region17: #{encoder_forward.16} parent=5 // pred_check
      %p127 = pneg %p126
    $region18: #{encoder_forward.16} parent=5 // pred_check_branch
      %129 = sbr.rel (%p127) target = $region20
    $region19: #{encoder_forward.16} parent=5 // pred_region
      // Predicated region
      $region21: #{encoder_forward.16} parent=19 // pred_check
        %p130 = pneg %p29
      $region22: #{encoder_forward.16} parent=19 // pred_check_branch
        %132 = sbr.rel (%p130) target = $region24
      $region23: #{encoder_forward.16} parent=19 // pred_region
        %p133 = scmp.lt.s32.totalorder %s9, 1
        %s134 = scalar_select %p133, %s9, 1
        %s135 = smul.addr %s134, 2
        %s136 = smul.addr %s135, 4
        %s137 = scalar_lea.vmem %s0, %s136
      $region24: #{encoder_forward.16} parent=19 // pred_fallthru
        _
      // Predicated region
      $region25: #{encoder_forward.16} parent=19 // pred_check
        %p138 = pneg %p76
      $region26: #{encoder_forward.16} parent=19 // pred_check_branch
        %140 = sbr.rel (%p138) target = $region28
      $region27: #{encoder_forward.16} parent=19 // pred_region
        %p141 = scmp.lt.s32.totalorder %s9, 1
        %s142 = scalar_select %p141, %s9, 1
        %s143 = smul.addr %s142, 4
        %s144 = smul.addr %s143, 4
        %s145 = scalar_lea.vmem %s2, %s144
      $region28: #{encoder_forward.16} parent=19 // pred_fallthru
        _
    $region20: #{encoder_forward.16} parent=5 // pred_fallthru
      _
    %p146 = scmp.le.s32.totalorder 1, %s9
    %p147 = scmp.lt.s32.totalorder %s9, 3
    %p148 = pnand %p146, %p147
    %p149 = pneg %p148
    // Predicated region
    $region29: #{encoder_forward.16} parent=5 // pred_check
      _
    $region30: #{encoder_forward.16} parent=5 // pred_check_branch
      %151 = sbr.rel (%p148) target = $region32
    $region31: #{encoder_forward.16} parent=5 // pred_region
      %s152 = ssub.s32 %s9, 1
      %p153 = scmp.lt.s32.totalorder %s14, 1
      %s154 = scalar_select %p153, %s14, 1
      %s155 = smul.addr %s154, 2
      %s156 = smul.addr %s155, 4
      %s157 = scalar_lea.vmem %s0, %s156
      %p158 = pneg %p35
      %p159 = pneg %p32
      %p160 = pneg %p56
      %p161 = pneg %p53
      %p162 = scmp.lt.s32.totalorder %s14, 1
      %s163 = scalar_select %p162, %s14, 1
      %s164 = smul.addr %s163, 4
      %s165 = smul.addr %s164, 4
      %s166 = scalar_lea.vmem %s2, %s165
      %p167 = pneg %p82
      %p168 = pneg %p79
      %p169 = pneg %p108
      %p170 = pneg %p105
      %p171 = scmp.lt.s32.totalorder %s14, 1
      %s172 = scalar_select %p171, %s14, 1
      %s173 = smul.addr %s172, 2
      %s174 = smul.addr %s173, 4
      %s175 = scalar_lea.vmem %s3, %s174
      %p176 = scmp.lt.s32.totalorder %s14, 1
      %s177 = scalar_select %p176, %s14, 1
      %s178 = smul.addr %s177, 2
      %s179 = smul.addr %s178, 4
      %s180 = scalar_lea.vmem %s0, %s179
      %p181 = scmp.lt.s32.totalorder %s14, 1
      %s182 = scalar_select %p181, %s14, 1
      %s183 = smul.addr %s182, 4
      %s184 = smul.addr %s183, 4
      %s185 = scalar_lea.vmem %s2, %s184
      %p186 = scmp.lt.s32.totalorder %s14, 1
      %s187 = scalar_select %p186, %s14, 1
      %s188 = smul.addr %s187, 2
      %s189 = smul.addr %s188, 4
      %s190 = scalar_lea.vmem %s3, %s189
      %v192 = vld [vmem:[%s185] sm:$0xf]
      %v193 = vld [vmem:[%s185 + $0x4] sm:$0xf]
      %v194 = vld [vmem:[%s185 + $0x8] sm:$0xf]
      %v195 = vld [vmem:[%s185 + $0xc] sm:$0xf]
      %v196 = vld [vmem:[%s1] sm:$0xf]
      loop: start=0, step=1, limit=2
      $region33: #{encoder_forward.16} parent=31 // loop_pre_header
        _
      $region34: #{encoder_forward.16} parent=31 // loop_header
        %s198 = sphi 0, %s202
        %p199 = scmp.ge.s32.totalorder %s198, 2
        %v203 = vphi 0.0, %v290
        %v204 = vphi 0.0, %v289
      $region35: #{encoder_forward.16} parent=31 // loop_header_branch
        %201 = sbr.rel (%p199) target = $region39
      $region36: #{encoder_forward.16} parent=31 // loop_body
        %p205 = scmp.eq.s32.totalorder %s14, 0
        %s206 = ssub.s32 1, %s198
        %s207 = scalar_select %p205, %s198, %s206
        %s208 = smul.u32 %s207, 4
        %s209 = scalar_lea.vmem %s180, %s208
        %v210 = vld [vmem:[%s209] sm:$0xf]
        %v211 = vpack.c.bf16 %v203, %v203
        %213 = vrot.lane.b32.xlu0 %v211, 32
        %v214 = vpop.permute.xlu0 %213
        %v219 = vunpack.c.l.b16 %v192
        %v220 = vunpack.c.l.b16 %v193
        %v221 = vunpack.c.l.b16 %v194
        %v222 = vunpack.c.l.b16 %v195
        %v223 = vpack.c.b16 %v220, %v219
        %v224 = vpack.c.b16 %v222, %v221
        %vm227 = vcmask 261120
        %v229 = vsel %vm227, %v214, 0
        %231 = vmatpush.bf16.msra.mxu0 0
        %232 = vmatpush.bf16.msra.mxu0 0
        %233 = vmatpush.bf16.msra.mxu0 0
        %234 = vmatpush.bf16.msra.mxu0 0
        %235 = vmatpush.bf16.msra.mxu0 0
        %236 = vmatpush.bf16.msra.mxu0 0
        %237 = vmatpush.bf16.msra.mxu0 %v224
        %238 = vmatpush.bf16.msra.mxu0 %v223
        %239 = vmatmul.bf16.gmra.mxu0 %v229
        %v240 = vpop.f32.mrf.mxu0
        %v241 = vadd.f32 0.0, %v240
        %v242 = vpop.f32.mrf.mxu0
        %243 = vdwg.mxu0
        %v244 = vadd.f32 %v210, %v241
        %v245 = vxor.u32 %v244, 2147483648
        %v246 = vmul.f32 %v245, 1.442695
        %v247 = vpow.pop %v246
        %v248 = vadd.f32 %v247, 1.0
        %v249 = vrcp.pop %v248
        %v250 = vmul.f32 %v248, %v249
        %v251 = vsub.f32 1.0, %v250
        %v252 = vmul.f32 %v249, %v251
        %v253 = vadd.f32 %v249, %v252
        %vm254 = vweird.f32 %v248
        %vm255 = vweird.f32 %v249
        %vm256 = vmor %vm254, %vm255
        %v257 = vsel %vm256, %v249, %v253
        %v258 = vand.u32 2147483647, %v248
        %vm259 = vcmp.eq.f32.partialorder %v258, 8.507059e+37
        %v260 = vand.u32 %v248, 2147483648
        %v261 = vor.u32 1.1754944e-38, %v260
        %v262 = vsel %vm259, %v261, %v257
        %v263 = vmul.f32 1.0, %v262
        %v264 = vtanh.pop %v244
        %v265 = vmul.f32 %v263, %v204
        %267 = vrot.lane.b32.xlu0 %v264, 64
        %v268 = vpop.permute.xlu0 %267
        %v270 = vmul.f32 %v263, %v268
        %272 = vrot.lane.b32.xlu0 %v270, 32
        %v273 = vpop.permute.xlu0 %272
        %v275 = vadd.f32 %v265, %v273
        %v276 = vtanh.pop %v275
        %278 = vrot.lane.b32.xlu0 %v276, 64
        %v279 = vpop.permute.xlu0 %278
        %v281 = vmul.f32 %v263, %v279
        %v282 = vstv %s207
        %vm283 = vcmp.lt.s32.totalorder %v282, %v196
        %v284 = vsel %vm283, 1, 0
        %285 = vset.pattern.permute.xlu0 0
        %286 = vperm.xlu0 %285, %v284
        %v287 = vpop.permute.xlu0 %286
        %vm288 = vcmp.eq.s32.totalorder %v287, 1
        %v289 = vsel %vm288, %v275, %v204
        %v290 = vsel %vm288, %v281, %v203
        %v291 = vsel %vm288, %v281, 0.0
        %293 = vrot.lane.b32.xlu0 %v291, 32
        %v294 = vpop.permute.xlu0 %293
        %s296 = scalar_lea.vmem %s190, %s208
        %vm297 = vcmask 257024
        %298 = vst.msk [vmem:[%s296] sm:$0xf] %vm297, %v294
      $region37: #{encoder_forward.16} parent=31 // loop_footer
        %s202 = sadd.s32 1, %s198
      $region38: #{encoder_forward.16} parent=31 // loop_footer_branch
        %197 = sbr.rel target = $region34
      $region39: #{encoder_forward.16} parent=31 // loop_exit
        _
      %p299 = scmp.lt.s32.totalorder %s14, 1
      %s300 = scalar_select %p299, %s14, 1
      %s301 = smul.addr %s300, 2
      %s302 = smul.addr %s301, 4
      %s303 = scalar_lea.vmem %s3, %s302
      // Predicated region
      $region40: #{encoder_forward.16} parent=31 // pred_check
        %p304 = pneg %p105
      $region41: #{encoder_forward.16} parent=31 // pred_check_branch
        %306 = sbr.rel (%p304) target = $region43
      $region42: #{encoder_forward.16} parent=31 // pred_region
        _
      $region43: #{encoder_forward.16} parent=31 // pred_fallthru
        _
    $region32: #{encoder_forward.16} parent=5 // pred_fallthru
      _
    %p307 = scmp.le.s32.totalorder 2, %s9
    // Predicated region
    $region44: #{encoder_forward.16} parent=5 // pred_check
      %p308 = pneg %p307
    $region45: #{encoder_forward.16} parent=5 // pred_check_branch
      %310 = sbr.rel (%p308) target = $region47
    $region46: #{encoder_forward.16} parent=5 // pred_region
      %s311 = ssub.s32 %s9, 2
      // Predicated region
      $region48: #{encoder_forward.16} parent=46 // pred_check
        %p312 = pneg %p111
      $region49: #{encoder_forward.16} parent=46 // pred_check_branch
        %314 = sbr.rel (%p312) target = $region51
      $region50: #{encoder_forward.16} parent=46 // pred_region
        %p315 = scmp.lt.s32.totalorder %s15, 1
        %s316 = scalar_select %p315, %s15, 1
        %s317 = smul.addr %s316, 2
        %s318 = smul.addr %s317, 4
        %s319 = scalar_lea.vmem %s3, %s318
      $region51: #{encoder_forward.16} parent=46 // pred_fallthru
        _
    $region47: #{encoder_forward.16} parent=5 // pred_fallthru
      _
  $region6: #{encoder_forward.16} parent=0 // loop_footer
    %s13 = sadd.s32 1, %s9
  $region7: #{encoder_forward.16} parent=0 // loop_footer_branch
    %8 = sbr.rel target = $region3
  $region8: #{encoder_forward.16} parent=0 // loop_exit
    _

// kernel: encoder_forward.13
$region0: #{encoder_forward.13}
  #allocation0 [shape = 'u32[]', space=smem, size = 0x4, offset = 0x4, fixed_abs, tag = 'smem constant byte address 0x4 - core index']
  #allocation1 [shape = 'u32[72,128]{1,0:T(1,128)}', space=vmem, size = 0x9000, scoped, tag = 'internal scratch']
  %s0 = inlined_call_operand.vmem [shape: f32[16,128], index: 0, kind: input, shape index: {}]
  %s1 = inlined_call_operand.vmem [shape: bf16[2,128,128], index: 1, kind: input, shape index: {}]
  %s2 = inlined_call_operand.vmem [shape: f32[2,1,128], index: 2, kind: input, shape index: {}]
  %s3 = inlined_call_operand.vmem [shape: f32[2,16,128], index: 3, kind: output, shape index: {}]
  %s4 = sld [smem:[#allocation0]]
  $region45: #{encoder_forward.13} parent=0
    _
  %s6 = ssub.s32 1, %s4
  %s7 = scalar_select 0, %s6, %s4
  loop: start=0, step=1, limit=4
  $region2: #{encoder_forward.13} parent=0 // loop_pre_header
    _
  $region3: #{encoder_forward.13} parent=0 // loop_header
    %s9 = sphi 0, %s13
    %p10 = scmp.ge.s32.totalorder %s9, 4
    %s17 = sphi 0, %s17
    %s19 = sphi 0, %s17
    %s20 = sphi 0, %s19
    %s34 = sphi 0, %s20
    %s40 = sphi 0, %s42
    %s43 = sphi 0, %s40
    %s44 = sphi 0, %s43
    %s60 = sphi 0, %s44
    %s66 = sphi 0, %s68
    %s69 = sphi 0, %s66
    %s70 = sphi 0, %s69
    %s86 = sphi 0, %s70
    %s92 = sphi 0, %s94
    %s95 = sphi 0, %s92
    %s96 = sphi 0, %s95
    %s112 = sphi 0, %s96
  $region4: #{encoder_forward.13} parent=0 // loop_header_branch
    %12 = sbr.rel (%p10) target = $region8
  $region5: #{encoder_forward.13} parent=0 // loop_body
    %s14 = ssub.s32 %s9, 1
    %s15 = ssub.s32 %s9, 2
    %s16 = sadd.s32 %s9, 1
    %s18 = sadd.s32 %s17, 1
    %p21 = scmp.eq.s32.totalorder %s9, 1
    %p22 = scmp.ne.s32.totalorder %s17, %s19
    %p23 = scmp.eq.s32.totalorder %s9, 0
    %p24 = por %p22, %p23
    %p25 = scmp.ne.s32.totalorder %s17, %s19
    %p26 = scmp.eq.s32.totalorder %s14, 1
    %p27 = por %p25, %p26
    %p28 = scmp.ne.s32.totalorder %s19, %s20
    %p29 = scmp.eq.s32.totalorder %s14, 0
    %p30 = por %p28, %p29
    %p31 = scmp.ne.s32.totalorder %s19, %s20
    %p32 = scmp.eq.s32.totalorder %s15, 1
    %p33 = por %p31, %p32
    %p35 = scmp.ne.s32.totalorder %s20, %s34
    %p36 = scmp.eq.s32.totalorder %s15, 0
    %p37 = por %p35, %p36
    %s38 = ssub.s32 %s9, %s16
    %p39 = scmp.eq.s32.totalorder %s38, 0
    %s41 = sadd.s32 %s40, 1
    %s42 = scalar_select %p39, %s40, %s41
    %p45 = pneg %p39
    %p46 = scmp.eq.s32.totalorder %s9, 1
    %p47 = por %p45, %p46
    %p48 = scmp.ne.s32.totalorder %s40, %s43
    %p49 = scmp.eq.s32.totalorder %s9, 0
    %p50 = por %p48, %p49
    %p51 = scmp.ne.s32.totalorder %s40, %s43
    %p52 = scmp.eq.s32.totalorder %s14, 1
    %p53 = por %p51, %p52
    %p54 = scmp.ne.s32.totalorder %s43, %s44
    %p55 = scmp.eq.s32.totalorder %s14, 0
    %p56 = por %p54, %p55
    %p57 = scmp.ne.s32.totalorder %s43, %s44
    %p58 = scmp.eq.s32.totalorder %s15, 1
    %p59 = por %p57, %p58
    %p61 = scmp.ne.s32.totalorder %s44, %s60
    %p62 = scmp.eq.s32.totalorder %s15, 0
    %p63 = por %p61, %p62
    %s64 = ssub.s32 %s9, %s16
    %p65 = scmp.eq.s32.totalorder %s64, 0
    %s67 = sadd.s32 %s66, 1
    %s68 = scalar_select %p65, %s66, %s67
    %p71 = pneg %p65
    %p72 = scmp.eq.s32.totalorder %s9, 1
    %p73 = por %p71, %p72
    %p74 = scmp.ne.s32.totalorder %s66, %s69
    %p75 = scmp.eq.s32.totalorder %s9, 0
    %p76 = por %p74, %p75
    %p77 = scmp.ne.s32.totalorder %s66, %s69
    %p78 = scmp.eq.s32.totalorder %s14, 1
    %p79 = por %p77, %p78
    %p80 = scmp.ne.s32.totalorder %s69, %s70
    %p81 = scmp.eq.s32.totalorder %s14, 0
    %p82 = por %p80, %p81
    %p83 = scmp.ne.s32.totalorder %s69, %s70
    %p84 = scmp.eq.s32.totalorder %s15, 1
    %p85 = por %p83, %p84
    %p87 = scmp.ne.s32.totalorder %s70, %s86
    %p88 = scmp.eq.s32.totalorder %s15, 0
    %p89 = por %p87, %p88
    %s90 = ssub.s32 %s9, %s16
    %p91 = scmp.eq.s32.totalorder %s90, 0
    %s93 = sadd.s32 %s92, 1
    %s94 = scalar_select %p91, %s92, %s93
    %p97 = pneg %p91
    %p98 = scmp.eq.s32.totalorder %s9, 1
    %p99 = por %p97, %p98
    %p100 = scmp.ne.s32.totalorder %s92, %s95
    %p101 = scmp.eq.s32.totalorder %s9, 0
    %p102 = por %p100, %p101
    %p103 = scmp.ne.s32.totalorder %s92, %s95
    %p104 = scmp.eq.s32.totalorder %s14, 1
    %p105 = por %p103, %p104
    %p106 = scmp.ne.s32.totalorder %s95, %s96
    %p107 = scmp.eq.s32.totalorder %s14, 0
    %p108 = por %p106, %p107
    %p109 = scmp.ne.s32.totalorder %s95, %s96
    %p110 = scmp.eq.s32.totalorder %s15, 1
    %p111 = por %p109, %p110
    %p113 = scmp.ne.s32.totalorder %s96, %s112
    %p114 = scmp.eq.s32.totalorder %s15, 0
    %p115 = por %p113, %p114
    %p116 = scmp.le.s32.totalorder 1, %s9
    %p117 = scmp.lt.s32.totalorder %s9, 3
    %p118 = pnand %p116, %p117
    %p119 = pneg %p118
    // Predicated region
    $region9: #{encoder_forward.13} parent=5 // pred_check
      _
    $region10: #{encoder_forward.13} parent=5 // pred_check_branch
      %121 = sbr.rel (%p118) target = $region12
    $region11: #{encoder_forward.13} parent=5 // pred_region
      %s122 = ssub.s32 %s9, 1
      // Predicated region
      $region13: #{encoder_forward.13} parent=11 // pred_check
        %p123 = pneg %p30
      $region14: #{encoder_forward.13} parent=11 // pred_check_branch
        %125 = sbr.rel (%p123) target = $region16
      $region15: #{encoder_forward.13} parent=11 // pred_region
        _
      $region16: #{encoder_forward.13} parent=11 // pred_fallthru
        _
    $region12: #{encoder_forward.13} parent=5 // pred_fallthru
      _
    %p126 = scmp.lt.s32.totalorder %s9, 2
    // Predicated region
    $region17: #{encoder_forward.13} parent=5 // pred_check
      %p127 = pneg %p126
    $region18: #{encoder_forward.13} parent=5 // pred_check_branch
      %129 = sbr.rel (%p127) target = $region20
    $region19: #{encoder_forward.13} parent=5 // pred_region
      // Predicated region
      $region21: #{encoder_forward.13} parent=19 // pred_check
        %p130 = pneg %p50
      $region22: #{encoder_forward.13} parent=19 // pred_check_branch
        %132 = sbr.rel (%p130) target = $region24
      $region23: #{encoder_forward.13} parent=19 // pred_region
        %p133 = scmp.lt.s32.totalorder %s9, 1
        %s134 = scalar_select %p133, %s9, 1
        %s135 = smul.addr %s134, 16
        %s136 = smul.addr %s135, 4
        %s137 = scalar_lea.vmem %s1, %s136
      $region24: #{encoder_forward.13} parent=19 // pred_fallthru
        _
      // Predicated region
      $region25: #{encoder_forward.13} parent=19 // pred_check
        %p138 = pneg %p76
      $region26: #{encoder_forward.13} parent=19 // pred_check_branch
        %140 = sbr.rel (%p138) target = $region28
      $region27: #{encoder_forward.13} parent=19 // pred_region
        %p141 = scmp.lt.s32.totalorder %s9, 1
        %s142 = scalar_select %p141, %s9, 1
        %s143 = scalar_lea.vmem %s2, %s142
      $region28: #{encoder_forward.13} parent=19 // pred_fallthru
        _
    $region20: #{encoder_forward.13} parent=5 // pred_fallthru
      _
    %p144 = scmp.le.s32.totalorder 1, %s9
    %p145 = scmp.lt.s32.totalorder %s9, 3
    %p146 = pnand %p144, %p145
    %p147 = pneg %p146
    // Predicated region
    $region29: #{encoder_forward.13} parent=5 // pred_check
      _
    $region30: #{encoder_forward.13} parent=5 // pred_check_branch
      %149 = sbr.rel (%p146) target = $region32
    $region31: #{encoder_forward.13} parent=5 // pred_region
      %s150 = ssub.s32 %s9, 1
      %p151 = pneg %p30
      %p152 = pneg %p27
      %p153 = scmp.lt.s32.totalorder %s14, 1
      %s154 = scalar_select %p153, %s14, 1
      %s155 = smul.addr %s154, 16
      %s156 = smul.addr %s155, 4
      %s157 = scalar_lea.vmem %s1, %s156
      %p158 = pneg %p56
      %p159 = pneg %p53
      %p160 = scmp.lt.s32.totalorder %s14, 1
      %s161 = scalar_select %p160, %s14, 1
      %s162 = scalar_lea.vmem %s2, %s161
      %p163 = pneg %p82
      %p164 = pneg %p79
      %p165 = pneg %p108
      %p166 = pneg %p105
      %p167 = scmp.lt.s32.totalorder %s14, 1
      %s168 = scalar_select %p167, %s14, 1
      %s169 = smul.addr %s168, 2
      %s170 = smul.addr %s169, 8
      %s171 = scalar_lea.vmem %s3, %s170
      %p172 = scmp.lt.s32.totalorder %s14, 1
      %s173 = scalar_select %p172, %s14, 1
      %s174 = smul.addr %s173, 16
      %s175 = smul.addr %s174, 4
      %s176 = scalar_lea.vmem %s1, %s175
      %p177 = scmp.lt.s32.totalorder %s14, 1
      %s178 = scalar_select %p177, %s14, 1
      %s179 = scalar_lea.vmem %s2, %s178
      %p180 = scmp.lt.s32.totalorder %s14, 1
      %s181 = scalar_select %p180, %s14, 1
      %s182 = smul.addr %s181, 2
      %s183 = smul.addr %s182, 8
      %s184 = scalar_lea.vmem %s3, %s183
      %v185 = vld [vmem:[%s0] sm:$0xff]
      %v186 = vld [vmem:[%s0 + $0x8] sm:$0xff]
      %v187 = vpack.c.bf16 %v186, %v185
      %v188 = vld [vmem:[%s176] sm:$0xf]
      %v189 = vld [vmem:[%s176 + $0x4] sm:$0xf]
      %v190 = vld [vmem:[%s176 + $0x8] sm:$0xf]
      %v191 = vld [vmem:[%s176 + $0xc] sm:$0xf]
      %v192 = vld [vmem:[%s176 + $0x10] sm:$0xf]
      %v193 = vld [vmem:[%s176 + $0x14] sm:$0xf]
      %v194 = vld [vmem:[%s176 + $0x18] sm:$0xf]
      %v195 = vld [vmem:[%s176 + $0x1c] sm:$0xf]
      %v196 = vld [vmem:[%s176 + $0x20] sm:$0xf]
      %v197 = vld [vmem:[%s176 + $0x24] sm:$0xf]
      %v198 = vld [vmem:[%s176 + $0x28] sm:$0xf]
      %v199 = vld [vmem:[%s176 + $0x2c] sm:$0xf]
      %v200 = vld [vmem:[%s176 + $0x30] sm:$0xf]
      %v201 = vld [vmem:[%s176 + $0x34] sm:$0xf]
      %v202 = vld [vmem:[%s176 + $0x38] sm:$0xf]
      %v203 = vld [vmem:[%s176 + $0x3c] sm:$0xf]
      %v204 = vld [vmem:[%s179] sm:$0x1]
      %v206 = vperm.slane %v204, 0
      %v224 = vunpack.c.l.b16 %v188
      %v225 = vunpack.c.l.b16 %v189
      %v226 = vunpack.c.l.b16 %v190
      %v227 = vunpack.c.l.b16 %v191
      %v228 = vunpack.c.l.b16 %v192
      %v229 = vunpack.c.l.b16 %v193
      %v230 = vunpack.c.l.b16 %v194
      %v231 = vunpack.c.l.b16 %v195
      %v232 = vunpack.c.l.b16 %v196
      %v233 = vunpack.c.l.b16 %v197
      %v234 = vunpack.c.l.b16 %v198
      %v235 = vunpack.c.l.b16 %v199
      %v236 = vunpack.c.l.b16 %v200
      %v237 = vunpack.c.l.b16 %v201
      %v238 = vunpack.c.l.b16 %v202
      %v239 = vunpack.c.l.b16 %v203
      %v240 = vpack.c.b16 %v225, %v224
      %v241 = vpack.c.b16 %v227, %v226
      %v242 = vpack.c.b16 %v229, %v228
      %v243 = vpack.c.b16 %v231, %v230
      %v244 = vpack.c.b16 %v233, %v232
      %v245 = vpack.c.b16 %v235, %v234
      %v246 = vpack.c.b16 %v237, %v236
      %v247 = vpack.c.b16 %v239, %v238
      %256 = vmatpush.bf16.msra.mxu0 %v247
      %257 = vmatpush.bf16.msra.mxu0 %v246
      %258 = vmatpush.bf16.msra.mxu0 %v245
      %259 = vmatpush.bf16.msra.mxu0 %v244
      %260 = vmatpush.bf16.msra.mxu0 %v243
      %261 = vmatpush.bf16.msra.mxu0 %v242
      %262 = vmatpush.bf16.msra.mxu0 %v241
      %263 = vmatpush.bf16.msra.mxu0 %v240
      %264 = vmatmul.bf16.gmra.mxu0 %v187
      %v265 = vpop.f32.mrf.mxu0
      %v266 = vadd.f32 %v206, %v265
      %v267 = vpop.f32.mrf.mxu0
      %v268 = vadd.f32 %v206, %v267
      %269 = vdwg.mxu0
      %270 = vst [vmem:[%s184] sm:$0xff] %v266
      %271 = vst [vmem:[%s184 + $0x8] sm:$0xff] %v268
      %p272 = scmp.lt.s32.totalorder %s14, 1
      %s273 = scalar_select %p272, %s14, 1
      %s274 = smul.addr %s273, 2
      %s275 = smul.addr %s274, 8
      %s276 = scalar_lea.vmem %s3, %s275
      // Predicated region
      $region33: #{encoder_forward.13} parent=31 // pred_check
        %p277 = pneg %p105
      $region34: #{encoder_forward.13} parent=31 // pred_check_branch
        %279 = sbr.rel (%p277) target = $region36
      $region35: #{encoder_forward.13} parent=31 // pred_region
        _
      $region36: #{encoder_forward.13} parent=31 // pred_fallthru
        _
    $region32: #{encoder_forward.13} parent=5 // pred_fallthru
      _
    %p280 = scmp.le.s32.totalorder 2, %s9
    // Predicated region
    $region37: #{encoder_forward.13} parent=5 // pred_check
      %p281 = pneg %p280
    $region38: #{encoder_forward.13} parent=5 // pred_check_branch
      %283 = sbr.rel (%p281) target = $region40
    $region39: #{encoder_forward.13} parent=5 // pred_region
      %s284 = ssub.s32 %s9, 2
      // Predicated region
      $region41: #{encoder_forward.13} parent=39 // pred_check
        %p285 = pneg %p111
      $region42: #{encoder_forward.13} parent=39 // pred_check_branch
        %287 = sbr.rel (%p285) target = $region44
      $region43: #{encoder_forward.13} parent=39 // pred_region
        %p288 = scmp.lt.s32.totalorder %s15, 1
        %s289 = scalar_select %p288, %s15, 1
        %s290 = smul.addr %s289, 2
        %s291 = smul.addr %s290, 8
        %s292 = scalar_lea.vmem %s3, %s291
      $region44: #{encoder_forward.13} parent=39 // pred_fallthru
        _
    $region40: #{encoder_forward.13} parent=5 // pred_fallthru
      _
  $region6: #{encoder_forward.13} parent=0 // loop_footer
    %s13 = sadd.s32 1, %s9
  $region7: #{encoder_forward.13} parent=0 // loop_footer_branch
    %8 = sbr.rel target = $region3
  $region8: #{encoder_forward.13} parent=0 // loop_exit
    _

// kernel: encoder_forward.17
$region0: #{encoder_forward.17}
  #allocation0 [shape = 'u32[]', space=smem, size = 0x4, offset = 0x4, fixed_abs, tag = 'smem constant byte address 0x4 - core index']
  #allocation1 [shape = 'u32[72,128]{1,0:T(1,128)}', space=vmem, size = 0x9000, scoped, tag = 'internal scratch']
  %s0 = inlined_call_operand.vmem [shape: f32[256,64], index: 0, kind: input, shape index: {}]
  %s1 = inlined_call_operand.vmem [shape: bf16[64,128], index: 1, kind: input, shape index: {}]
  %s2 = inlined_call_operand.vmem [shape: f32[1,128], index: 2, kind: input, shape index: {}]
  %s3 = inlined_call_operand.vmem [shape: f32[256,128], index: 3, kind: output, shape index: {}]
  %s4 = sld [smem:[#allocation0]]
  $region22: #{encoder_forward.17} parent=0
    _
  %s6 = ssub.s32 1, %s4
  %s7 = scalar_select 0, %s6, %s4
  // Predicated region
  $region2: #{encoder_forward.17} parent=0 // pred_check
    _
  $region3: #{encoder_forward.17} parent=0 // pred_check_branch
    %9 = sbr.rel (0) target = $region5
  $region4: #{encoder_forward.17} parent=0 // pred_region
    _
  $region5: #{encoder_forward.17} parent=0 // pred_fallthru
    _
  // Predicated region
  $region6: #{encoder_forward.17} parent=0 // pred_check
    _
  $region7: #{encoder_forward.17} parent=0 // pred_check_branch
    %11 = sbr.rel (0) target = $region9
  $region8: #{encoder_forward.17} parent=0 // pred_region
    _
  $region9: #{encoder_forward.17} parent=0 // pred_fallthru
    _
  // Predicated region
  $region10: #{encoder_forward.17} parent=0 // pred_check
    _
  $region11: #{encoder_forward.17} parent=0 // pred_check_branch
    %13 = sbr.rel (0) target = $region13
  $region12: #{encoder_forward.17} parent=0 // pred_region
    _
  $region13: #{encoder_forward.17} parent=0 // pred_fallthru
    _
  %v15 = vld [vmem:[%s0] sm:$0xff]
  %v16 = vld [vmem:[%s0 + $0x8] sm:$0xff]
  %v17 = vld [vmem:[%s0 + $0x10] sm:$0xff]
  %v18 = vld [vmem:[%s0 + $0x18] sm:$0xff]
  %v19 = vld [vmem:[%s0 + $0x20] sm:$0xff]
  %v20 = vld [vmem:[%s0 + $0x28] sm:$0xff]
  %v21 = vld [vmem:[%s0 + $0x30] sm:$0xff]
  %v22 = vld [vmem:[%s0 + $0x38] sm:$0xff]
  %v23 = vld [vmem:[%s0 + $0x40] sm:$0xff]
  %v24 = vld [vmem:[%s0 + $0x48] sm:$0xff]
  %v25 = vld [vmem:[%s0 + $0x50] sm:$0xff]
  %v26 = vld [vmem:[%s0 + $0x58] sm:$0xff]
  %v27 = vld [vmem:[%s0 + $0x60] sm:$0xff]
  %v28 = vld [vmem:[%s0 + $0x68] sm:$0xff]
  %v29 = vld [vmem:[%s0 + $0x70] sm:$0xff]
  %v30 = vld [vmem:[%s0 + $0x78] sm:$0xff]
  %v31 = vld [vmem:[%s0 + $0x80] sm:$0xff]
  %v32 = vld [vmem:[%s0 + $0x88] sm:$0xff]
  %v33 = vld [vmem:[%s0 + $0x90] sm:$0xff]
  %v34 = vld [vmem:[%s0 + $0x98] sm:$0xff]
  %v35 = vld [vmem:[%s0 + $0xa0] sm:$0xff]
  %v36 = vld [vmem:[%s0 + $0xa8] sm:$0xff]
  %v37 = vld [vmem:[%s0 + $0xb0] sm:$0xff]
  %v38 = vld [vmem:[%s0 + $0xb8] sm:$0xff]
  %v39 = vld [vmem:[%s0 + $0xc0] sm:$0xff]
  %v40 = vld [vmem:[%s0 + $0xc8] sm:$0xff]
  %v41 = vld [vmem:[%s0 + $0xd0] sm:$0xff]
  %v42 = vld [vmem:[%s0 + $0xd8] sm:$0xff]
  %v43 = vld [vmem:[%s0 + $0xe0] sm:$0xff]
  %v44 = vld [vmem:[%s0 + $0xe8] sm:$0xff]
  %v45 = vld [vmem:[%s0 + $0xf0] sm:$0xff]
  %v46 = vld [vmem:[%s0 + $0xf8] sm:$0xff]
  %v47 = vpack.c.bf16 %v16, %v15
  %v48 = vpack.c.bf16 %v18, %v17
  %v49 = vpack.c.bf16 %v20, %v19
  %v50 = vpack.c.bf16 %v22, %v21
  %v51 = vpack.c.bf16 %v24, %v23
  %v52 = vpack.c.bf16 %v26, %v25
  %v53 = vpack.c.bf16 %v28, %v27
  %v54 = vpack.c.bf16 %v30, %v29
  %v55 = vpack.c.bf16 %v32, %v31
  %v56 = vpack.c.bf16 %v34, %v33
  %v57 = vpack.c.bf16 %v36, %v35
  %v58 = vpack.c.bf16 %v38, %v37
  %v59 = vpack.c.bf16 %v40, %v39
  %v60 = vpack.c.bf16 %v42, %v41
  %v61 = vpack.c.bf16 %v44, %v43
  %v62 = vpack.c.bf16 %v46, %v45
  %v63 = vld [vmem:[%s1] sm:$0xf]
  %v64 = vld [vmem:[%s1 + $0x4] sm:$0xf]
  %v65 = vld [vmem:[%s1 + $0x8] sm:$0xf]
  %v66 = vld [vmem:[%s1 + $0xc] sm:$0xf]
  %v67 = vld [vmem:[%s1 + $0x10] sm:$0xf]
  %v68 = vld [vmem:[%s1 + $0x14] sm:$0xf]
  %v69 = vld [vmem:[%s1 + $0x18] sm:$0xf]
  %v70 = vld [vmem:[%s1 + $0x1c] sm:$0xf]
  %v71 = vld [vmem:[%s2] sm:$0x1]
  %v73 = vperm.slane %v71, 0
  %v83 = vunpack.c.l.b16 %v63
  %v84 = vunpack.c.l.b16 %v64
  %v85 = vunpack.c.l.b16 %v65
  %v86 = vunpack.c.l.b16 %v66
  %v87 = vunpack.c.l.b16 %v67
  %v88 = vunpack.c.l.b16 %v68
  %v89 = vunpack.c.l.b16 %v69
  %v90 = vunpack.c.l.b16 %v70
  %v91 = vpack.c.b16 %v84, %v83
  %v92 = vpack.c.b16 %v86, %v85
  %v93 = vpack.c.b16 %v88, %v87
  %v94 = vpack.c.b16 %v90, %v89
  %vm99 = vcmask 523264
  %v101 = vsel %vm99, %v47, 0
  %v104 = vsel %vm99, %v48, 0
  %v107 = vsel %vm99, %v49, 0
  %v110 = vsel %vm99, %v50, 0
  %v113 = vsel %vm99, %v51, 0
  %v116 = vsel %vm99, %v52, 0
  %v119 = vsel %vm99, %v53, 0
  %v122 = vsel %vm99, %v54, 0
  %v125 = vsel %vm99, %v55, 0
  %v128 = vsel %vm99, %v56, 0
  %v131 = vsel %vm99, %v57, 0
  %v134 = vsel %vm99, %v58, 0
  %v137 = vsel %vm99, %v59, 0
  %v140 = vsel %vm99, %v60, 0
  %v143 = vsel %vm99, %v61, 0
  %v146 = vsel %vm99, %v62, 0
  %148 = vmatpush.bf16.msra.mxu0 0
  %149 = vmatpush.bf16.msra.mxu0 0
  %150 = vmatpush.bf16.msra.mxu0 0
  %151 = vmatpush.bf16.msra.mxu0 0
  %152 = vmatpush.bf16.msra.mxu0 %v94
  %153 = vmatpush.bf16.msra.mxu0 %v93
  %154 = vmatpush.bf16.msra.mxu0 %v92
  %155 = vmatpush.bf16.msra.mxu0 %v91
  %156 = vmatmul.bf16.gmra.mxu0 %v101
  %v157 = vpop.f32.mrf.mxu0
  %v158 = vadd.f32 %v73, %v157
  %v159 = vpop.f32.mrf.mxu0
  %v160 = vadd.f32 %v73, %v159
  %161 = vmatmul.bf16.gmra.mxu0 %v104
  %v162 = vpop.f32.mrf.mxu0
  %v163 = vadd.f32 %v73, %v162
  %v164 = vpop.f32.mrf.mxu0
  %v165 = vadd.f32 %v73, %v164
  %166 = vmatmul.bf16.gmra.mxu0 %v107
  %v167 = vpop.f32.mrf.mxu0
  %v168 = vadd.f32 %v73, %v167
  %v169 = vpop.f32.mrf.mxu0
  %v170 = vadd.f32 %v73, %v169
  %171 = vmatmul.bf16.gmra.mxu0 %v110
  %v172 = vpop.f32.mrf.mxu0
  %v173 = vadd.f32 %v73, %v172
  %v174 = vpop.f32.mrf.mxu0
  %v175 = vadd.f32 %v73, %v174
  %176 = vmatmul.bf16.gmra.mxu0 %v113
  %v177 = vpop.f32.mrf.mxu0
  %v178 = vadd.f32 %v73, %v177
  %v179 = vpop.f32.mrf.mxu0
  %v180 = vadd.f32 %v73, %v179
  %181 = vmatmul.bf16.gmra.mxu0 %v116
  %v182 = vpop.f32.mrf.mxu0
  %v183 = vadd.f32 %v73, %v182
  %v184 = vpop.f32.mrf.mxu0
  %v185 = vadd.f32 %v73, %v184
  %186 = vmatmul.bf16.gmra.mxu0 %v119
  %v187 = vpop.f32.mrf.mxu0
  %v188 = vadd.f32 %v73, %v187
  %v189 = vpop.f32.mrf.mxu0
  %v190 = vadd.f32 %v73, %v189
  %191 = vmatmul.bf16.gmra.mxu0 %v122
  %v192 = vpop.f32.mrf.mxu0
  %v193 = vadd.f32 %v73, %v192
  %v194 = vpop.f32.mrf.mxu0
  %v195 = vadd.f32 %v73, %v194
  %196 = vmatmul.bf16.gmra.mxu0 %v125
  %v197 = vpop.f32.mrf.mxu0
  %v198 = vadd.f32 %v73, %v197
  %v199 = vpop.f32.mrf.mxu0
  %v200 = vadd.f32 %v73, %v199
  %201 = vmatmul.bf16.gmra.mxu0 %v128
  %v202 = vpop.f32.mrf.mxu0
  %v203 = vadd.f32 %v73, %v202
  %v204 = vpop.f32.mrf.mxu0
  %v205 = vadd.f32 %v73, %v204
  %206 = vmatmul.bf16.gmra.mxu0 %v131
  %v207 = vpop.f32.mrf.mxu0
  %v208 = vadd.f32 %v73, %v207
  %v209 = vpop.f32.mrf.mxu0
  %v210 = vadd.f32 %v73, %v209
  %211 = vmatmul.bf16.gmra.mxu0 %v134
  %v212 = vpop.f32.mrf.mxu0
  %v213 = vadd.f32 %v73, %v212
  %v214 = vpop.f32.mrf.mxu0
  %v215 = vadd.f32 %v73, %v214
  %216 = vmatmul.bf16.gmra.mxu0 %v137
  %v217 = vpop.f32.mrf.mxu0
  %v218 = vadd.f32 %v73, %v217
  %v219 = vpop.f32.mrf.mxu0
  %v220 = vadd.f32 %v73, %v219
  %221 = vmatmul.bf16.gmra.mxu0 %v140
  %v222 = vpop.f32.mrf.mxu0
  %v223 = vadd.f32 %v73, %v222
  %v224 = vpop.f32.mrf.mxu0
  %v225 = vadd.f32 %v73, %v224
  %226 = vmatmul.bf16.gmra.mxu0 %v143
  %v227 = vpop.f32.mrf.mxu0
  %v228 = vadd.f32 %v73, %v227
  %v229 = vpop.f32.mrf.mxu0
  %v230 = vadd.f32 %v73, %v229
  %231 = vmatmul.bf16.gmra.mxu0 %v146
  %v232 = vpop.f32.mrf.mxu0
  %v233 = vadd.f32 %v73, %v232
  %v234 = vpop.f32.mrf.mxu0
  %v235 = vadd.f32 %v73, %v234
  %236 = vdwg.mxu0
  %237 = vst [vmem:[%s3] sm:$0xff] %v158
  %238 = vst [vmem:[%s3 + $0x8] sm:$0xff] %v160
  %239 = vst [vmem:[%s3 + $0x10] sm:$0xff] %v163
  %240 = vst [vmem:[%s3 + $0x18] sm:$0xff] %v165
  %241 = vst [vmem:[%s3 + $0x20] sm:$0xff] %v168
  %242 = vst [vmem:[%s3 + $0x28] sm:$0xff] %v170
  %243 = vst [vmem:[%s3 + $0x30] sm:$0xff] %v173
  %244 = vst [vmem:[%s3 + $0x38] sm:$0xff] %v175
  %245 = vst [vmem:[%s3 + $0x40] sm:$0xff] %v178
  %246 = vst [vmem:[%s3 + $0x48] sm:$0xff] %v180
  %247 = vst [vmem:[%s3 + $0x50] sm:$0xff] %v183
  %248 = vst [vmem:[%s3 + $0x58] sm:$0xff] %v185
  %249 = vst [vmem:[%s3 + $0x60] sm:$0xff] %v188
  %250 = vst [vmem:[%s3 + $0x68] sm:$0xff] %v190
  %251 = vst [vmem:[%s3 + $0x70] sm:$0xff] %v193
  %252 = vst [vmem:[%s3 + $0x78] sm:$0xff] %v195
  %253 = vst [vmem:[%s3 + $0x80] sm:$0xff] %v198
  %254 = vst [vmem:[%s3 + $0x88] sm:$0xff] %v200
  %255 = vst [vmem:[%s3 + $0x90] sm:$0xff] %v203
  %256 = vst [vmem:[%s3 + $0x98] sm:$0xff] %v205
  %257 = vst [vmem:[%s3 + $0xa0] sm:$0xff] %v208
  %258 = vst [vmem:[%s3 + $0xa8] sm:$0xff] %v210
  %259 = vst [vmem:[%s3 + $0xb0] sm:$0xff] %v213
  %260 = vst [vmem:[%s3 + $0xb8] sm:$0xff] %v215
  %261 = vst [vmem:[%s3 + $0xc0] sm:$0xff] %v218
  %262 = vst [vmem:[%s3 + $0xc8] sm:$0xff] %v220
  %263 = vst [vmem:[%s3 + $0xd0] sm:$0xff] %v223
  %264 = vst [vmem:[%s3 + $0xd8] sm:$0xff] %v225
  %265 = vst [vmem:[%s3 + $0xe0] sm:$0xff] %v228
  %266 = vst [vmem:[%s3 + $0xe8] sm:$0xff] %v230
  %267 = vst [vmem:[%s3 + $0xf0] sm:$0xff] %v233
  %268 = vst [vmem:[%s3 + $0xf8] sm:$0xff] %v235
  // Predicated region
  $region14: #{encoder_forward.17} parent=0 // pred_check
    _
  $region15: #{encoder_forward.17} parent=0 // pred_check_branch
    %270 = sbr.rel (0) target = $region17
  $region16: #{encoder_forward.17} parent=0 // pred_region
    _
  $region17: #{encoder_forward.17} parent=0 // pred_fallthru
    _
  // Predicated region
  $region18: #{encoder_forward.17} parent=0 // pred_check
    _
  $region19: #{encoder_forward.17} parent=0 // pred_check_branch
    %272 = sbr.rel (0) target = $region21
  $region20: #{encoder_forward.17} parent=0 // pred_region
    _
  $region21: #{encoder_forward.17} parent=0 // pred_fallthru
    _

</llo_original>
